<compile_context>
chip_gen: v6e
topology: v6e:2x2x1
jax: 0.10.0
libtpu: 0.0.40
codegen_flags: <defaults>
</compile_context>

<pallas_src>
import jax
import jax.numpy as jnp
from jax.experimental import pallas as pl
from jax.experimental.pallas import tpu as pltpu

NUM_CLASSES = 9
OUT_PAD = 128            # lane-dense padded output width
IN_FEATURES = 2048
HIDDEN = 256
BN_EPS = 1e-5


def _gate_cell(x_bf16, w_ref, b_ref):
    # Trimmed gate layout (i, g, o); forget gate dropped (f*c_prev == 0).
    # c = i*g, h = o*tanh(i*g).  Gate math stays f32 (v5e has no bf16 VPU/EUP).
    gates = jnp.dot(x_bf16, w_ref[...], preferred_element_type=jnp.float32) + b_ref[...]
    i = jax.nn.sigmoid(gates[:, 0:HIDDEN])
    g = jnp.tanh(gates[:, HIDDEN:2 * HIDDEN])
    o = jax.nn.sigmoid(gates[:, 2 * HIDDEN:3 * HIDDEN])
    return o * jnp.tanh(i * g)                      # f32 (tb, HIDDEN)


def mlp_kernel(x_ref,
               w0_ref, b0_ref, w1_ref, b1_ref, w2_ref, b2_ref,
               wlin_ref, blin_ref,
               out_ref):
    # f32 HBM read; bf16 cast for the MXU happens here (VPU work hidden under MXU).
    x = x_ref[...].astype(jnp.bfloat16)             # (tb, 2048), BN pre-folded into w0/b0
    h0 = _gate_cell(x, w0_ref, b0_ref)
    h1 = _gate_cell(h0.astype(jnp.bfloat16), w1_ref, b1_ref)
    h2 = _gate_cell(h1.astype(jnp.bfloat16), w2_ref, b2_ref)

    # hn.mean(dim=0): the 1/3 factor is pre-folded into wlin, so just sum.
    hm = (h0 + h1 + h2).astype(jnp.bfloat16)

    # final Linear(256 -> num_classes), computed into a 128-lane padded block
    out_ref[...] = (jnp.dot(hm, wlin_ref[...],
                            preferred_element_type=jnp.float32) + blin_ref[...])


def _keep_igo(a):
    """Drop the dead forget-gate column block; keep (i, g, o) in that order.
    Slice boundaries are 256-lane aligned, so layout is unaffected."""
    return jnp.concatenate([a[..., 0 * HIDDEN:1 * HIDDEN],
                            a[..., 2 * HIDDEN:3 * HIDDEN],
                            a[..., 3 * HIDDEN:4 * HIDDEN]], axis=-1)


def fold_params(params):
    """Fold BN into layer-0 weights/bias, pre-sum biases, drop dead W_hh and
    forget-gate columns, fold the 1/3 mean into the classifier weight, cast
    matmul operands to bf16, pad the classifier to 128 lanes."""
    (bn_g, bn_b, bn_m, bn_v,
     wih0, _whh0, bih0, bhh0,
     wih1, _whh1, bih1, bhh1,
     wih2, _whh2, bih2, bhh2,
     wlin, blin) = params

    scale = bn_g * jax.lax.rsqrt(bn_v + BN_EPS)          # (1, 2048)
    shift = bn_b - bn_m * scale                          # (1, 2048)

    w0 = _keep_igo(wih0 * scale.reshape(IN_FEATURES, 1)).astype(jnp.bfloat16)  # (2048, 3H)
    b0 = _keep_igo(bih0 + bhh0 + shift @ wih0)                                 # (1, 3H) f32
    w1 = _keep_igo(wih1).astype(jnp.bfloat16)
    b1 = _keep_igo(bih1 + bhh1)
    w2 = _keep_igo(wih2).astype(jnp.bfloat16)
    b2 = _keep_igo(bih2 + bhh2)

    # Classifier: fold 1/3 (mean over 3 layer hidden states) into the weight;
    # bias is applied after the mean so it is unchanged.
    wlin_p = jnp.zeros((HIDDEN, OUT_PAD), jnp.float32).at[:, :NUM_CLASSES].set(
        wlin * (1.0 / 3.0))
    wlin_p = wlin_p.astype(jnp.bfloat16)
    blin_p = jnp.zeros((1, OUT_PAD), jnp.float32).at[:, :NUM_CLASSES].set(blin)

    return (w0, b0, w1, b1, w2, b2, wlin_p, blin_p)


def mlp_forward(x, kernel_params, *, tb=1024):
    B = x.shape[0]

    # Batch tile: sublane-aligned (multiple of 8); for B > 8 cap it at
    # ceil(B/2) so there are always >= 2 grid steps and the "parallel" batch
    # axis can be sharded across v7x's two TensorCores.
    if B <= 8:
        tb = B
    else:
        tb = min(tb, -(-B // 2))
        tb = max(8, (tb // 8) * 8)
    n_tiles = pl.cdiv(B, tb)

    # No wrapper-side bf16 cast or full-array jnp.pad pass: the kernel reads
    # f32 x directly; a partial last tile is handled by Pallas block padding
    # (garbage rows never mix across rows and are never written back).

    def build(single_buffer_weights):
        def const_spec(shape):
            kwargs = {}
            if single_buffer_weights:
                # weights never change across grid steps -> no double buffer
                kwargs["pipeline_mode"] = pl.Buffered(1)
            return pl.BlockSpec(shape, lambda i: (0, 0), **kwargs)

        in_specs = [pl.BlockSpec((tb, IN_FEATURES), lambda i: (i, 0))]
        in_specs += [const_spec(p.shape) for p in kernel_params]
        out_spec = pl.BlockSpec((tb, OUT_PAD), lambda i: (i, 0))

        return pl.pallas_call(
            mlp_kernel,
            out_shape=jax.ShapeDtypeStruct((B, OUT_PAD), jnp.float32),
            grid=(n_tiles,),
            in_specs=in_specs,
            out_specs=out_spec,
            compiler_params=pltpu.CompilerParams(
                dimension_semantics=("parallel",),
                vmem_limit_bytes=48 << 20),   # headroom under v7x's 64 MiB VMEM
        )

    if hasattr(pl, "Buffered"):
        try:
            return build(True)(x, *kernel_params)[:, :NUM_CLASSES]
        except (TypeError, NotImplementedError, pltpu.LoweringException):
            # TODO(synk): pl.Buffered(1) exists but is rejected by this
            # jax/Mosaic version; deliberate fallback to double-buffered
            # constant weights (identical results, slightly more VMEM).
            pass
    return build(False)(x, *kernel_params)[:, :NUM_CLASSES]


def make_params(key):
    """PyTorch-shaped parameters (weights already transposed to (in, out))."""
    ks = list(jax.random.split(key, 10))

    def uni(k, shape, bound):
        return jax.random.uniform(k, shape, jnp.float32, -bound, bound)

    # BatchNorm1d(2048): non-trivial affine/running stats so the BN fold is exercised.
    bn_g = 1.0 + 0.1 * jax.random.normal(ks[0], (1, IN_FEATURES), jnp.float32)
    bn_b = 0.1 * jax.random.normal(ks[1], (1, IN_FEATURES), jnp.float32)
    bn_m = 0.1 * jax.random.normal(ks[2], (1, IN_FEATURES), jnp.float32)
    bn_v = 0.5 + jax.random.uniform(ks[3], (1, IN_FEATURES), jnp.float32)

    kbound = HIDDEN ** -0.5
    lstm = []
    for layer, in_sz in enumerate((IN_FEATURES, HIDDEN, HIDDEN)):
        k0, k1, k2, k3 = jax.random.split(ks[4 + layer], 4)
        w_ih_t = uni(k0, (in_sz, 4 * HIDDEN), kbound)     # W_ih^T
        w_hh_t = uni(k1, (HIDDEN, 4 * HIDDEN), kbound)    # W_hh^T (dead in this forward)
        b_ih = uni(k2, (1, 4 * HIDDEN), kbound)
        b_hh = uni(k3, (1, 4 * HIDDEN), kbound)
        lstm += [w_ih_t, w_hh_t, b_ih, b_hh]

    w_lin_t = uni(ks[7], (HIDDEN, NUM_CLASSES), kbound)   # W^T
    b_lin = uni(ks[8], (1, NUM_CLASSES), kbound)

    return (bn_g, bn_b, bn_m, bn_v, *lstm, w_lin_t, b_lin)


def mlp_reference(x, params):
    """Pure-JAX f32 reference of the module's eval-mode forward."""
    (bn_g, bn_b, bn_m, bn_v,
     wih0, _whh0, bih0, bhh0,
     wih1, _whh1, bih1, bhh1,
     wih2, _whh2, bih2, bhh2,
     wlin, blin) = params
    xn = (x - bn_m) * jax.lax.rsqrt(bn_v + BN_EPS) * bn_g + bn_b

    def cell(inp, wih, bih, bhh):
        gates = inp @ wih + bih + bhh          # h_prev = 0
        i = jax.nn.sigmoid(gates[:, 0 * HIDDEN:1 * HIDDEN])
        g = jnp.tanh(gates[:, 2 * HIDDEN:3 * HIDDEN])
        o = jax.nn.sigmoid(gates[:, 3 * HIDDEN:4 * HIDDEN])
        return o * jnp.tanh(i * g)             # c_prev = 0

    h0 = cell(xn, wih0, bih0, bhh0)
    h1 = cell(h0, wih1, bih1, bhh1)
    h2 = cell(h1, wih2, bih2, bhh2)
    return (h0 + h1 + h2) / 3.0 @ wlin + blin


def kernel_reference(x, kparams):
    """Pure-JAX replica of the kernel math (same bf16-rounded operands)."""
    w0, b0, w1, b1, w2, b2, wlin_p, blin_p = kparams

    def cell(a, w, b):
        gates = jnp.dot(a, w, preferred_element_type=jnp.float32) + b
        i = jax.nn.sigmoid(gates[:, 0:HIDDEN])
        g = jnp.tanh(gates[:, HIDDEN:2 * HIDDEN])
        o = jax.nn.sigmoid(gates[:, 2 * HIDDEN:3 * HIDDEN])
        return o * jnp.tanh(i * g)

    h0 = cell(x.astype(jnp.bfloat16), w0, b0)
    h1 = cell(h0.astype(jnp.bfloat16), w1, b1)
    h2 = cell(h1.astype(jnp.bfloat16), w2, b2)
    hm = (h0 + h1 + h2).astype(jnp.bfloat16)
    y = jnp.dot(hm, wlin_p, preferred_element_type=jnp.float32) + blin_p
    return y[:, :NUM_CLASSES]


if __name__ == "__main__":
    key = jax.random.PRNGKey(0)
    kx, kp = jax.random.split(key)
    B = 8
    x = jax.random.normal(kx, (B, IN_FEATURES), jnp.float32)
    params = make_params(kp)
    kparams = fold_params(params)

    y = jax.block_until_ready(mlp_forward(x, kparams))
    assert y.shape == (B, NUM_CLASSES)

    y_kref = jax.block_until_ready(kernel_reference(x, kparams))
    y_fref = jax.block_until_ready(mlp_reference(x, params))
    assert jnp.allclose(y, y_kref, rtol=1e-2, atol=1e-2), "mismatch vs same-precision reference"
    assert jnp.allclose(y, y_fref, rtol=3e-2, atol=3e-2), "mismatch vs f32 module reference"

    print("KERNEL_OK")
</pallas_src>

<mosaic_0001>
module attributes {stable_mosaic.version = 11 : i64} {
  func.func @mlp_kernel(%arg0: i32, %arg1: memref<8x2048xf32, #tpu.memory_space<vmem>>, %arg2: memref<2048x768xbf16, #tpu.memory_space<vmem>>, %arg3: memref<1x768xf32, #tpu.memory_space<vmem>>, %arg4: memref<256x768xbf16, #tpu.memory_space<vmem>>, %arg5: memref<1x768xf32, #tpu.memory_space<vmem>>, %arg6: memref<256x768xbf16, #tpu.memory_space<vmem>>, %arg7: memref<1x768xf32, #tpu.memory_space<vmem>>, %arg8: memref<256x128xbf16, #tpu.memory_space<vmem>>, %arg9: memref<1x128xf32, #tpu.memory_space<vmem>>, %arg10: memref<8x128xf32, #tpu.memory_space<vmem>>) attributes {dimension_semantics = [#tpu.dimension_semantics<parallel>], iteration_bounds = array<i64: 1>, scalar_prefetch = 0 : i64, scratch_operands = 0 : i64, tpu.core_type = #tpu.core_type<tc>, window_params = [{transform_indices = @transform_0, window_bounds = array<i64: 8, 2048>}, {pipeline_mode = #tpu.pipeline_mode<synchronous>, transform_indices = @transform_1, window_bounds = array<i64: 2048, 768>}, {pipeline_mode = #tpu.pipeline_mode<synchronous>, transform_indices = @transform_2, window_bounds = array<i64: 1, 768>}, {pipeline_mode = #tpu.pipeline_mode<synchronous>, transform_indices = @transform_3, window_bounds = array<i64: 256, 768>}, {pipeline_mode = #tpu.pipeline_mode<synchronous>, transform_indices = @transform_4, window_bounds = array<i64: 1, 768>}, {pipeline_mode = #tpu.pipeline_mode<synchronous>, transform_indices = @transform_5, window_bounds = array<i64: 256, 768>}, {pipeline_mode = #tpu.pipeline_mode<synchronous>, transform_indices = @transform_6, window_bounds = array<i64: 1, 768>}, {pipeline_mode = #tpu.pipeline_mode<synchronous>, transform_indices = @transform_7, window_bounds = array<i64: 256, 128>}, {pipeline_mode = #tpu.pipeline_mode<synchronous>, transform_indices = @transform_8, window_bounds = array<i64: 1, 128>}, {transform_indices = @transform_9, window_bounds = array<i64: 8, 128>}]} {
    %c0 = arith.constant 0 : index
    %c0_0 = arith.constant 0 : index
    %0 = vector.load %arg1[%c0, %c0_0] : memref<8x2048xf32, #tpu.memory_space<vmem>>, vector<8x2048xf32>
    %1 = arith.truncf %0 : vector<8x2048xf32> to vector<8x2048xbf16>
    %c0_1 = arith.constant 0 : index
    %c0_2 = arith.constant 0 : index
    %2 = vector.load %arg2[%c0_1, %c0_2] : memref<2048x768xbf16, #tpu.memory_space<vmem>>, vector<2048x768xbf16>
    %cst = arith.constant dense<0.000000e+00> : vector<8x768xf32>
    %3 = tpu.matmul %1, %2, %cst {dimension_numbers = #tpu.dot_dimension_numbers<[1], [0], [0], [1], [0, 0, 1, 1], [], []>} : vector<8x2048xbf16>, vector<2048x768xbf16>, vector<8x768xf32> -> vector<8x768xf32>
    %c0_3 = arith.constant 0 : index
    %c0_4 = arith.constant 0 : index
    %4 = vector.load %arg3[%c0_3, %c0_4] : memref<1x768xf32, #tpu.memory_space<vmem>>, vector<1x768xf32>
    %5 = vector.broadcast %4 : vector<1x768xf32> to vector<8x768xf32>
    %6 = arith.addf %3, %5 : vector<8x768xf32>
    %7 = vector.extract_strided_slice %6 {offsets = [0, 0], sizes = [8, 256], strides = [1, 1]} : vector<8x768xf32> to vector<8x256xf32>
    %8 = arith.negf %7 : vector<8x256xf32>
    %9 = math.exp %8 : vector<8x256xf32>
    %cst_5 = arith.constant 1.000000e+00 : f32
    %10 = vector.broadcast %cst_5 : f32 to vector<8x256xf32>
    %11 = arith.addf %10, %9 : vector<8x256xf32>
    %12 = arith.divf %10, %11 : vector<8x256xf32>
    %13 = vector.extract_strided_slice %6 {offsets = [0, 256], sizes = [8, 256], strides = [1, 1]} : vector<8x768xf32> to vector<8x256xf32>
    %14 = math.tanh %13 : vector<8x256xf32>
    %15 = vector.extract_strided_slice %6 {offsets = [0, 512], sizes = [8, 256], strides = [1, 1]} : vector<8x768xf32> to vector<8x256xf32>
    %16 = arith.negf %15 : vector<8x256xf32>
    %17 = math.exp %16 : vector<8x256xf32>
    %cst_6 = arith.constant 1.000000e+00 : f32
    %18 = vector.broadcast %cst_6 : f32 to vector<8x256xf32>
    %19 = arith.addf %18, %17 : vector<8x256xf32>
    %20 = arith.divf %18, %19 : vector<8x256xf32>
    %21 = arith.mulf %12, %14 : vector<8x256xf32>
    %22 = math.tanh %21 : vector<8x256xf32>
    %23 = arith.mulf %20, %22 : vector<8x256xf32>
    %24 = arith.truncf %23 : vector<8x256xf32> to vector<8x256xbf16>
    %c0_7 = arith.constant 0 : index
    %c0_8 = arith.constant 0 : index
    %25 = vector.load %arg4[%c0_7, %c0_8] : memref<256x768xbf16, #tpu.memory_space<vmem>>, vector<256x768xbf16>
    %cst_9 = arith.constant dense<0.000000e+00> : vector<8x768xf32>
    %26 = tpu.matmul %24, %25, %cst_9 {dimension_numbers = #tpu.dot_dimension_numbers<[1], [0], [0], [1], [0, 0, 1, 1], [], []>} : vector<8x256xbf16>, vector<256x768xbf16>, vector<8x768xf32> -> vector<8x768xf32>
    %c0_10 = arith.constant 0 : index
    %c0_11 = arith.constant 0 : index
    %27 = vector.load %arg5[%c0_10, %c0_11] : memref<1x768xf32, #tpu.memory_space<vmem>>, vector<1x768xf32>
    %28 = vector.broadcast %27 : vector<1x768xf32> to vector<8x768xf32>
    %29 = arith.addf %26, %28 : vector<8x768xf32>
    %30 = vector.extract_strided_slice %29 {offsets = [0, 0], sizes = [8, 256], strides = [1, 1]} : vector<8x768xf32> to vector<8x256xf32>
    %31 = arith.negf %30 : vector<8x256xf32>
    %32 = math.exp %31 : vector<8x256xf32>
    %cst_12 = arith.constant 1.000000e+00 : f32
    %33 = vector.broadcast %cst_12 : f32 to vector<8x256xf32>
    %34 = arith.addf %33, %32 : vector<8x256xf32>
    %35 = arith.divf %33, %34 : vector<8x256xf32>
    %36 = vector.extract_strided_slice %29 {offsets = [0, 256], sizes = [8, 256], strides = [1, 1]} : vector<8x768xf32> to vector<8x256xf32>
    %37 = math.tanh %36 : vector<8x256xf32>
    %38 = vector.extract_strided_slice %29 {offsets = [0, 512], sizes = [8, 256], strides = [1, 1]} : vector<8x768xf32> to vector<8x256xf32>
    %39 = arith.negf %38 : vector<8x256xf32>
    %40 = math.exp %39 : vector<8x256xf32>
    %cst_13 = arith.constant 1.000000e+00 : f32
    %41 = vector.broadcast %cst_13 : f32 to vector<8x256xf32>
    %42 = arith.addf %41, %40 : vector<8x256xf32>
    %43 = arith.divf %41, %42 : vector<8x256xf32>
    %44 = arith.mulf %35, %37 : vector<8x256xf32>
    %45 = math.tanh %44 : vector<8x256xf32>
    %46 = arith.mulf %43, %45 : vector<8x256xf32>
    %47 = arith.truncf %46 : vector<8x256xf32> to vector<8x256xbf16>
    %c0_14 = arith.constant 0 : index
    %c0_15 = arith.constant 0 : index
    %48 = vector.load %arg6[%c0_14, %c0_15] : memref<256x768xbf16, #tpu.memory_space<vmem>>, vector<256x768xbf16>
    %cst_16 = arith.constant dense<0.000000e+00> : vector<8x768xf32>
    %49 = tpu.matmul %47, %48, %cst_16 {dimension_numbers = #tpu.dot_dimension_numbers<[1], [0], [0], [1], [0, 0, 1, 1], [], []>} : vector<8x256xbf16>, vector<256x768xbf16>, vector<8x768xf32> -> vector<8x768xf32>
    %c0_17 = arith.constant 0 : index
    %c0_18 = arith.constant 0 : index
    %50 = vector.load %arg7[%c0_17, %c0_18] : memref<1x768xf32, #tpu.memory_space<vmem>>, vector<1x768xf32>
    %51 = vector.broadcast %50 : vector<1x768xf32> to vector<8x768xf32>
    %52 = arith.addf %49, %51 : vector<8x768xf32>
    %53 = vector.extract_strided_slice %52 {offsets = [0, 0], sizes = [8, 256], strides = [1, 1]} : vector<8x768xf32> to vector<8x256xf32>
    %54 = arith.negf %53 : vector<8x256xf32>
    %55 = math.exp %54 : vector<8x256xf32>
    %cst_19 = arith.constant 1.000000e+00 : f32
    %56 = vector.broadcast %cst_19 : f32 to vector<8x256xf32>
    %57 = arith.addf %56, %55 : vector<8x256xf32>
    %58 = arith.divf %56, %57 : vector<8x256xf32>
    %59 = vector.extract_strided_slice %52 {offsets = [0, 256], sizes = [8, 256], strides = [1, 1]} : vector<8x768xf32> to vector<8x256xf32>
    %60 = math.tanh %59 : vector<8x256xf32>
    %61 = vector.extract_strided_slice %52 {offsets = [0, 512], sizes = [8, 256], strides = [1, 1]} : vector<8x768xf32> to vector<8x256xf32>
    %62 = arith.negf %61 : vector<8x256xf32>
    %63 = math.exp %62 : vector<8x256xf32>
    %cst_20 = arith.constant 1.000000e+00 : f32
    %64 = vector.broadcast %cst_20 : f32 to vector<8x256xf32>
    %65 = arith.addf %64, %63 : vector<8x256xf32>
    %66 = arith.divf %64, %65 : vector<8x256xf32>
    %67 = arith.mulf %58, %60 : vector<8x256xf32>
    %68 = math.tanh %67 : vector<8x256xf32>
    %69 = arith.mulf %66, %68 : vector<8x256xf32>
    %70 = arith.addf %23, %46 : vector<8x256xf32>
    %71 = arith.addf %70, %69 : vector<8x256xf32>
    %72 = arith.truncf %71 : vector<8x256xf32> to vector<8x256xbf16>
    %c0_21 = arith.constant 0 : index
    %c0_22 = arith.constant 0 : index
    %73 = vector.load %arg8[%c0_21, %c0_22] : memref<256x128xbf16, #tpu.memory_space<vmem>>, vector<256x128xbf16>
    %cst_23 = arith.constant dense<0.000000e+00> : vector<8x128xf32>
    %74 = tpu.matmul %72, %73, %cst_23 {dimension_numbers = #tpu.dot_dimension_numbers<[1], [0], [0], [1], [0, 0, 1, 1], [], []>} : vector<8x256xbf16>, vector<256x128xbf16>, vector<8x128xf32> -> vector<8x128xf32>
    %c0_24 = arith.constant 0 : index
    %c0_25 = arith.constant 0 : index
    %75 = vector.load %arg9[%c0_24, %c0_25] : memref<1x128xf32, #tpu.memory_space<vmem>>, vector<1x128xf32>
    %76 = vector.broadcast %75 : vector<1x128xf32> to vector<8x128xf32>
    %77 = arith.addf %74, %76 : vector<8x128xf32>
    %c0_26 = arith.constant 0 : index
    %c0_27 = arith.constant 0 : index
    %78 = vector.load %arg10[%c0_26, %c0_27] : memref<8x128xf32, #tpu.memory_space<vmem>>, vector<8x128xf32>
    tpu.vector_store %arg10[%c0_26, %c0_27], %77 {strides = array<i32>} : memref<8x128xf32, #tpu.memory_space<vmem>>, vector<8x128xf32>,
    return
  }
  func.func @transform_0(%arg0: i32) -> (i32, i32) {
    %c0_i32 = arith.constant 0 : i32
    %c0_i32_0 = arith.constant 0 : i32
    return %arg0, %c0_i32 : i32, i32
  }
  func.func @transform_1(%arg0: i32) -> (i32, i32) {
    %c0_i32 = arith.constant 0 : i32
    %c0_i32_0 = arith.constant 0 : i32
    %c0_i32_1 = arith.constant 0 : i32
    return %c0_i32, %c0_i32_0 : i32, i32
  }
  func.func @transform_2(%arg0: i32) -> (i32, i32) {
    %c0_i32 = arith.constant 0 : i32
    %c0_i32_0 = arith.constant 0 : i32
    %c0_i32_1 = arith.constant 0 : i32
    return %c0_i32, %c0_i32_0 : i32, i32
  }
  func.func @transform_3(%arg0: i32) -> (i32, i32) {
    %c0_i32 = arith.constant 0 : i32
    %c0_i32_0 = arith.constant 0 : i32
    %c0_i32_1 = arith.constant 0 : i32
    return %c0_i32, %c0_i32_0 : i32, i32
  }
  func.func @transform_4(%arg0: i32) -> (i32, i32) {
    %c0_i32 = arith.constant 0 : i32
    %c0_i32_0 = arith.constant 0 : i32
    %c0_i32_1 = arith.constant 0 : i32
    return %c0_i32, %c0_i32_0 : i32, i32
  }
  func.func @transform_5(%arg0: i32) -> (i32, i32) {
    %c0_i32 = arith.constant 0 : i32
    %c0_i32_0 = arith.constant 0 : i32
    %c0_i32_1 = arith.constant 0 : i32
    return %c0_i32, %c0_i32_0 : i32, i32
  }
  func.func @transform_6(%arg0: i32) -> (i32, i32) {
    %c0_i32 = arith.constant 0 : i32
    %c0_i32_0 = arith.constant 0 : i32
    %c0_i32_1 = arith.constant 0 : i32
    return %c0_i32, %c0_i32_0 : i32, i32
  }
  func.func @transform_7(%arg0: i32) -> (i32, i32) {
    %c0_i32 = arith.constant 0 : i32
    %c0_i32_0 = arith.constant 0 : i32
    %c0_i32_1 = arith.constant 0 : i32
    return %c0_i32, %c0_i32_0 : i32, i32
  }
  func.func @transform_8(%arg0: i32) -> (i32, i32) {
    %c0_i32 = arith.constant 0 : i32
    %c0_i32_0 = arith.constant 0 : i32
    %c0_i32_1 = arith.constant 0 : i32
    return %c0_i32, %c0_i32_0 : i32, i32
  }
  func.func @transform_9(%arg0: i32) -> (i32, i32) {
    %c0_i32 = arith.constant 0 : i32
    %c0_i32_0 = arith.constant 0 : i32
    return %arg0, %c0_i32 : i32, i32
  }
}

</mosaic_0001>

<llo_original>
// kernel: tpu_custom_call.1
$region0: #{tpu_custom_call.1}
  #allocation0 [shape = 'u32[]', space=smem, size = 0x4, offset = 0x4, fixed_abs, tag = 'smem constant byte address 0x4 - core index']
  #allocation1 [shape = 'u32[144,128]{1,0:T(1,128)}', space=vmem, size = 0x12000, scoped, tag = 'internal scratch']
  %s0 = inlined_call_operand.hbm [shape: f32[8,2048], index: 0, kind: input, shape index: {}]
  %s1 = inlined_call_operand.hbm [shape: bf16[2048,768], index: 1, kind: input, shape index: {}]
  %s2 = inlined_call_operand.hbm [shape: f32[1,768], index: 2, kind: input, shape index: {}]
  %s3 = inlined_call_operand.hbm [shape: bf16[256,768], index: 3, kind: input, shape index: {}]
  %s4 = inlined_call_operand.hbm [shape: f32[1,768], index: 4, kind: input, shape index: {}]
  %s5 = inlined_call_operand.hbm [shape: bf16[256,768], index: 5, kind: input, shape index: {}]
  %s6 = inlined_call_operand.hbm [shape: f32[1,768], index: 6, kind: input, shape index: {}]
  %s7 = inlined_call_operand.hbm [shape: bf16[256,128], index: 7, kind: input, shape index: {}]
  %s8 = inlined_call_operand.hbm [shape: f32[1,128], index: 8, kind: input, shape index: {}]
  %s9 = inlined_call_operand.hbm [shape: f32[8,128], index: 9, kind: output, shape index: {}]
  %s10 = sld [smem:[#allocation0]]
  $region82: #{tpu_custom_call.1} parent=0
    _
  %s12 = ssub.s32 1, %s10
  %s13 = scalar_select 0, %s12, %s10
  $region1: #{tpu_custom_call.1} parent=0
    #allocation2 [shape = 'u8[65536]{0}', space=vmem, size = 0x10000, scoped, tag = 'input window, operand 0, single buffered']
    #allocation3 [shape = 's32[1]{0}', space=sflag, size = 0x4, scoped, tag = 'scoped memory for tpu_custom_call.1']
    #allocation4 [shape = 's32[1]{0}', space=sflag, size = 0x4, scoped, tag = 'scoped memory for tpu_custom_call.1']
    #allocation5 [shape = 'u8[3145728]{0}', space=vmem, size = 0x300000, scoped, tag = 'input window, operand 1, single buffered']
    #allocation6 [shape = 's32[1]{0}', space=sflag, size = 0x4, scoped, tag = 'scoped memory for tpu_custom_call.1']
    #allocation7 [shape = 'u8[3072]{0}', space=vmem, size = 0xc00, scoped, tag = 'input window, operand 2, single buffered']
    #allocation8 [shape = 'u8[393216]{0}', space=vmem, size = 0x60000, scoped, tag = 'input window, operand 3, single buffered']
    #allocation9 [shape = 's32[1]{0}', space=sflag, size = 0x4, scoped, tag = 'scoped memory for tpu_custom_call.1']
    #allocation10 [shape = 'u8[3072]{0}', space=vmem, size = 0xc00, scoped, tag = 'input window, operand 4, single buffered']
    #allocation11 [shape = 'u8[393216]{0}', space=vmem, size = 0x60000, scoped, tag = 'input window, operand 5, single buffered']
    #allocation12 [shape = 's32[1]{0}', space=sflag, size = 0x4, scoped, tag = 'scoped memory for tpu_custom_call.1']
    #allocation13 [shape = 'u8[3072]{0}', space=vmem, size = 0xc00, scoped, tag = 'input window, operand 6, single buffered']
    #allocation14 [shape = 'u8[65536]{0}', space=vmem, size = 0x10000, scoped, tag = 'input window, operand 7, single buffered']
    #allocation15 [shape = 's32[1]{0}', space=sflag, size = 0x4, scoped, tag = 'scoped memory for tpu_custom_call.1']
    #allocation16 [shape = 'u8[512]{0}', space=vmem, size = 0x400, scoped, tag = 'input window, operand 8, single buffered']
    #allocation17 [shape = 'u8[4096]{0}', space=vmem, size = 0x1000, scoped, tag = 'output window, operand 0, single buffered']
    %14 = vsyncpa [#allocation3], 0
    %15 = vsyncpa [#allocation6], 0
    %16 = vsyncpa [#allocation9], 0
    %17 = vsyncpa [#allocation12], 0
    %18 = vsyncpa [#allocation15], 0
    %19 = vsyncpa [#allocation4], 0
    // Predicated region
    $region2: #{tpu_custom_call.1} parent=1 // pred_check
      _
    $region3: #{tpu_custom_call.1} parent=1 // pred_check_branch
      %21 = sbr.rel (0) target = $region5
    $region4: #{tpu_custom_call.1} parent=1 // pred_region
      %s23 = ssub.s32 2048, 2048
      %24 = vsyncadd [#allocation3], %s23
      %s26 = sshll.u32 [#allocation2], 4
      %s27 = int_to_ptr.vmem [resolvable:$true] %s26
      %29 = dma.hbm_to_vmem [thread:$0]  %s0, 2048, %s27, [#allocation3]
    $region5: #{tpu_custom_call.1} parent=1 // pred_fallthru
      _
    // Predicated region
    $region6: #{tpu_custom_call.1} parent=1 // pred_check
      _
    $region7: #{tpu_custom_call.1} parent=1 // pred_check_branch
      %31 = sbr.rel (0) target = $region9
    $region8: #{tpu_custom_call.1} parent=1 // pred_region
      %s33 = ssub.s32 98304, 98304
      %34 = vsyncadd [#allocation6], %s33
      %s35 = sshll.u32 [#allocation5], 4
      %s36 = int_to_ptr.vmem [resolvable:$true] %s35
      %41 = dma.hbm_to_vmem [thread:$0]  %s1, 98304, %s36, [#allocation6], 384, 384, 24
    $region9: #{tpu_custom_call.1} parent=1 // pred_fallthru
      _
    // Predicated region
    $region10: #{tpu_custom_call.1} parent=1 // pred_check
      _
    $region11: #{tpu_custom_call.1} parent=1 // pred_check_branch
      %43 = sbr.rel (0) target = $region13
    $region12: #{tpu_custom_call.1} parent=1 // pred_region
      %s45 = ssub.s32 96, 96
      %46 = vsyncadd [#allocation6], %s45
      %s48 = sshll.u32 [#allocation7], 4
      %s49 = int_to_ptr.vmem [resolvable:$true] %s48
      %51 = dma.hbm_to_vmem [thread:$0]  %s2, 96, %s49, [#allocation6]
    $region13: #{tpu_custom_call.1} parent=1 // pred_fallthru
      _
    // Predicated region
    $region14: #{tpu_custom_call.1} parent=1 // pred_check
      _
    $region15: #{tpu_custom_call.1} parent=1 // pred_check_branch
      %53 = sbr.rel (0) target = $region17
    $region16: #{tpu_custom_call.1} parent=1 // pred_region
      %s55 = ssub.s32 12288, 12288
      %56 = vsyncadd [#allocation9], %s55
      %s57 = sshll.u32 [#allocation8], 4
      %s58 = int_to_ptr.vmem [resolvable:$true] %s57
      %63 = dma.hbm_to_vmem [thread:$0]  %s3, 12288, %s58, [#allocation9], 384, 384, 24
    $region17: #{tpu_custom_call.1} parent=1 // pred_fallthru
      _
    // Predicated region
    $region18: #{tpu_custom_call.1} parent=1 // pred_check
      _
    $region19: #{tpu_custom_call.1} parent=1 // pred_check_branch
      %65 = sbr.rel (0) target = $region21
    $region20: #{tpu_custom_call.1} parent=1 // pred_region
      %s67 = ssub.s32 96, 96
      %68 = vsyncadd [#allocation9], %s67
      %s70 = sshll.u32 [#allocation10], 4
      %s71 = int_to_ptr.vmem [resolvable:$true] %s70
      %73 = dma.hbm_to_vmem [thread:$0]  %s4, 96, %s71, [#allocation9]
    $region21: #{tpu_custom_call.1} parent=1 // pred_fallthru
      _
    // Predicated region
    $region22: #{tpu_custom_call.1} parent=1 // pred_check
      _
    $region23: #{tpu_custom_call.1} parent=1 // pred_check_branch
      %75 = sbr.rel (0) target = $region25
    $region24: #{tpu_custom_call.1} parent=1 // pred_region
      %s77 = ssub.s32 12288, 12288
      %78 = vsyncadd [#allocation12], %s77
      %s79 = sshll.u32 [#allocation11], 4
      %s80 = int_to_ptr.vmem [resolvable:$true] %s79
      %85 = dma.hbm_to_vmem [thread:$0]  %s5, 12288, %s80, [#allocation12], 384, 384, 24
    $region25: #{tpu_custom_call.1} parent=1 // pred_fallthru
      _
    // Predicated region
    $region26: #{tpu_custom_call.1} parent=1 // pred_check
      _
    $region27: #{tpu_custom_call.1} parent=1 // pred_check_branch
      %87 = sbr.rel (0) target = $region29
    $region28: #{tpu_custom_call.1} parent=1 // pred_region
      %s89 = ssub.s32 96, 96
      %90 = vsyncadd [#allocation12], %s89
      %s92 = sshll.u32 [#allocation13], 4
      %s93 = int_to_ptr.vmem [resolvable:$true] %s92
      %95 = dma.hbm_to_vmem [thread:$0]  %s6, 96, %s93, [#allocation12]
    $region29: #{tpu_custom_call.1} parent=1 // pred_fallthru
      _
    // Predicated region
    $region30: #{tpu_custom_call.1} parent=1 // pred_check
      _
    $region31: #{tpu_custom_call.1} parent=1 // pred_check_branch
      %97 = sbr.rel (0) target = $region33
    $region32: #{tpu_custom_call.1} parent=1 // pred_region
      %s99 = ssub.s32 2048, 2048
      %100 = vsyncadd [#allocation15], %s99
      %s101 = sshll.u32 [#allocation14], 4
      %s102 = int_to_ptr.vmem [resolvable:$true] %s101
      %107 = dma.hbm_to_vmem [thread:$0]  %s7, 2048, %s102, [#allocation15], 64, 64, 4
    $region33: #{tpu_custom_call.1} parent=1 // pred_fallthru
      _
    // Predicated region
    $region34: #{tpu_custom_call.1} parent=1 // pred_check
      _
    $region35: #{tpu_custom_call.1} parent=1 // pred_check_branch
      %109 = sbr.rel (0) target = $region37
    $region36: #{tpu_custom_call.1} parent=1 // pred_region
      %s111 = ssub.s32 16, 16
      %112 = vsyncadd [#allocation15], %s111
      %s114 = sshll.u32 [#allocation16], 4
      %s115 = int_to_ptr.vmem [resolvable:$true] %s114
      %117 = dma.hbm_to_vmem [thread:$0]  %s8, 16, %s115, [#allocation15]
    $region37: #{tpu_custom_call.1} parent=1 // pred_fallthru
      _
    // Predicated region
    $region38: #{tpu_custom_call.1} parent=1 // pred_check
      _
    $region39: #{tpu_custom_call.1} parent=1 // pred_check_branch
      %119 = sbr.rel (0) target = $region41
    $region40: #{tpu_custom_call.1} parent=1 // pred_region
      %120 = dma.done [#allocation3], 2048
    $region41: #{tpu_custom_call.1} parent=1 // pred_fallthru
      _
    // Predicated region
    $region42: #{tpu_custom_call.1} parent=1 // pred_check
      _
    $region43: #{tpu_custom_call.1} parent=1 // pred_check_branch
      %122 = sbr.rel (0) target = $region45
    $region44: #{tpu_custom_call.1} parent=1 // pred_region
      %123 = dma.done [#allocation6], 98304
    $region45: #{tpu_custom_call.1} parent=1 // pred_fallthru
      _
    // Predicated region
    $region46: #{tpu_custom_call.1} parent=1 // pred_check
      _
    $region47: #{tpu_custom_call.1} parent=1 // pred_check_branch
      %125 = sbr.rel (0) target = $region49
    $region48: #{tpu_custom_call.1} parent=1 // pred_region
      %126 = dma.done [#allocation6], 96
    $region49: #{tpu_custom_call.1} parent=1 // pred_fallthru
      _
    // Predicated region
    $region50: #{tpu_custom_call.1} parent=1 // pred_check
      _
    $region51: #{tpu_custom_call.1} parent=1 // pred_check_branch
      %128 = sbr.rel (0) target = $region53
    $region52: #{tpu_custom_call.1} parent=1 // pred_region
      %129 = dma.done [#allocation9], 12288
    $region53: #{tpu_custom_call.1} parent=1 // pred_fallthru
      _
    // Predicated region
    $region54: #{tpu_custom_call.1} parent=1 // pred_check
      _
    $region55: #{tpu_custom_call.1} parent=1 // pred_check_branch
      %131 = sbr.rel (0) target = $region57
    $region56: #{tpu_custom_call.1} parent=1 // pred_region
      %132 = dma.done [#allocation9], 96
    $region57: #{tpu_custom_call.1} parent=1 // pred_fallthru
      _
    // Predicated region
    $region58: #{tpu_custom_call.1} parent=1 // pred_check
      _
    $region59: #{tpu_custom_call.1} parent=1 // pred_check_branch
      %134 = sbr.rel (0) target = $region61
    $region60: #{tpu_custom_call.1} parent=1 // pred_region
      %135 = dma.done [#allocation12], 12288
    $region61: #{tpu_custom_call.1} parent=1 // pred_fallthru
      _
    // Predicated region
    $region62: #{tpu_custom_call.1} parent=1 // pred_check
      _
    $region63: #{tpu_custom_call.1} parent=1 // pred_check_branch
      %137 = sbr.rel (0) target = $region65
    $region64: #{tpu_custom_call.1} parent=1 // pred_region
      %138 = dma.done [#allocation12], 96
    $region65: #{tpu_custom_call.1} parent=1 // pred_fallthru
      _
    // Predicated region
    $region66: #{tpu_custom_call.1} parent=1 // pred_check
      _
    $region67: #{tpu_custom_call.1} parent=1 // pred_check_branch
      %140 = sbr.rel (0) target = $region69
    $region68: #{tpu_custom_call.1} parent=1 // pred_region
      %141 = dma.done [#allocation15], 2048
    $region69: #{tpu_custom_call.1} parent=1 // pred_fallthru
      _
    // Predicated region
    $region70: #{tpu_custom_call.1} parent=1 // pred_check
      _
    $region71: #{tpu_custom_call.1} parent=1 // pred_check_branch
      %143 = sbr.rel (0) target = $region73
    $region72: #{tpu_custom_call.1} parent=1 // pred_region
      %144 = dma.done [#allocation15], 16
    $region73: #{tpu_custom_call.1} parent=1 // pred_fallthru
      _
    %v146 = vld [vmem:[#allocation2] sm:$0xff]
    %v147 = vld [vmem:[#allocation2 + $0x8] sm:$0xff]
    %v148 = vld [vmem:[#allocation2 + $0x10] sm:$0xff]
    %v149 = vld [vmem:[#allocation2 + $0x18] sm:$0xff]
    %v150 = vld [vmem:[#allocation2 + $0x20] sm:$0xff]
    %v151 = vld [vmem:[#allocation2 + $0x28] sm:$0xff]
    %v152 = vld [vmem:[#allocation2 + $0x30] sm:$0xff]
    %v153 = vld [vmem:[#allocation2 + $0x38] sm:$0xff]
    %v154 = vld [vmem:[#allocation2 + $0x40] sm:$0xff]
    %v155 = vld [vmem:[#allocation2 + $0x48] sm:$0xff]
    %v156 = vld [vmem:[#allocation2 + $0x50] sm:$0xff]
    %v157 = vld [vmem:[#allocation2 + $0x58] sm:$0xff]
    %v158 = vld [vmem:[#allocation2 + $0x60] sm:$0xff]
    %v159 = vld [vmem:[#allocation2 + $0x68] sm:$0xff]
    %v160 = vld [vmem:[#allocation2 + $0x70] sm:$0xff]
    %v161 = vld [vmem:[#allocation2 + $0x78] sm:$0xff]
    %v162 = vpack.c.bf16 %v146, %v146
    %v163 = vpack.c.bf16 %v147, %v147
    %v164 = vpack.c.bf16 %v148, %v148
    %v165 = vpack.c.bf16 %v149, %v149
    %v166 = vpack.c.bf16 %v150, %v150
    %v167 = vpack.c.bf16 %v151, %v151
    %v168 = vpack.c.bf16 %v152, %v152
    %v169 = vpack.c.bf16 %v153, %v153
    %v170 = vpack.c.bf16 %v154, %v154
    %v171 = vpack.c.bf16 %v155, %v155
    %v172 = vpack.c.bf16 %v156, %v156
    %v173 = vpack.c.bf16 %v157, %v157
    %v174 = vpack.c.bf16 %v158, %v158
    %v175 = vpack.c.bf16 %v159, %v159
    %v176 = vpack.c.bf16 %v160, %v160
    %v177 = vpack.c.bf16 %v161, %v161
    %v178 = vld [vmem:[#allocation5] sm:$0xff]
    %v179 = vld [vmem:[#allocation5 + $0x8] sm:$0xff]
    %v180 = vld [vmem:[#allocation5 + $0x10] sm:$0xff]
    %v181 = vld [vmem:[#allocation5 + $0x18] sm:$0xff]
    %v182 = vld [vmem:[#allocation5 + $0x20] sm:$0xff]
    %v183 = vld [vmem:[#allocation5 + $0x28] sm:$0xff]
    %v184 = vld [vmem:[#allocation5 + $0x30] sm:$0xff]
    %v185 = vld [vmem:[#allocation5 + $0x38] sm:$0xff]
    %v186 = vld [vmem:[#allocation5 + $0x40] sm:$0xff]
    %v187 = vld [vmem:[#allocation5 + $0x48] sm:$0xff]
    %v188 = vld [vmem:[#allocation5 + $0x50] sm:$0xff]
    %v189 = vld [vmem:[#allocation5 + $0x58] sm:$0xff]
    %v190 = vld [vmem:[#allocation5 + $0x60] sm:$0xff]
    %v191 = vld [vmem:[#allocation5 + $0x68] sm:$0xff]
    %v192 = vld [vmem:[#allocation5 + $0x70] sm:$0xff]
    %v193 = vld [vmem:[#allocation5 + $0x78] sm:$0xff]
    %v194 = vld [vmem:[#allocation5 + $0x80] sm:$0xff]
    %v195 = vld [vmem:[#allocation5 + $0x88] sm:$0xff]
    %v196 = vld [vmem:[#allocation5 + $0x90] sm:$0xff]
    %v197 = vld [vmem:[#allocation5 + $0x98] sm:$0xff]
    %v198 = vld [vmem:[#allocation5 + $0xa0] sm:$0xff]
    %v199 = vld [vmem:[#allocation5 + $0xa8] sm:$0xff]
    %v200 = vld [vmem:[#allocation5 + $0xb0] sm:$0xff]
    %v201 = vld [vmem:[#allocation5 + $0xb8] sm:$0xff]
    %v202 = vld [vmem:[#allocation5 + $0xc0] sm:$0xff]
    %v203 = vld [vmem:[#allocation5 + $0xc8] sm:$0xff]
    %v204 = vld [vmem:[#allocation5 + $0xd0] sm:$0xff]
    %v205 = vld [vmem:[#allocation5 + $0xd8] sm:$0xff]
    %v206 = vld [vmem:[#allocation5 + $0xe0] sm:$0xff]
    %v207 = vld [vmem:[#allocation5 + $0xe8] sm:$0xff]
    %v208 = vld [vmem:[#allocation5 + $0xf0] sm:$0xff]
    %v209 = vld [vmem:[#allocation5 + $0xf8] sm:$0xff]
    %v210 = vld [vmem:[#allocation5 + $0x100] sm:$0xff]
    %v211 = vld [vmem:[#allocation5 + $0x108] sm:$0xff]
    %v212 = vld [vmem:[#allocation5 + $0x110] sm:$0xff]
    %v213 = vld [vmem:[#allocation5 + $0x118] sm:$0xff]
    %v214 = vld [vmem:[#allocation5 + $0x120] sm:$0xff]
    %v215 = vld [vmem:[#allocation5 + $0x128] sm:$0xff]
    %v216 = vld [vmem:[#allocation5 + $0x130] sm:$0xff]
    %v217 = vld [vmem:[#allocation5 + $0x138] sm:$0xff]
    %v218 = vld [vmem:[#allocation5 + $0x140] sm:$0xff]
    %v219 = vld [vmem:[#allocation5 + $0x148] sm:$0xff]
    %v220 = vld [vmem:[#allocation5 + $0x150] sm:$0xff]
    %v221 = vld [vmem:[#allocation5 + $0x158] sm:$0xff]
    %v222 = vld [vmem:[#allocation5 + $0x160] sm:$0xff]
    %v223 = vld [vmem:[#allocation5 + $0x168] sm:$0xff]
    %v224 = vld [vmem:[#allocation5 + $0x170] sm:$0xff]
    %v225 = vld [vmem:[#allocation5 + $0x178] sm:$0xff]
    %v226 = vld [vmem:[#allocation5 + $0x180] sm:$0xff]
    %v227 = vld [vmem:[#allocation5 + $0x188] sm:$0xff]
    %v228 = vld [vmem:[#allocation5 + $0x190] sm:$0xff]
    %v229 = vld [vmem:[#allocation5 + $0x198] sm:$0xff]
    %v230 = vld [vmem:[#allocation5 + $0x1a0] sm:$0xff]
    %v231 = vld [vmem:[#allocation5 + $0x1a8] sm:$0xff]
    %v232 = vld [vmem:[#allocation5 + $0x1b0] sm:$0xff]
    %v233 = vld [vmem:[#allocation5 + $0x1b8] sm:$0xff]
    %v234 = vld [vmem:[#allocation5 + $0x1c0] sm:$0xff]
    %v235 = vld [vmem:[#allocation5 + $0x1c8] sm:$0xff]
    %v236 = vld [vmem:[#allocation5 + $0x1d0] sm:$0xff]
    %v237 = vld [vmem:[#allocation5 + $0x1d8] sm:$0xff]
    %v238 = vld [vmem:[#allocation5 + $0x1e0] sm:$0xff]
    %v239 = vld [vmem:[#allocation5 + $0x1e8] sm:$0xff]
    %v240 = vld [vmem:[#allocation5 + $0x1f0] sm:$0xff]
    %v241 = vld [vmem:[#allocation5 + $0x1f8] sm:$0xff]
    %v242 = vld [vmem:[#allocation5 + $0x200] sm:$0xff]
    %v243 = vld [vmem:[#allocation5 + $0x208] sm:$0xff]
    %v244 = vld [vmem:[#allocation5 + $0x210] sm:$0xff]
    %v245 = vld [vmem:[#allocation5 + $0x218] sm:$0xff]
    %v246 = vld [vmem:[#allocation5 + $0x220] sm:$0xff]
    %v247 = vld [vmem:[#allocation5 + $0x228] sm:$0xff]
    %v248 = vld [vmem:[#allocation5 + $0x230] sm:$0xff]
    %v249 = vld [vmem:[#allocation5 + $0x238] sm:$0xff]
    %v250 = vld [vmem:[#allocation5 + $0x240] sm:$0xff]
    %v251 = vld [vmem:[#allocation5 + $0x248] sm:$0xff]
    %v252 = vld [vmem:[#allocation5 + $0x250] sm:$0xff]
    %v253 = vld [vmem:[#allocation5 + $0x258] sm:$0xff]
    %v254 = vld [vmem:[#allocation5 + $0x260] sm:$0xff]
    %v255 = vld [vmem:[#allocation5 + $0x268] sm:$0xff]
    %v256 = vld [vmem:[#allocation5 + $0x270] sm:$0xff]
    %v257 = vld [vmem:[#allocation5 + $0x278] sm:$0xff]
    %v258 = vld [vmem:[#allocation5 + $0x280] sm:$0xff]
    %v259 = vld [vmem:[#allocation5 + $0x288] sm:$0xff]
    %v260 = vld [vmem:[#allocation5 + $0x290] sm:$0xff]
    %v261 = vld [vmem:[#allocation5 + $0x298] sm:$0xff]
    %v262 = vld [vmem:[#allocation5 + $0x2a0] sm:$0xff]
    %v263 = vld [vmem:[#allocation5 + $0x2a8] sm:$0xff]
    %v264 = vld [vmem:[#allocation5 + $0x2b0] sm:$0xff]
    %v265 = vld [vmem:[#allocation5 + $0x2b8] sm:$0xff]
    %v266 = vld [vmem:[#allocation5 + $0x2c0] sm:$0xff]
    %v267 = vld [vmem:[#allocation5 + $0x2c8] sm:$0xff]
    %v268 = vld [vmem:[#allocation5 + $0x2d0] sm:$0xff]
    %v269 = vld [vmem:[#allocation5 + $0x2d8] sm:$0xff]
    %v270 = vld [vmem:[#allocation5 + $0x2e0] sm:$0xff]
    %v271 = vld [vmem:[#allocation5 + $0x2e8] sm:$0xff]
    %v272 = vld [vmem:[#allocation5 + $0x2f0] sm:$0xff]
    %v273 = vld [vmem:[#allocation5 + $0x2f8] sm:$0xff]
    %v274 = vld [vmem:[#allocation5 + $0x300] sm:$0xff]
    %v275 = vld [vmem:[#allocation5 + $0x308] sm:$0xff]
    %v276 = vld [vmem:[#allocation5 + $0x310] sm:$0xff]
    %v277 = vld [vmem:[#allocation5 + $0x318] sm:$0xff]
    %v278 = vld [vmem:[#allocation5 + $0x320] sm:$0xff]
    %v279 = vld [vmem:[#allocation5 + $0x328] sm:$0xff]
    %v280 = vld [vmem:[#allocation5 + $0x330] sm:$0xff]
    %v281 = vld [vmem:[#allocation5 + $0x338] sm:$0xff]
    %v282 = vld [vmem:[#allocation5 + $0x340] sm:$0xff]
    %v283 = vld [vmem:[#allocation5 + $0x348] sm:$0xff]
    %v284 = vld [vmem:[#allocation5 + $0x350] sm:$0xff]
    %v285 = vld [vmem:[#allocation5 + $0x358] sm:$0xff]
    %v286 = vld [vmem:[#allocation5 + $0x360] sm:$0xff]
    %v287 = vld [vmem:[#allocation5 + $0x368] sm:$0xff]
    %v288 = vld [vmem:[#allocation5 + $0x370] sm:$0xff]
    %v289 = vld [vmem:[#allocation5 + $0x378] sm:$0xff]
    %v290 = vld [vmem:[#allocation5 + $0x380] sm:$0xff]
    %v291 = vld [vmem:[#allocation5 + $0x388] sm:$0xff]
    %v292 = vld [vmem:[#allocation5 + $0x390] sm:$0xff]
    %v293 = vld [vmem:[#allocation5 + $0x398] sm:$0xff]
    %v294 = vld [vmem:[#allocation5 + $0x3a0] sm:$0xff]
    %v295 = vld [vmem:[#allocation5 + $0x3a8] sm:$0xff]
    %v296 = vld [vmem:[#allocation5 + $0x3b0] sm:$0xff]
    %v297 = vld [vmem:[#allocation5 + $0x3b8] sm:$0xff]
    %v298 = vld [vmem:[#allocation5 + $0x3c0] sm:$0xff]
    %v299 = vld [vmem:[#allocation5 + $0x3c8] sm:$0xff]
    %v300 = vld [vmem:[#allocation5 + $0x3d0] sm:$0xff]
    %v301 = vld [vmem:[#allocation5 + $0x3d8] sm:$0xff]
    %v302 = vld [vmem:[#allocation5 + $0x3e0] sm:$0xff]
    %v303 = vld [vmem:[#allocation5 + $0x3e8] sm:$0xff]
    %v304 = vld [vmem:[#allocation5 + $0x3f0] sm:$0xff]
    %v305 = vld [vmem:[#allocation5 + $0x3f8] sm:$0xff]
    %v306 = vld [vmem:[#allocation5 + $0x400] sm:$0xff]
    %v307 = vld [vmem:[#allocation5 + $0x408] sm:$0xff]
    %v308 = vld [vmem:[#allocation5 + $0x410] sm:$0xff]
    %v309 = vld [vmem:[#allocation5 + $0x418] sm:$0xff]
    %v310 = vld [vmem:[#allocation5 + $0x420] sm:$0xff]
    %v311 = vld [vmem:[#allocation5 + $0x428] sm:$0xff]
    %v312 = vld [vmem:[#allocation5 + $0x430] sm:$0xff]
    %v313 = vld [vmem:[#allocation5 + $0x438] sm:$0xff]
    %v314 = vld [vmem:[#allocation5 + $0x440] sm:$0xff]
    %v315 = vld [vmem:[#allocation5 + $0x448] sm:$0xff]
    %v316 = vld [vmem:[#allocation5 + $0x450] sm:$0xff]
    %v317 = vld [vmem:[#allocation5 + $0x458] sm:$0xff]
    %v318 = vld [vmem:[#allocation5 + $0x460] sm:$0xff]
    %v319 = vld [vmem:[#allocation5 + $0x468] sm:$0xff]
    %v320 = vld [vmem:[#allocation5 + $0x470] sm:$0xff]
    %v321 = vld [vmem:[#allocation5 + $0x478] sm:$0xff]
    %v322 = vld [vmem:[#allocation5 + $0x480] sm:$0xff]
    %v323 = vld [vmem:[#allocation5 + $0x488] sm:$0xff]
    %v324 = vld [vmem:[#allocation5 + $0x490] sm:$0xff]
    %v325 = vld [vmem:[#allocation5 + $0x498] sm:$0xff]
    %v326 = vld [vmem:[#allocation5 + $0x4a0] sm:$0xff]
    %v327 = vld [vmem:[#allocation5 + $0x4a8] sm:$0xff]
    %v328 = vld [vmem:[#allocation5 + $0x4b0] sm:$0xff]
    %v329 = vld [vmem:[#allocation5 + $0x4b8] sm:$0xff]
    %v330 = vld [vmem:[#allocation5 + $0x4c0] sm:$0xff]
    %v331 = vld [vmem:[#allocation5 + $0x4c8] sm:$0xff]
    %v332 = vld [vmem:[#allocation5 + $0x4d0] sm:$0xff]
    %v333 = vld [vmem:[#allocation5 + $0x4d8] sm:$0xff]
    %v334 = vld [vmem:[#allocation5 + $0x4e0] sm:$0xff]
    %v335 = vld [vmem:[#allocation5 + $0x4e8] sm:$0xff]
    %v336 = vld [vmem:[#allocation5 + $0x4f0] sm:$0xff]
    %v337 = vld [vmem:[#allocation5 + $0x4f8] sm:$0xff]
    %v338 = vld [vmem:[#allocation5 + $0x500] sm:$0xff]
    %v339 = vld [vmem:[#allocation5 + $0x508] sm:$0xff]
    %v340 = vld [vmem:[#allocation5 + $0x510] sm:$0xff]
    %v341 = vld [vmem:[#allocation5 + $0x518] sm:$0xff]
    %v342 = vld [vmem:[#allocation5 + $0x520] sm:$0xff]
    %v343 = vld [vmem:[#allocation5 + $0x528] sm:$0xff]
    %v344 = vld [vmem:[#allocation5 + $0x530] sm:$0xff]
    %v345 = vld [vmem:[#allocation5 + $0x538] sm:$0xff]
    %v346 = vld [vmem:[#allocation5 + $0x540] sm:$0xff]
    %v347 = vld [vmem:[#allocation5 + $0x548] sm:$0xff]
    %v348 = vld [vmem:[#allocation5 + $0x550] sm:$0xff]
    %v349 = vld [vmem:[#allocation5 + $0x558] sm:$0xff]
    %v350 = vld [vmem:[#allocation5 + $0x560] sm:$0xff]
    %v351 = vld [vmem:[#allocation5 + $0x568] sm:$0xff]
    %v352 = vld [vmem:[#allocation5 + $0x570] sm:$0xff]
    %v353 = vld [vmem:[#allocation5 + $0x578] sm:$0xff]
    %v354 = vld [vmem:[#allocation5 + $0x580] sm:$0xff]
    %v355 = vld [vmem:[#allocation5 + $0x588] sm:$0xff]
    %v356 = vld [vmem:[#allocation5 + $0x590] sm:$0xff]
    %v357 = vld [vmem:[#allocation5 + $0x598] sm:$0xff]
    %v358 = vld [vmem:[#allocation5 + $0x5a0] sm:$0xff]
    %v359 = vld [vmem:[#allocation5 + $0x5a8] sm:$0xff]
    %v360 = vld [vmem:[#allocation5 + $0x5b0] sm:$0xff]
    %v361 = vld [vmem:[#allocation5 + $0x5b8] sm:$0xff]
    %v362 = vld [vmem:[#allocation5 + $0x5c0] sm:$0xff]
    %v363 = vld [vmem:[#allocation5 + $0x5c8] sm:$0xff]
    %v364 = vld [vmem:[#allocation5 + $0x5d0] sm:$0xff]
    %v365 = vld [vmem:[#allocation5 + $0x5d8] sm:$0xff]
    %v366 = vld [vmem:[#allocation5 + $0x5e0] sm:$0xff]
    %v367 = vld [vmem:[#allocation5 + $0x5e8] sm:$0xff]
    %v368 = vld [vmem:[#allocation5 + $0x5f0] sm:$0xff]
    %v369 = vld [vmem:[#allocation5 + $0x5f8] sm:$0xff]
    %v370 = vld [vmem:[#allocation5 + $0x600] sm:$0xff]
    %v371 = vld [vmem:[#allocation5 + $0x608] sm:$0xff]
    %v372 = vld [vmem:[#allocation5 + $0x610] sm:$0xff]
    %v373 = vld [vmem:[#allocation5 + $0x618] sm:$0xff]
    %v374 = vld [vmem:[#allocation5 + $0x620] sm:$0xff]
    %v375 = vld [vmem:[#allocation5 + $0x628] sm:$0xff]
    %v376 = vld [vmem:[#allocation5 + $0x630] sm:$0xff]
    %v377 = vld [vmem:[#allocation5 + $0x638] sm:$0xff]
    %v378 = vld [vmem:[#allocation5 + $0x640] sm:$0xff]
    %v379 = vld [vmem:[#allocation5 + $0x648] sm:$0xff]
    %v380 = vld [vmem:[#allocation5 + $0x650] sm:$0xff]
    %v381 = vld [vmem:[#allocation5 + $0x658] sm:$0xff]
    %v382 = vld [vmem:[#allocation5 + $0x660] sm:$0xff]
    %v383 = vld [vmem:[#allocation5 + $0x668] sm:$0xff]
    %v384 = vld [vmem:[#allocation5 + $0x670] sm:$0xff]
    %v385 = vld [vmem:[#allocation5 + $0x678] sm:$0xff]
    %v386 = vld [vmem:[#allocation5 + $0x680] sm:$0xff]
    %v387 = vld [vmem:[#allocation5 + $0x688] sm:$0xff]
    %v388 = vld [vmem:[#allocation5 + $0x690] sm:$0xff]
    %v389 = vld [vmem:[#allocation5 + $0x698] sm:$0xff]
    %v390 = vld [vmem:[#allocation5 + $0x6a0] sm:$0xff]
    %v391 = vld [vmem:[#allocation5 + $0x6a8] sm:$0xff]
    %v392 = vld [vmem:[#allocation5 + $0x6b0] sm:$0xff]
    %v393 = vld [vmem:[#allocation5 + $0x6b8] sm:$0xff]
    %v394 = vld [vmem:[#allocation5 + $0x6c0] sm:$0xff]
    %v395 = vld [vmem:[#allocation5 + $0x6c8] sm:$0xff]
    %v396 = vld [vmem:[#allocation5 + $0x6d0] sm:$0xff]
    %v397 = vld [vmem:[#allocation5 + $0x6d8] sm:$0xff]
    %v398 = vld [vmem:[#allocation5 + $0x6e0] sm:$0xff]
    %v399 = vld [vmem:[#allocation5 + $0x6e8] sm:$0xff]
    %v400 = vld [vmem:[#allocation5 + $0x6f0] sm:$0xff]
    %v401 = vld [vmem:[#allocation5 + $0x6f8] sm:$0xff]
    %v402 = vld [vmem:[#allocation5 + $0x700] sm:$0xff]
    %v403 = vld [vmem:[#allocation5 + $0x708] sm:$0xff]
    %v404 = vld [vmem:[#allocation5 + $0x710] sm:$0xff]
    %v405 = vld [vmem:[#allocation5 + $0x718] sm:$0xff]
    %v406 = vld [vmem:[#allocation5 + $0x720] sm:$0xff]
    %v407 = vld [vmem:[#allocation5 + $0x728] sm:$0xff]
    %v408 = vld [vmem:[#allocation5 + $0x730] sm:$0xff]
    %v409 = vld [vmem:[#allocation5 + $0x738] sm:$0xff]
    %v410 = vld [vmem:[#allocation5 + $0x740] sm:$0xff]
    %v411 = vld [vmem:[#allocation5 + $0x748] sm:$0xff]
    %v412 = vld [vmem:[#allocation5 + $0x750] sm:$0xff]
    %v413 = vld [vmem:[#allocation5 + $0x758] sm:$0xff]
    %v414 = vld [vmem:[#allocation5 + $0x760] sm:$0xff]
    %v415 = vld [vmem:[#allocation5 + $0x768] sm:$0xff]
    %v416 = vld [vmem:[#allocation5 + $0x770] sm:$0xff]
    %v417 = vld [vmem:[#allocation5 + $0x778] sm:$0xff]
    %v418 = vld [vmem:[#allocation5 + $0x780] sm:$0xff]
    %v419 = vld [vmem:[#allocation5 + $0x788] sm:$0xff]
    %v420 = vld [vmem:[#allocation5 + $0x790] sm:$0xff]
    %v421 = vld [vmem:[#allocation5 + $0x798] sm:$0xff]
    %v422 = vld [vmem:[#allocation5 + $0x7a0] sm:$0xff]
    %v423 = vld [vmem:[#allocation5 + $0x7a8] sm:$0xff]
    %v424 = vld [vmem:[#allocation5 + $0x7b0] sm:$0xff]
    %v425 = vld [vmem:[#allocation5 + $0x7b8] sm:$0xff]
    %v426 = vld [vmem:[#allocation5 + $0x7c0] sm:$0xff]
    %v427 = vld [vmem:[#allocation5 + $0x7c8] sm:$0xff]
    %v428 = vld [vmem:[#allocation5 + $0x7d0] sm:$0xff]
    %v429 = vld [vmem:[#allocation5 + $0x7d8] sm:$0xff]
    %v430 = vld [vmem:[#allocation5 + $0x7e0] sm:$0xff]
    %v431 = vld [vmem:[#allocation5 + $0x7e8] sm:$0xff]
    %v432 = vld [vmem:[#allocation5 + $0x7f0] sm:$0xff]
    %v433 = vld [vmem:[#allocation5 + $0x7f8] sm:$0xff]
    %v434 = vld [vmem:[#allocation5 + $0x800] sm:$0xff]
    %v435 = vld [vmem:[#allocation5 + $0x808] sm:$0xff]
    %v436 = vld [vmem:[#allocation5 + $0x810] sm:$0xff]
    %v437 = vld [vmem:[#allocation5 + $0x818] sm:$0xff]
    %v438 = vld [vmem:[#allocation5 + $0x820] sm:$0xff]
    %v439 = vld [vmem:[#allocation5 + $0x828] sm:$0xff]
    %v440 = vld [vmem:[#allocation5 + $0x830] sm:$0xff]
    %v441 = vld [vmem:[#allocation5 + $0x838] sm:$0xff]
    %v442 = vld [vmem:[#allocation5 + $0x840] sm:$0xff]
    %v443 = vld [vmem:[#allocation5 + $0x848] sm:$0xff]
    %v444 = vld [vmem:[#allocation5 + $0x850] sm:$0xff]
    %v445 = vld [vmem:[#allocation5 + $0x858] sm:$0xff]
    %v446 = vld [vmem:[#allocation5 + $0x860] sm:$0xff]
    %v447 = vld [vmem:[#allocation5 + $0x868] sm:$0xff]
    %v448 = vld [vmem:[#allocation5 + $0x870] sm:$0xff]
    %v449 = vld [vmem:[#allocation5 + $0x878] sm:$0xff]
    %v450 = vld [vmem:[#allocation5 + $0x880] sm:$0xff]
    %v451 = vld [vmem:[#allocation5 + $0x888] sm:$0xff]
    %v452 = vld [vmem:[#allocation5 + $0x890] sm:$0xff]
    %v453 = vld [vmem:[#allocation5 + $0x898] sm:$0xff]
    %v454 = vld [vmem:[#allocation5 + $0x8a0] sm:$0xff]
    %v455 = vld [vmem:[#allocation5 + $0x8a8] sm:$0xff]
    %v456 = vld [vmem:[#allocation5 + $0x8b0] sm:$0xff]
    %v457 = vld [vmem:[#allocation5 + $0x8b8] sm:$0xff]
    %v458 = vld [vmem:[#allocation5 + $0x8c0] sm:$0xff]
    %v459 = vld [vmem:[#allocation5 + $0x8c8] sm:$0xff]
    %v460 = vld [vmem:[#allocation5 + $0x8d0] sm:$0xff]
    %v461 = vld [vmem:[#allocation5 + $0x8d8] sm:$0xff]
    %v462 = vld [vmem:[#allocation5 + $0x8e0] sm:$0xff]
    %v463 = vld [vmem:[#allocation5 + $0x8e8] sm:$0xff]
    %v464 = vld [vmem:[#allocation5 + $0x8f0] sm:$0xff]
    %v465 = vld [vmem:[#allocation5 + $0x8f8] sm:$0xff]
    %v466 = vld [vmem:[#allocation5 + $0x900] sm:$0xff]
    %v467 = vld [vmem:[#allocation5 + $0x908] sm:$0xff]
    %v468 = vld [vmem:[#allocation5 + $0x910] sm:$0xff]
    %v469 = vld [vmem:[#allocation5 + $0x918] sm:$0xff]
    %v470 = vld [vmem:[#allocation5 + $0x920] sm:$0xff]
    %v471 = vld [vmem:[#allocation5 + $0x928] sm:$0xff]
    %v472 = vld [vmem:[#allocation5 + $0x930] sm:$0xff]
    %v473 = vld [vmem:[#allocation5 + $0x938] sm:$0xff]
    %v474 = vld [vmem:[#allocation5 + $0x940] sm:$0xff]
    %v475 = vld [vmem:[#allocation5 + $0x948] sm:$0xff]
    %v476 = vld [vmem:[#allocation5 + $0x950] sm:$0xff]
    %v477 = vld [vmem:[#allocation5 + $0x958] sm:$0xff]
    %v478 = vld [vmem:[#allocation5 + $0x960] sm:$0xff]
    %v479 = vld [vmem:[#allocation5 + $0x968] sm:$0xff]
    %v480 = vld [vmem:[#allocation5 + $0x970] sm:$0xff]
    %v481 = vld [vmem:[#allocation5 + $0x978] sm:$0xff]
    %v482 = vld [vmem:[#allocation5 + $0x980] sm:$0xff]
    %v483 = vld [vmem:[#allocation5 + $0x988] sm:$0xff]
    %v484 = vld [vmem:[#allocation5 + $0x990] sm:$0xff]
    %v485 = vld [vmem:[#allocation5 + $0x998] sm:$0xff]
    %v486 = vld [vmem:[#allocation5 + $0x9a0] sm:$0xff]
    %v487 = vld [vmem:[#allocation5 + $0x9a8] sm:$0xff]
    %v488 = vld [vmem:[#allocation5 + $0x9b0] sm:$0xff]
    %v489 = vld [vmem:[#allocation5 + $0x9b8] sm:$0xff]
    %v490 = vld [vmem:[#allocation5 + $0x9c0] sm:$0xff]
    %v491 = vld [vmem:[#allocation5 + $0x9c8] sm:$0xff]
    %v492 = vld [vmem:[#allocation5 + $0x9d0] sm:$0xff]
    %v493 = vld [vmem:[#allocation5 + $0x9d8] sm:$0xff]
    %v494 = vld [vmem:[#allocation5 + $0x9e0] sm:$0xff]
    %v495 = vld [vmem:[#allocation5 + $0x9e8] sm:$0xff]
    %v496 = vld [vmem:[#allocation5 + $0x9f0] sm:$0xff]
    %v497 = vld [vmem:[#allocation5 + $0x9f8] sm:$0xff]
    %v498 = vld [vmem:[#allocation5 + $0xa00] sm:$0xff]
    %v499 = vld [vmem:[#allocation5 + $0xa08] sm:$0xff]
    %v500 = vld [vmem:[#allocation5 + $0xa10] sm:$0xff]
    %v501 = vld [vmem:[#allocation5 + $0xa18] sm:$0xff]
    %v502 = vld [vmem:[#allocation5 + $0xa20] sm:$0xff]
    %v503 = vld [vmem:[#allocation5 + $0xa28] sm:$0xff]
    %v504 = vld [vmem:[#allocation5 + $0xa30] sm:$0xff]
    %v505 = vld [vmem:[#allocation5 + $0xa38] sm:$0xff]
    %v506 = vld [vmem:[#allocation5 + $0xa40] sm:$0xff]
    %v507 = vld [vmem:[#allocation5 + $0xa48] sm:$0xff]
    %v508 = vld [vmem:[#allocation5 + $0xa50] sm:$0xff]
    %v509 = vld [vmem:[#allocation5 + $0xa58] sm:$0xff]
    %v510 = vld [vmem:[#allocation5 + $0xa60] sm:$0xff]
    %v511 = vld [vmem:[#allocation5 + $0xa68] sm:$0xff]
    %v512 = vld [vmem:[#allocation5 + $0xa70] sm:$0xff]
    %v513 = vld [vmem:[#allocation5 + $0xa78] sm:$0xff]
    %v514 = vld [vmem:[#allocation5 + $0xa80] sm:$0xff]
    %v515 = vld [vmem:[#allocation5 + $0xa88] sm:$0xff]
    %v516 = vld [vmem:[#allocation5 + $0xa90] sm:$0xff]
    %v517 = vld [vmem:[#allocation5 + $0xa98] sm:$0xff]
    %v518 = vld [vmem:[#allocation5 + $0xaa0] sm:$0xff]
    %v519 = vld [vmem:[#allocation5 + $0xaa8] sm:$0xff]
    %v520 = vld [vmem:[#allocation5 + $0xab0] sm:$0xff]
    %v521 = vld [vmem:[#allocation5 + $0xab8] sm:$0xff]
    %v522 = vld [vmem:[#allocation5 + $0xac0] sm:$0xff]
    %v523 = vld [vmem:[#allocation5 + $0xac8] sm:$0xff]
    %v524 = vld [vmem:[#allocation5 + $0xad0] sm:$0xff]
    %v525 = vld [vmem:[#allocation5 + $0xad8] sm:$0xff]
    %v526 = vld [vmem:[#allocation5 + $0xae0] sm:$0xff]
    %v527 = vld [vmem:[#allocation5 + $0xae8] sm:$0xff]
    %v528 = vld [vmem:[#allocation5 + $0xaf0] sm:$0xff]
    %v529 = vld [vmem:[#allocation5 + $0xaf8] sm:$0xff]
    %v530 = vld [vmem:[#allocation5 + $0xb00] sm:$0xff]
    %v531 = vld [vmem:[#allocation5 + $0xb08] sm:$0xff]
    %v532 = vld [vmem:[#allocation5 + $0xb10] sm:$0xff]
    %v533 = vld [vmem:[#allocation5 + $0xb18] sm:$0xff]
    %v534 = vld [vmem:[#allocation5 + $0xb20] sm:$0xff]
    %v535 = vld [vmem:[#allocation5 + $0xb28] sm:$0xff]
    %v536 = vld [vmem:[#allocation5 + $0xb30] sm:$0xff]
    %v537 = vld [vmem:[#allocation5 + $0xb38] sm:$0xff]
    %v538 = vld [vmem:[#allocation5 + $0xb40] sm:$0xff]
    %v539 = vld [vmem:[#allocation5 + $0xb48] sm:$0xff]
    %v540 = vld [vmem:[#allocation5 + $0xb50] sm:$0xff]
    %v541 = vld [vmem:[#allocation5 + $0xb58] sm:$0xff]
    %v542 = vld [vmem:[#allocation5 + $0xb60] sm:$0xff]
    %v543 = vld [vmem:[#allocation5 + $0xb68] sm:$0xff]
    %v544 = vld [vmem:[#allocation5 + $0xb70] sm:$0xff]
    %v545 = vld [vmem:[#allocation5 + $0xb78] sm:$0xff]
    %v546 = vld [vmem:[#allocation5 + $0xb80] sm:$0xff]
    %v547 = vld [vmem:[#allocation5 + $0xb88] sm:$0xff]
    %v548 = vld [vmem:[#allocation5 + $0xb90] sm:$0xff]
    %v549 = vld [vmem:[#allocation5 + $0xb98] sm:$0xff]
    %v550 = vld [vmem:[#allocation5 + $0xba0] sm:$0xff]
    %v551 = vld [vmem:[#allocation5 + $0xba8] sm:$0xff]
    %v552 = vld [vmem:[#allocation5 + $0xbb0] sm:$0xff]
    %v553 = vld [vmem:[#allocation5 + $0xbb8] sm:$0xff]
    %v554 = vld [vmem:[#allocation5 + $0xbc0] sm:$0xff]
    %v555 = vld [vmem:[#allocation5 + $0xbc8] sm:$0xff]
    %v556 = vld [vmem:[#allocation5 + $0xbd0] sm:$0xff]
    %v557 = vld [vmem:[#allocation5 + $0xbd8] sm:$0xff]
    %v558 = vld [vmem:[#allocation5 + $0xbe0] sm:$0xff]
    %v559 = vld [vmem:[#allocation5 + $0xbe8] sm:$0xff]
    %v560 = vld [vmem:[#allocation5 + $0xbf0] sm:$0xff]
    %v561 = vld [vmem:[#allocation5 + $0xbf8] sm:$0xff]
    %v562 = vld [vmem:[#allocation5 + $0xc00] sm:$0xff]
    %v563 = vld [vmem:[#allocation5 + $0xc08] sm:$0xff]
    %v564 = vld [vmem:[#allocation5 + $0xc10] sm:$0xff]
    %v565 = vld [vmem:[#allocation5 + $0xc18] sm:$0xff]
    %v566 = vld [vmem:[#allocation5 + $0xc20] sm:$0xff]
    %v567 = vld [vmem:[#allocation5 + $0xc28] sm:$0xff]
    %v568 = vld [vmem:[#allocation5 + $0xc30] sm:$0xff]
    %v569 = vld [vmem:[#allocation5 + $0xc38] sm:$0xff]
    %v570 = vld [vmem:[#allocation5 + $0xc40] sm:$0xff]
    %v571 = vld [vmem:[#allocation5 + $0xc48] sm:$0xff]
    %v572 = vld [vmem:[#allocation5 + $0xc50] sm:$0xff]
    %v573 = vld [vmem:[#allocation5 + $0xc58] sm:$0xff]
    %v574 = vld [vmem:[#allocation5 + $0xc60] sm:$0xff]
    %v575 = vld [vmem:[#allocation5 + $0xc68] sm:$0xff]
    %v576 = vld [vmem:[#allocation5 + $0xc70] sm:$0xff]
    %v577 = vld [vmem:[#allocation5 + $0xc78] sm:$0xff]
    %v578 = vld [vmem:[#allocation5 + $0xc80] sm:$0xff]
    %v579 = vld [vmem:[#allocation5 + $0xc88] sm:$0xff]
    %v580 = vld [vmem:[#allocation5 + $0xc90] sm:$0xff]
    %v581 = vld [vmem:[#allocation5 + $0xc98] sm:$0xff]
    %v582 = vld [vmem:[#allocation5 + $0xca0] sm:$0xff]
    %v583 = vld [vmem:[#allocation5 + $0xca8] sm:$0xff]
    %v584 = vld [vmem:[#allocation5 + $0xcb0] sm:$0xff]
    %v585 = vld [vmem:[#allocation5 + $0xcb8] sm:$0xff]
    %v586 = vld [vmem:[#allocation5 + $0xcc0] sm:$0xff]
    %v587 = vld [vmem:[#allocation5 + $0xcc8] sm:$0xff]
    %v588 = vld [vmem:[#allocation5 + $0xcd0] sm:$0xff]
    %v589 = vld [vmem:[#allocation5 + $0xcd8] sm:$0xff]
    %v590 = vld [vmem:[#allocation5 + $0xce0] sm:$0xff]
    %v591 = vld [vmem:[#allocation5 + $0xce8] sm:$0xff]
    %v592 = vld [vmem:[#allocation5 + $0xcf0] sm:$0xff]
    %v593 = vld [vmem:[#allocation5 + $0xcf8] sm:$0xff]
    %v594 = vld [vmem:[#allocation5 + $0xd00] sm:$0xff]
    %v595 = vld [vmem:[#allocation5 + $0xd08] sm:$0xff]
    %v596 = vld [vmem:[#allocation5 + $0xd10] sm:$0xff]
    %v597 = vld [vmem:[#allocation5 + $0xd18] sm:$0xff]
    %v598 = vld [vmem:[#allocation5 + $0xd20] sm:$0xff]
    %v599 = vld [vmem:[#allocation5 + $0xd28] sm:$0xff]
    %v600 = vld [vmem:[#allocation5 + $0xd30] sm:$0xff]
    %v601 = vld [vmem:[#allocation5 + $0xd38] sm:$0xff]
    %v602 = vld [vmem:[#allocation5 + $0xd40] sm:$0xff]
    %v603 = vld [vmem:[#allocation5 + $0xd48] sm:$0xff]
    %v604 = vld [vmem:[#allocation5 + $0xd50] sm:$0xff]
    %v605 = vld [vmem:[#allocation5 + $0xd58] sm:$0xff]
    %v606 = vld [vmem:[#allocation5 + $0xd60] sm:$0xff]
    %v607 = vld [vmem:[#allocation5 + $0xd68] sm:$0xff]
    %v608 = vld [vmem:[#allocation5 + $0xd70] sm:$0xff]
    %v609 = vld [vmem:[#allocation5 + $0xd78] sm:$0xff]
    %v610 = vld [vmem:[#allocation5 + $0xd80] sm:$0xff]
    %v611 = vld [vmem:[#allocation5 + $0xd88] sm:$0xff]
    %v612 = vld [vmem:[#allocation5 + $0xd90] sm:$0xff]
    %v613 = vld [vmem:[#allocation5 + $0xd98] sm:$0xff]
    %v614 = vld [vmem:[#allocation5 + $0xda0] sm:$0xff]
    %v615 = vld [vmem:[#allocation5 + $0xda8] sm:$0xff]
    %v616 = vld [vmem:[#allocation5 + $0xdb0] sm:$0xff]
    %v617 = vld [vmem:[#allocation5 + $0xdb8] sm:$0xff]
    %v618 = vld [vmem:[#allocation5 + $0xdc0] sm:$0xff]
    %v619 = vld [vmem:[#allocation5 + $0xdc8] sm:$0xff]
    %v620 = vld [vmem:[#allocation5 + $0xdd0] sm:$0xff]
    %v621 = vld [vmem:[#allocation5 + $0xdd8] sm:$0xff]
    %v622 = vld [vmem:[#allocation5 + $0xde0] sm:$0xff]
    %v623 = vld [vmem:[#allocation5 + $0xde8] sm:$0xff]
    %v624 = vld [vmem:[#allocation5 + $0xdf0] sm:$0xff]
    %v625 = vld [vmem:[#allocation5 + $0xdf8] sm:$0xff]
    %v626 = vld [vmem:[#allocation5 + $0xe00] sm:$0xff]
    %v627 = vld [vmem:[#allocation5 + $0xe08] sm:$0xff]
    %v628 = vld [vmem:[#allocation5 + $0xe10] sm:$0xff]
    %v629 = vld [vmem:[#allocation5 + $0xe18] sm:$0xff]
    %v630 = vld [vmem:[#allocation5 + $0xe20] sm:$0xff]
    %v631 = vld [vmem:[#allocation5 + $0xe28] sm:$0xff]
    %v632 = vld [vmem:[#allocation5 + $0xe30] sm:$0xff]
    %v633 = vld [vmem:[#allocation5 + $0xe38] sm:$0xff]
    %v634 = vld [vmem:[#allocation5 + $0xe40] sm:$0xff]
    %v635 = vld [vmem:[#allocation5 + $0xe48] sm:$0xff]
    %v636 = vld [vmem:[#allocation5 + $0xe50] sm:$0xff]
    %v637 = vld [vmem:[#allocation5 + $0xe58] sm:$0xff]
    %v638 = vld [vmem:[#allocation5 + $0xe60] sm:$0xff]
    %v639 = vld [vmem:[#allocation5 + $0xe68] sm:$0xff]
    %v640 = vld [vmem:[#allocation5 + $0xe70] sm:$0xff]
    %v641 = vld [vmem:[#allocation5 + $0xe78] sm:$0xff]
    %v642 = vld [vmem:[#allocation5 + $0xe80] sm:$0xff]
    %v643 = vld [vmem:[#allocation5 + $0xe88] sm:$0xff]
    %v644 = vld [vmem:[#allocation5 + $0xe90] sm:$0xff]
    %v645 = vld [vmem:[#allocation5 + $0xe98] sm:$0xff]
    %v646 = vld [vmem:[#allocation5 + $0xea0] sm:$0xff]
    %v647 = vld [vmem:[#allocation5 + $0xea8] sm:$0xff]
    %v648 = vld [vmem:[#allocation5 + $0xeb0] sm:$0xff]
    %v649 = vld [vmem:[#allocation5 + $0xeb8] sm:$0xff]
    %v650 = vld [vmem:[#allocation5 + $0xec0] sm:$0xff]
    %v651 = vld [vmem:[#allocation5 + $0xec8] sm:$0xff]
    %v652 = vld [vmem:[#allocation5 + $0xed0] sm:$0xff]
    %v653 = vld [vmem:[#allocation5 + $0xed8] sm:$0xff]
    %v654 = vld [vmem:[#allocation5 + $0xee0] sm:$0xff]
    %v655 = vld [vmem:[#allocation5 + $0xee8] sm:$0xff]
    %v656 = vld [vmem:[#allocation5 + $0xef0] sm:$0xff]
    %v657 = vld [vmem:[#allocation5 + $0xef8] sm:$0xff]
    %v658 = vld [vmem:[#allocation5 + $0xf00] sm:$0xff]
    %v659 = vld [vmem:[#allocation5 + $0xf08] sm:$0xff]
    %v660 = vld [vmem:[#allocation5 + $0xf10] sm:$0xff]
    %v661 = vld [vmem:[#allocation5 + $0xf18] sm:$0xff]
    %v662 = vld [vmem:[#allocation5 + $0xf20] sm:$0xff]
    %v663 = vld [vmem:[#allocation5 + $0xf28] sm:$0xff]
    %v664 = vld [vmem:[#allocation5 + $0xf30] sm:$0xff]
    %v665 = vld [vmem:[#allocation5 + $0xf38] sm:$0xff]
    %v666 = vld [vmem:[#allocation5 + $0xf40] sm:$0xff]
    %v667 = vld [vmem:[#allocation5 + $0xf48] sm:$0xff]
    %v668 = vld [vmem:[#allocation5 + $0xf50] sm:$0xff]
    %v669 = vld [vmem:[#allocation5 + $0xf58] sm:$0xff]
    %v670 = vld [vmem:[#allocation5 + $0xf60] sm:$0xff]
    %v671 = vld [vmem:[#allocation5 + $0xf68] sm:$0xff]
    %v672 = vld [vmem:[#allocation5 + $0xf70] sm:$0xff]
    %v673 = vld [vmem:[#allocation5 + $0xf78] sm:$0xff]
    %v674 = vld [vmem:[#allocation5 + $0xf80] sm:$0xff]
    %v675 = vld [vmem:[#allocation5 + $0xf88] sm:$0xff]
    %v676 = vld [vmem:[#allocation5 + $0xf90] sm:$0xff]
    %v677 = vld [vmem:[#allocation5 + $0xf98] sm:$0xff]
    %v678 = vld [vmem:[#allocation5 + $0xfa0] sm:$0xff]
    %v679 = vld [vmem:[#allocation5 + $0xfa8] sm:$0xff]
    %v680 = vld [vmem:[#allocation5 + $0xfb0] sm:$0xff]
    %v681 = vld [vmem:[#allocation5 + $0xfb8] sm:$0xff]
    %v682 = vld [vmem:[#allocation5 + $0xfc0] sm:$0xff]
    %v683 = vld [vmem:[#allocation5 + $0xfc8] sm:$0xff]
    %v684 = vld [vmem:[#allocation5 + $0xfd0] sm:$0xff]
    %v685 = vld [vmem:[#allocation5 + $0xfd8] sm:$0xff]
    %v686 = vld [vmem:[#allocation5 + $0xfe0] sm:$0xff]
    %v687 = vld [vmem:[#allocation5 + $0xfe8] sm:$0xff]
    %v688 = vld [vmem:[#allocation5 + $0xff0] sm:$0xff]
    %v689 = vld [vmem:[#allocation5 + $0xff8] sm:$0xff]
    %v690 = vld [vmem:[#allocation5 + $0x1000] sm:$0xff]
    %v691 = vld [vmem:[#allocation5 + $0x1008] sm:$0xff]
    %v692 = vld [vmem:[#allocation5 + $0x1010] sm:$0xff]
    %v693 = vld [vmem:[#allocation5 + $0x1018] sm:$0xff]
    %v694 = vld [vmem:[#allocation5 + $0x1020] sm:$0xff]
    %v695 = vld [vmem:[#allocation5 + $0x1028] sm:$0xff]
    %v696 = vld [vmem:[#allocation5 + $0x1030] sm:$0xff]
    %v697 = vld [vmem:[#allocation5 + $0x1038] sm:$0xff]
    %v698 = vld [vmem:[#allocation5 + $0x1040] sm:$0xff]
    %v699 = vld [vmem:[#allocation5 + $0x1048] sm:$0xff]
    %v700 = vld [vmem:[#allocation5 + $0x1050] sm:$0xff]
    %v701 = vld [vmem:[#allocation5 + $0x1058] sm:$0xff]
    %v702 = vld [vmem:[#allocation5 + $0x1060] sm:$0xff]
    %v703 = vld [vmem:[#allocation5 + $0x1068] sm:$0xff]
    %v704 = vld [vmem:[#allocation5 + $0x1070] sm:$0xff]
    %v705 = vld [vmem:[#allocation5 + $0x1078] sm:$0xff]
    %v706 = vld [vmem:[#allocation5 + $0x1080] sm:$0xff]
    %v707 = vld [vmem:[#allocation5 + $0x1088] sm:$0xff]
    %v708 = vld [vmem:[#allocation5 + $0x1090] sm:$0xff]
    %v709 = vld [vmem:[#allocation5 + $0x1098] sm:$0xff]
    %v710 = vld [vmem:[#allocation5 + $0x10a0] sm:$0xff]
    %v711 = vld [vmem:[#allocation5 + $0x10a8] sm:$0xff]
    %v712 = vld [vmem:[#allocation5 + $0x10b0] sm:$0xff]
    %v713 = vld [vmem:[#allocation5 + $0x10b8] sm:$0xff]
    %v714 = vld [vmem:[#allocation5 + $0x10c0] sm:$0xff]
    %v715 = vld [vmem:[#allocation5 + $0x10c8] sm:$0xff]
    %v716 = vld [vmem:[#allocation5 + $0x10d0] sm:$0xff]
    %v717 = vld [vmem:[#allocation5 + $0x10d8] sm:$0xff]
    %v718 = vld [vmem:[#allocation5 + $0x10e0] sm:$0xff]
    %v719 = vld [vmem:[#allocation5 + $0x10e8] sm:$0xff]
    %v720 = vld [vmem:[#allocation5 + $0x10f0] sm:$0xff]
    %v721 = vld [vmem:[#allocation5 + $0x10f8] sm:$0xff]
    %v722 = vld [vmem:[#allocation5 + $0x1100] sm:$0xff]
    %v723 = vld [vmem:[#allocation5 + $0x1108] sm:$0xff]
    %v724 = vld [vmem:[#allocation5 + $0x1110] sm:$0xff]
    %v725 = vld [vmem:[#allocation5 + $0x1118] sm:$0xff]
    %v726 = vld [vmem:[#allocation5 + $0x1120] sm:$0xff]
    %v727 = vld [vmem:[#allocation5 + $0x1128] sm:$0xff]
    %v728 = vld [vmem:[#allocation5 + $0x1130] sm:$0xff]
    %v729 = vld [vmem:[#allocation5 + $0x1138] sm:$0xff]
    %v730 = vld [vmem:[#allocation5 + $0x1140] sm:$0xff]
    %v731 = vld [vmem:[#allocation5 + $0x1148] sm:$0xff]
    %v732 = vld [vmem:[#allocation5 + $0x1150] sm:$0xff]
    %v733 = vld [vmem:[#allocation5 + $0x1158] sm:$0xff]
    %v734 = vld [vmem:[#allocation5 + $0x1160] sm:$0xff]
    %v735 = vld [vmem:[#allocation5 + $0x1168] sm:$0xff]
    %v736 = vld [vmem:[#allocation5 + $0x1170] sm:$0xff]
    %v737 = vld [vmem:[#allocation5 + $0x1178] sm:$0xff]
    %v738 = vld [vmem:[#allocation5 + $0x1180] sm:$0xff]
    %v739 = vld [vmem:[#allocation5 + $0x1188] sm:$0xff]
    %v740 = vld [vmem:[#allocation5 + $0x1190] sm:$0xff]
    %v741 = vld [vmem:[#allocation5 + $0x1198] sm:$0xff]
    %v742 = vld [vmem:[#allocation5 + $0x11a0] sm:$0xff]
    %v743 = vld [vmem:[#allocation5 + $0x11a8] sm:$0xff]
    %v744 = vld [vmem:[#allocation5 + $0x11b0] sm:$0xff]
    %v745 = vld [vmem:[#allocation5 + $0x11b8] sm:$0xff]
    %v746 = vld [vmem:[#allocation5 + $0x11c0] sm:$0xff]
    %v747 = vld [vmem:[#allocation5 + $0x11c8] sm:$0xff]
    %v748 = vld [vmem:[#allocation5 + $0x11d0] sm:$0xff]
    %v749 = vld [vmem:[#allocation5 + $0x11d8] sm:$0xff]
    %v750 = vld [vmem:[#allocation5 + $0x11e0] sm:$0xff]
    %v751 = vld [vmem:[#allocation5 + $0x11e8] sm:$0xff]
    %v752 = vld [vmem:[#allocation5 + $0x11f0] sm:$0xff]
    %v753 = vld [vmem:[#allocation5 + $0x11f8] sm:$0xff]
    %v754 = vld [vmem:[#allocation5 + $0x1200] sm:$0xff]
    %v755 = vld [vmem:[#allocation5 + $0x1208] sm:$0xff]
    %v756 = vld [vmem:[#allocation5 + $0x1210] sm:$0xff]
    %v757 = vld [vmem:[#allocation5 + $0x1218] sm:$0xff]
    %v758 = vld [vmem:[#allocation5 + $0x1220] sm:$0xff]
    %v759 = vld [vmem:[#allocation5 + $0x1228] sm:$0xff]
    %v760 = vld [vmem:[#allocation5 + $0x1230] sm:$0xff]
    %v761 = vld [vmem:[#allocation5 + $0x1238] sm:$0xff]
    %v762 = vld [vmem:[#allocation5 + $0x1240] sm:$0xff]
    %v763 = vld [vmem:[#allocation5 + $0x1248] sm:$0xff]
    %v764 = vld [vmem:[#allocation5 + $0x1250] sm:$0xff]
    %v765 = vld [vmem:[#allocation5 + $0x1258] sm:$0xff]
    %v766 = vld [vmem:[#allocation5 + $0x1260] sm:$0xff]
    %v767 = vld [vmem:[#allocation5 + $0x1268] sm:$0xff]
    %v768 = vld [vmem:[#allocation5 + $0x1270] sm:$0xff]
    %v769 = vld [vmem:[#allocation5 + $0x1278] sm:$0xff]
    %v770 = vld [vmem:[#allocation5 + $0x1280] sm:$0xff]
    %v771 = vld [vmem:[#allocation5 + $0x1288] sm:$0xff]
    %v772 = vld [vmem:[#allocation5 + $0x1290] sm:$0xff]
    %v773 = vld [vmem:[#allocation5 + $0x1298] sm:$0xff]
    %v774 = vld [vmem:[#allocation5 + $0x12a0] sm:$0xff]
    %v775 = vld [vmem:[#allocation5 + $0x12a8] sm:$0xff]
    %v776 = vld [vmem:[#allocation5 + $0x12b0] sm:$0xff]
    %v777 = vld [vmem:[#allocation5 + $0x12b8] sm:$0xff]
    %v778 = vld [vmem:[#allocation5 + $0x12c0] sm:$0xff]
    %v779 = vld [vmem:[#allocation5 + $0x12c8] sm:$0xff]
    %v780 = vld [vmem:[#allocation5 + $0x12d0] sm:$0xff]
    %v781 = vld [vmem:[#allocation5 + $0x12d8] sm:$0xff]
    %v782 = vld [vmem:[#allocation5 + $0x12e0] sm:$0xff]
    %v783 = vld [vmem:[#allocation5 + $0x12e8] sm:$0xff]
    %v784 = vld [vmem:[#allocation5 + $0x12f0] sm:$0xff]
    %v785 = vld [vmem:[#allocation5 + $0x12f8] sm:$0xff]
    %v786 = vld [vmem:[#allocation5 + $0x1300] sm:$0xff]
    %v787 = vld [vmem:[#allocation5 + $0x1308] sm:$0xff]
    %v788 = vld [vmem:[#allocation5 + $0x1310] sm:$0xff]
    %v789 = vld [vmem:[#allocation5 + $0x1318] sm:$0xff]
    %v790 = vld [vmem:[#allocation5 + $0x1320] sm:$0xff]
    %v791 = vld [vmem:[#allocation5 + $0x1328] sm:$0xff]
    %v792 = vld [vmem:[#allocation5 + $0x1330] sm:$0xff]
    %v793 = vld [vmem:[#allocation5 + $0x1338] sm:$0xff]
    %v794 = vld [vmem:[#allocation5 + $0x1340] sm:$0xff]
    %v795 = vld [vmem:[#allocation5 + $0x1348] sm:$0xff]
    %v796 = vld [vmem:[#allocation5 + $0x1350] sm:$0xff]
    %v797 = vld [vmem:[#allocation5 + $0x1358] sm:$0xff]
    %v798 = vld [vmem:[#allocation5 + $0x1360] sm:$0xff]
    %v799 = vld [vmem:[#allocation5 + $0x1368] sm:$0xff]
    %v800 = vld [vmem:[#allocation5 + $0x1370] sm:$0xff]
    %v801 = vld [vmem:[#allocation5 + $0x1378] sm:$0xff]
    %v802 = vld [vmem:[#allocation5 + $0x1380] sm:$0xff]
    %v803 = vld [vmem:[#allocation5 + $0x1388] sm:$0xff]
    %v804 = vld [vmem:[#allocation5 + $0x1390] sm:$0xff]
    %v805 = vld [vmem:[#allocation5 + $0x1398] sm:$0xff]
    %v806 = vld [vmem:[#allocation5 + $0x13a0] sm:$0xff]
    %v807 = vld [vmem:[#allocation5 + $0x13a8] sm:$0xff]
    %v808 = vld [vmem:[#allocation5 + $0x13b0] sm:$0xff]
    %v809 = vld [vmem:[#allocation5 + $0x13b8] sm:$0xff]
    %v810 = vld [vmem:[#allocation5 + $0x13c0] sm:$0xff]
    %v811 = vld [vmem:[#allocation5 + $0x13c8] sm:$0xff]
    %v812 = vld [vmem:[#allocation5 + $0x13d0] sm:$0xff]
    %v813 = vld [vmem:[#allocation5 + $0x13d8] sm:$0xff]
    %v814 = vld [vmem:[#allocation5 + $0x13e0] sm:$0xff]
    %v815 = vld [vmem:[#allocation5 + $0x13e8] sm:$0xff]
    %v816 = vld [vmem:[#allocation5 + $0x13f0] sm:$0xff]
    %v817 = vld [vmem:[#allocation5 + $0x13f8] sm:$0xff]
    %v818 = vld [vmem:[#allocation5 + $0x1400] sm:$0xff]
    %v819 = vld [vmem:[#allocation5 + $0x1408] sm:$0xff]
    %v820 = vld [vmem:[#allocation5 + $0x1410] sm:$0xff]
    %v821 = vld [vmem:[#allocation5 + $0x1418] sm:$0xff]
    %v822 = vld [vmem:[#allocation5 + $0x1420] sm:$0xff]
    %v823 = vld [vmem:[#allocation5 + $0x1428] sm:$0xff]
    %v824 = vld [vmem:[#allocation5 + $0x1430] sm:$0xff]
    %v825 = vld [vmem:[#allocation5 + $0x1438] sm:$0xff]
    %v826 = vld [vmem:[#allocation5 + $0x1440] sm:$0xff]
    %v827 = vld [vmem:[#allocation5 + $0x1448] sm:$0xff]
    %v828 = vld [vmem:[#allocation5 + $0x1450] sm:$0xff]
    %v829 = vld [vmem:[#allocation5 + $0x1458] sm:$0xff]
    %v830 = vld [vmem:[#allocation5 + $0x1460] sm:$0xff]
    %v831 = vld [vmem:[#allocation5 + $0x1468] sm:$0xff]
    %v832 = vld [vmem:[#allocation5 + $0x1470] sm:$0xff]
    %v833 = vld [vmem:[#allocation5 + $0x1478] sm:$0xff]
    %v834 = vld [vmem:[#allocation5 + $0x1480] sm:$0xff]
    %v835 = vld [vmem:[#allocation5 + $0x1488] sm:$0xff]
    %v836 = vld [vmem:[#allocation5 + $0x1490] sm:$0xff]
    %v837 = vld [vmem:[#allocation5 + $0x1498] sm:$0xff]
    %v838 = vld [vmem:[#allocation5 + $0x14a0] sm:$0xff]
    %v839 = vld [vmem:[#allocation5 + $0x14a8] sm:$0xff]
    %v840 = vld [vmem:[#allocation5 + $0x14b0] sm:$0xff]
    %v841 = vld [vmem:[#allocation5 + $0x14b8] sm:$0xff]
    %v842 = vld [vmem:[#allocation5 + $0x14c0] sm:$0xff]
    %v843 = vld [vmem:[#allocation5 + $0x14c8] sm:$0xff]
    %v844 = vld [vmem:[#allocation5 + $0x14d0] sm:$0xff]
    %v845 = vld [vmem:[#allocation5 + $0x14d8] sm:$0xff]
    %v846 = vld [vmem:[#allocation5 + $0x14e0] sm:$0xff]
    %v847 = vld [vmem:[#allocation5 + $0x14e8] sm:$0xff]
    %v848 = vld [vmem:[#allocation5 + $0x14f0] sm:$0xff]
    %v849 = vld [vmem:[#allocation5 + $0x14f8] sm:$0xff]
    %v850 = vld [vmem:[#allocation5 + $0x1500] sm:$0xff]
    %v851 = vld [vmem:[#allocation5 + $0x1508] sm:$0xff]
    %v852 = vld [vmem:[#allocation5 + $0x1510] sm:$0xff]
    %v853 = vld [vmem:[#allocation5 + $0x1518] sm:$0xff]
    %v854 = vld [vmem:[#allocation5 + $0x1520] sm:$0xff]
    %v855 = vld [vmem:[#allocation5 + $0x1528] sm:$0xff]
    %v856 = vld [vmem:[#allocation5 + $0x1530] sm:$0xff]
    %v857 = vld [vmem:[#allocation5 + $0x1538] sm:$0xff]
    %v858 = vld [vmem:[#allocation5 + $0x1540] sm:$0xff]
    %v859 = vld [vmem:[#allocation5 + $0x1548] sm:$0xff]
    %v860 = vld [vmem:[#allocation5 + $0x1550] sm:$0xff]
    %v861 = vld [vmem:[#allocation5 + $0x1558] sm:$0xff]
    %v862 = vld [vmem:[#allocation5 + $0x1560] sm:$0xff]
    %v863 = vld [vmem:[#allocation5 + $0x1568] sm:$0xff]
    %v864 = vld [vmem:[#allocation5 + $0x1570] sm:$0xff]
    %v865 = vld [vmem:[#allocation5 + $0x1578] sm:$0xff]
    %v866 = vld [vmem:[#allocation5 + $0x1580] sm:$0xff]
    %v867 = vld [vmem:[#allocation5 + $0x1588] sm:$0xff]
    %v868 = vld [vmem:[#allocation5 + $0x1590] sm:$0xff]
    %v869 = vld [vmem:[#allocation5 + $0x1598] sm:$0xff]
    %v870 = vld [vmem:[#allocation5 + $0x15a0] sm:$0xff]
    %v871 = vld [vmem:[#allocation5 + $0x15a8] sm:$0xff]
    %v872 = vld [vmem:[#allocation5 + $0x15b0] sm:$0xff]
    %v873 = vld [vmem:[#allocation5 + $0x15b8] sm:$0xff]
    %v874 = vld [vmem:[#allocation5 + $0x15c0] sm:$0xff]
    %v875 = vld [vmem:[#allocation5 + $0x15c8] sm:$0xff]
    %v876 = vld [vmem:[#allocation5 + $0x15d0] sm:$0xff]
    %v877 = vld [vmem:[#allocation5 + $0x15d8] sm:$0xff]
    %v878 = vld [vmem:[#allocation5 + $0x15e0] sm:$0xff]
    %v879 = vld [vmem:[#allocation5 + $0x15e8] sm:$0xff]
    %v880 = vld [vmem:[#allocation5 + $0x15f0] sm:$0xff]
    %v881 = vld [vmem:[#allocation5 + $0x15f8] sm:$0xff]
    %v882 = vld [vmem:[#allocation5 + $0x1600] sm:$0xff]
    %v883 = vld [vmem:[#allocation5 + $0x1608] sm:$0xff]
    %v884 = vld [vmem:[#allocation5 + $0x1610] sm:$0xff]
    %v885 = vld [vmem:[#allocation5 + $0x1618] sm:$0xff]
    %v886 = vld [vmem:[#allocation5 + $0x1620] sm:$0xff]
    %v887 = vld [vmem:[#allocation5 + $0x1628] sm:$0xff]
    %v888 = vld [vmem:[#allocation5 + $0x1630] sm:$0xff]
    %v889 = vld [vmem:[#allocation5 + $0x1638] sm:$0xff]
    %v890 = vld [vmem:[#allocation5 + $0x1640] sm:$0xff]
    %v891 = vld [vmem:[#allocation5 + $0x1648] sm:$0xff]
    %v892 = vld [vmem:[#allocation5 + $0x1650] sm:$0xff]
    %v893 = vld [vmem:[#allocation5 + $0x1658] sm:$0xff]
    %v894 = vld [vmem:[#allocation5 + $0x1660] sm:$0xff]
    %v895 = vld [vmem:[#allocation5 + $0x1668] sm:$0xff]
    %v896 = vld [vmem:[#allocation5 + $0x1670] sm:$0xff]
    %v897 = vld [vmem:[#allocation5 + $0x1678] sm:$0xff]
    %v898 = vld [vmem:[#allocation5 + $0x1680] sm:$0xff]
    %v899 = vld [vmem:[#allocation5 + $0x1688] sm:$0xff]
    %v900 = vld [vmem:[#allocation5 + $0x1690] sm:$0xff]
    %v901 = vld [vmem:[#allocation5 + $0x1698] sm:$0xff]
    %v902 = vld [vmem:[#allocation5 + $0x16a0] sm:$0xff]
    %v903 = vld [vmem:[#allocation5 + $0x16a8] sm:$0xff]
    %v904 = vld [vmem:[#allocation5 + $0x16b0] sm:$0xff]
    %v905 = vld [vmem:[#allocation5 + $0x16b8] sm:$0xff]
    %v906 = vld [vmem:[#allocation5 + $0x16c0] sm:$0xff]
    %v907 = vld [vmem:[#allocation5 + $0x16c8] sm:$0xff]
    %v908 = vld [vmem:[#allocation5 + $0x16d0] sm:$0xff]
    %v909 = vld [vmem:[#allocation5 + $0x16d8] sm:$0xff]
    %v910 = vld [vmem:[#allocation5 + $0x16e0] sm:$0xff]
    %v911 = vld [vmem:[#allocation5 + $0x16e8] sm:$0xff]
    %v912 = vld [vmem:[#allocation5 + $0x16f0] sm:$0xff]
    %v913 = vld [vmem:[#allocation5 + $0x16f8] sm:$0xff]
    %v914 = vld [vmem:[#allocation5 + $0x1700] sm:$0xff]
    %v915 = vld [vmem:[#allocation5 + $0x1708] sm:$0xff]
    %v916 = vld [vmem:[#allocation5 + $0x1710] sm:$0xff]
    %v917 = vld [vmem:[#allocation5 + $0x1718] sm:$0xff]
    %v918 = vld [vmem:[#allocation5 + $0x1720] sm:$0xff]
    %v919 = vld [vmem:[#allocation5 + $0x1728] sm:$0xff]
    %v920 = vld [vmem:[#allocation5 + $0x1730] sm:$0xff]
    %v921 = vld [vmem:[#allocation5 + $0x1738] sm:$0xff]
    %v922 = vld [vmem:[#allocation5 + $0x1740] sm:$0xff]
    %v923 = vld [vmem:[#allocation5 + $0x1748] sm:$0xff]
    %v924 = vld [vmem:[#allocation5 + $0x1750] sm:$0xff]
    %v925 = vld [vmem:[#allocation5 + $0x1758] sm:$0xff]
    %v926 = vld [vmem:[#allocation5 + $0x1760] sm:$0xff]
    %v927 = vld [vmem:[#allocation5 + $0x1768] sm:$0xff]
    %v928 = vld [vmem:[#allocation5 + $0x1770] sm:$0xff]
    %v929 = vld [vmem:[#allocation5 + $0x1778] sm:$0xff]
    %v930 = vld [vmem:[#allocation5 + $0x1780] sm:$0xff]
    %v931 = vld [vmem:[#allocation5 + $0x1788] sm:$0xff]
    %v932 = vld [vmem:[#allocation5 + $0x1790] sm:$0xff]
    %v933 = vld [vmem:[#allocation5 + $0x1798] sm:$0xff]
    %v934 = vld [vmem:[#allocation5 + $0x17a0] sm:$0xff]
    %v935 = vld [vmem:[#allocation5 + $0x17a8] sm:$0xff]
    %v936 = vld [vmem:[#allocation5 + $0x17b0] sm:$0xff]
    %v937 = vld [vmem:[#allocation5 + $0x17b8] sm:$0xff]
    %v938 = vld [vmem:[#allocation5 + $0x17c0] sm:$0xff]
    %v939 = vld [vmem:[#allocation5 + $0x17c8] sm:$0xff]
    %v940 = vld [vmem:[#allocation5 + $0x17d0] sm:$0xff]
    %v941 = vld [vmem:[#allocation5 + $0x17d8] sm:$0xff]
    %v942 = vld [vmem:[#allocation5 + $0x17e0] sm:$0xff]
    %v943 = vld [vmem:[#allocation5 + $0x17e8] sm:$0xff]
    %v944 = vld [vmem:[#allocation5 + $0x17f0] sm:$0xff]
    %v945 = vld [vmem:[#allocation5 + $0x17f8] sm:$0xff]
    %v946 = vld [vmem:[#allocation7] sm:$0x3f]
    %v948 = vlaneseq
    %v949 = vshrl.u32 %v948, 7
    %v950 = vsub.s32 0, %v949
    %v951 = vrot.slane %v946, %v950
    %v952 = vlaneseq
    %v953 = vshrl.u32 %v952, 7
    %v954 = vsub.s32 1, %v953
    %v955 = vrot.slane %v946, %v954
    %v956 = vlaneseq
    %v957 = vshrl.u32 %v956, 7
    %v958 = vsub.s32 2, %v957
    %v959 = vrot.slane %v946, %v958
    %v960 = vlaneseq
    %v961 = vshrl.u32 %v960, 7
    %v962 = vsub.s32 3, %v961
    %v963 = vrot.slane %v946, %v962
    %v964 = vlaneseq
    %v965 = vshrl.u32 %v964, 7
    %v966 = vsub.s32 4, %v965
    %v967 = vrot.slane %v946, %v966
    %v968 = vlaneseq
    %v969 = vshrl.u32 %v968, 7
    %v970 = vsub.s32 5, %v969
    %v971 = vrot.slane %v946, %v970
    %v1746 = vunpack.c.l.b16 %v178
    %v1747 = vunpack.c.h.b16 %v178
    %v1748 = vunpack.c.l.b16 %v179
    %v1749 = vunpack.c.h.b16 %v179
    %v1750 = vunpack.c.l.b16 %v180
    %v1751 = vunpack.c.h.b16 %v180
    %v1752 = vunpack.c.l.b16 %v181
    %v1753 = vunpack.c.h.b16 %v181
    %v1754 = vunpack.c.l.b16 %v182
    %v1755 = vunpack.c.h.b16 %v182
    %v1756 = vunpack.c.l.b16 %v183
    %v1757 = vunpack.c.h.b16 %v183
    %v1758 = vunpack.c.l.b16 %v184
    %v1759 = vunpack.c.h.b16 %v184
    %v1760 = vunpack.c.l.b16 %v185
    %v1761 = vunpack.c.h.b16 %v185
    %v1762 = vunpack.c.l.b16 %v186
    %v1763 = vunpack.c.h.b16 %v186
    %v1764 = vunpack.c.l.b16 %v187
    %v1765 = vunpack.c.h.b16 %v187
    %v1766 = vunpack.c.l.b16 %v188
    %v1767 = vunpack.c.h.b16 %v188
    %v1768 = vunpack.c.l.b16 %v189
    %v1769 = vunpack.c.h.b16 %v189
    %v1770 = vunpack.c.l.b16 %v190
    %v1771 = vunpack.c.h.b16 %v190
    %v1772 = vunpack.c.l.b16 %v191
    %v1773 = vunpack.c.h.b16 %v191
    %v1774 = vunpack.c.l.b16 %v192
    %v1775 = vunpack.c.h.b16 %v192
    %v1776 = vunpack.c.l.b16 %v193
    %v1777 = vunpack.c.h.b16 %v193
    %v1778 = vunpack.c.l.b16 %v194
    %v1779 = vunpack.c.h.b16 %v194
    %v1780 = vunpack.c.l.b16 %v195
    %v1781 = vunpack.c.h.b16 %v195
    %v1782 = vunpack.c.l.b16 %v196
    %v1783 = vunpack.c.h.b16 %v196
    %v1784 = vunpack.c.l.b16 %v197
    %v1785 = vunpack.c.h.b16 %v197
    %v1786 = vunpack.c.l.b16 %v198
    %v1787 = vunpack.c.h.b16 %v198
    %v1788 = vunpack.c.l.b16 %v199
    %v1789 = vunpack.c.h.b16 %v199
    %v1790 = vunpack.c.l.b16 %v200
    %v1791 = vunpack.c.h.b16 %v200
    %v1792 = vunpack.c.l.b16 %v201
    %v1793 = vunpack.c.h.b16 %v201
    %v1794 = vunpack.c.l.b16 %v202
    %v1795 = vunpack.c.h.b16 %v202
    %v1796 = vunpack.c.l.b16 %v203
    %v1797 = vunpack.c.h.b16 %v203
    %v1798 = vunpack.c.l.b16 %v204
    %v1799 = vunpack.c.h.b16 %v204
    %v1800 = vunpack.c.l.b16 %v205
    %v1801 = vunpack.c.h.b16 %v205
    %v1802 = vunpack.c.l.b16 %v206
    %v1803 = vunpack.c.h.b16 %v206
    %v1804 = vunpack.c.l.b16 %v207
    %v1805 = vunpack.c.h.b16 %v207
    %v1806 = vunpack.c.l.b16 %v208
    %v1807 = vunpack.c.h.b16 %v208
    %v1808 = vunpack.c.l.b16 %v209
    %v1809 = vunpack.c.h.b16 %v209
    %v1810 = vunpack.c.l.b16 %v210
    %v1811 = vunpack.c.h.b16 %v210
    %v1812 = vunpack.c.l.b16 %v211
    %v1813 = vunpack.c.h.b16 %v211
    %v1814 = vunpack.c.l.b16 %v212
    %v1815 = vunpack.c.h.b16 %v212
    %v1816 = vunpack.c.l.b16 %v213
    %v1817 = vunpack.c.h.b16 %v213
    %v1818 = vunpack.c.l.b16 %v214
    %v1819 = vunpack.c.h.b16 %v214
    %v1820 = vunpack.c.l.b16 %v215
    %v1821 = vunpack.c.h.b16 %v215
    %v1822 = vunpack.c.l.b16 %v216
    %v1823 = vunpack.c.h.b16 %v216
    %v1824 = vunpack.c.l.b16 %v217
    %v1825 = vunpack.c.h.b16 %v217
    %v1826 = vunpack.c.l.b16 %v218
    %v1827 = vunpack.c.h.b16 %v218
    %v1828 = vunpack.c.l.b16 %v219
    %v1829 = vunpack.c.h.b16 %v219
    %v1830 = vunpack.c.l.b16 %v220
    %v1831 = vunpack.c.h.b16 %v220
    %v1832 = vunpack.c.l.b16 %v221
    %v1833 = vunpack.c.h.b16 %v221
    %v1834 = vunpack.c.l.b16 %v222
    %v1835 = vunpack.c.h.b16 %v222
    %v1836 = vunpack.c.l.b16 %v223
    %v1837 = vunpack.c.h.b16 %v223
    %v1838 = vunpack.c.l.b16 %v224
    %v1839 = vunpack.c.h.b16 %v224
    %v1840 = vunpack.c.l.b16 %v225
    %v1841 = vunpack.c.h.b16 %v225
    %v1842 = vunpack.c.l.b16 %v226
    %v1843 = vunpack.c.h.b16 %v226
    %v1844 = vunpack.c.l.b16 %v227
    %v1845 = vunpack.c.h.b16 %v227
    %v1846 = vunpack.c.l.b16 %v228
    %v1847 = vunpack.c.h.b16 %v228
    %v1848 = vunpack.c.l.b16 %v229
    %v1849 = vunpack.c.h.b16 %v229
    %v1850 = vunpack.c.l.b16 %v230
    %v1851 = vunpack.c.h.b16 %v230
    %v1852 = vunpack.c.l.b16 %v231
    %v1853 = vunpack.c.h.b16 %v231
    %v1854 = vunpack.c.l.b16 %v232
    %v1855 = vunpack.c.h.b16 %v232
    %v1856 = vunpack.c.l.b16 %v233
    %v1857 = vunpack.c.h.b16 %v233
    %v1858 = vunpack.c.l.b16 %v234
    %v1859 = vunpack.c.h.b16 %v234
    %v1860 = vunpack.c.l.b16 %v235
    %v1861 = vunpack.c.h.b16 %v235
    %v1862 = vunpack.c.l.b16 %v236
    %v1863 = vunpack.c.h.b16 %v236
    %v1864 = vunpack.c.l.b16 %v237
    %v1865 = vunpack.c.h.b16 %v237
    %v1866 = vunpack.c.l.b16 %v238
    %v1867 = vunpack.c.h.b16 %v238
    %v1868 = vunpack.c.l.b16 %v239
    %v1869 = vunpack.c.h.b16 %v239
    %v1870 = vunpack.c.l.b16 %v240
    %v1871 = vunpack.c.h.b16 %v240
    %v1872 = vunpack.c.l.b16 %v241
    %v1873 = vunpack.c.h.b16 %v241
    %v1874 = vunpack.c.l.b16 %v242
    %v1875 = vunpack.c.h.b16 %v242
    %v1876 = vunpack.c.l.b16 %v243
    %v1877 = vunpack.c.h.b16 %v243
    %v1878 = vunpack.c.l.b16 %v244
    %v1879 = vunpack.c.h.b16 %v244
    %v1880 = vunpack.c.l.b16 %v245
    %v1881 = vunpack.c.h.b16 %v245
    %v1882 = vunpack.c.l.b16 %v246
    %v1883 = vunpack.c.h.b16 %v246
    %v1884 = vunpack.c.l.b16 %v247
    %v1885 = vunpack.c.h.b16 %v247
    %v1886 = vunpack.c.l.b16 %v248
    %v1887 = vunpack.c.h.b16 %v248
    %v1888 = vunpack.c.l.b16 %v249
    %v1889 = vunpack.c.h.b16 %v249
    %v1890 = vunpack.c.l.b16 %v250
    %v1891 = vunpack.c.h.b16 %v250
    %v1892 = vunpack.c.l.b16 %v251
    %v1893 = vunpack.c.h.b16 %v251
    %v1894 = vunpack.c.l.b16 %v252
    %v1895 = vunpack.c.h.b16 %v252
    %v1896 = vunpack.c.l.b16 %v253
    %v1897 = vunpack.c.h.b16 %v253
    %v1898 = vunpack.c.l.b16 %v254
    %v1899 = vunpack.c.h.b16 %v254
    %v1900 = vunpack.c.l.b16 %v255
    %v1901 = vunpack.c.h.b16 %v255
    %v1902 = vunpack.c.l.b16 %v256
    %v1903 = vunpack.c.h.b16 %v256
    %v1904 = vunpack.c.l.b16 %v257
    %v1905 = vunpack.c.h.b16 %v257
    %v1906 = vunpack.c.l.b16 %v258
    %v1907 = vunpack.c.h.b16 %v258
    %v1908 = vunpack.c.l.b16 %v259
    %v1909 = vunpack.c.h.b16 %v259
    %v1910 = vunpack.c.l.b16 %v260
    %v1911 = vunpack.c.h.b16 %v260
    %v1912 = vunpack.c.l.b16 %v261
    %v1913 = vunpack.c.h.b16 %v261
    %v1914 = vunpack.c.l.b16 %v262
    %v1915 = vunpack.c.h.b16 %v262
    %v1916 = vunpack.c.l.b16 %v263
    %v1917 = vunpack.c.h.b16 %v263
    %v1918 = vunpack.c.l.b16 %v264
    %v1919 = vunpack.c.h.b16 %v264
    %v1920 = vunpack.c.l.b16 %v265
    %v1921 = vunpack.c.h.b16 %v265
    %v1922 = vunpack.c.l.b16 %v266
    %v1923 = vunpack.c.h.b16 %v266
    %v1924 = vunpack.c.l.b16 %v267
    %v1925 = vunpack.c.h.b16 %v267
    %v1926 = vunpack.c.l.b16 %v268
    %v1927 = vunpack.c.h.b16 %v268
    %v1928 = vunpack.c.l.b16 %v269
    %v1929 = vunpack.c.h.b16 %v269
    %v1930 = vunpack.c.l.b16 %v270
    %v1931 = vunpack.c.h.b16 %v270
    %v1932 = vunpack.c.l.b16 %v271
    %v1933 = vunpack.c.h.b16 %v271
    %v1934 = vunpack.c.l.b16 %v272
    %v1935 = vunpack.c.h.b16 %v272
    %v1936 = vunpack.c.l.b16 %v273
    %v1937 = vunpack.c.h.b16 %v273
    %v1938 = vunpack.c.l.b16 %v274
    %v1939 = vunpack.c.h.b16 %v274
    %v1940 = vunpack.c.l.b16 %v275
    %v1941 = vunpack.c.h.b16 %v275
    %v1942 = vunpack.c.l.b16 %v276
    %v1943 = vunpack.c.h.b16 %v276
    %v1944 = vunpack.c.l.b16 %v277
    %v1945 = vunpack.c.h.b16 %v277
    %v1946 = vunpack.c.l.b16 %v278
    %v1947 = vunpack.c.h.b16 %v278
    %v1948 = vunpack.c.l.b16 %v279
    %v1949 = vunpack.c.h.b16 %v279
    %v1950 = vunpack.c.l.b16 %v280
    %v1951 = vunpack.c.h.b16 %v280
    %v1952 = vunpack.c.l.b16 %v281
    %v1953 = vunpack.c.h.b16 %v281
    %v1954 = vunpack.c.l.b16 %v282
    %v1955 = vunpack.c.h.b16 %v282
    %v1956 = vunpack.c.l.b16 %v283
    %v1957 = vunpack.c.h.b16 %v283
    %v1958 = vunpack.c.l.b16 %v284
    %v1959 = vunpack.c.h.b16 %v284
    %v1960 = vunpack.c.l.b16 %v285
    %v1961 = vunpack.c.h.b16 %v285
    %v1962 = vunpack.c.l.b16 %v286
    %v1963 = vunpack.c.h.b16 %v286
    %v1964 = vunpack.c.l.b16 %v287
    %v1965 = vunpack.c.h.b16 %v287
    %v1966 = vunpack.c.l.b16 %v288
    %v1967 = vunpack.c.h.b16 %v288
    %v1968 = vunpack.c.l.b16 %v289
    %v1969 = vunpack.c.h.b16 %v289
    %v1970 = vunpack.c.l.b16 %v290
    %v1971 = vunpack.c.h.b16 %v290
    %v1972 = vunpack.c.l.b16 %v291
    %v1973 = vunpack.c.h.b16 %v291
    %v1974 = vunpack.c.l.b16 %v292
    %v1975 = vunpack.c.h.b16 %v292
    %v1976 = vunpack.c.l.b16 %v293
    %v1977 = vunpack.c.h.b16 %v293
    %v1978 = vunpack.c.l.b16 %v294
    %v1979 = vunpack.c.h.b16 %v294
    %v1980 = vunpack.c.l.b16 %v295
    %v1981 = vunpack.c.h.b16 %v295
    %v1982 = vunpack.c.l.b16 %v296
    %v1983 = vunpack.c.h.b16 %v296
    %v1984 = vunpack.c.l.b16 %v297
    %v1985 = vunpack.c.h.b16 %v297
    %v1986 = vunpack.c.l.b16 %v298
    %v1987 = vunpack.c.h.b16 %v298
    %v1988 = vunpack.c.l.b16 %v299
    %v1989 = vunpack.c.h.b16 %v299
    %v1990 = vunpack.c.l.b16 %v300
    %v1991 = vunpack.c.h.b16 %v300
    %v1992 = vunpack.c.l.b16 %v301
    %v1993 = vunpack.c.h.b16 %v301
    %v1994 = vunpack.c.l.b16 %v302
    %v1995 = vunpack.c.h.b16 %v302
    %v1996 = vunpack.c.l.b16 %v303
    %v1997 = vunpack.c.h.b16 %v303
    %v1998 = vunpack.c.l.b16 %v304
    %v1999 = vunpack.c.h.b16 %v304
    %v2000 = vunpack.c.l.b16 %v305
    %v2001 = vunpack.c.h.b16 %v305
    %v2002 = vunpack.c.l.b16 %v306
    %v2003 = vunpack.c.h.b16 %v306
    %v2004 = vunpack.c.l.b16 %v307
    %v2005 = vunpack.c.h.b16 %v307
    %v2006 = vunpack.c.l.b16 %v308
    %v2007 = vunpack.c.h.b16 %v308
    %v2008 = vunpack.c.l.b16 %v309
    %v2009 = vunpack.c.h.b16 %v309
    %v2010 = vunpack.c.l.b16 %v310
    %v2011 = vunpack.c.h.b16 %v310
    %v2012 = vunpack.c.l.b16 %v311
    %v2013 = vunpack.c.h.b16 %v311
    %v2014 = vunpack.c.l.b16 %v312
    %v2015 = vunpack.c.h.b16 %v312
    %v2016 = vunpack.c.l.b16 %v313
    %v2017 = vunpack.c.h.b16 %v313
    %v2018 = vunpack.c.l.b16 %v314
    %v2019 = vunpack.c.h.b16 %v314
    %v2020 = vunpack.c.l.b16 %v315
    %v2021 = vunpack.c.h.b16 %v315
    %v2022 = vunpack.c.l.b16 %v316
    %v2023 = vunpack.c.h.b16 %v316
    %v2024 = vunpack.c.l.b16 %v317
    %v2025 = vunpack.c.h.b16 %v317
    %v2026 = vunpack.c.l.b16 %v318
    %v2027 = vunpack.c.h.b16 %v318
    %v2028 = vunpack.c.l.b16 %v319
    %v2029 = vunpack.c.h.b16 %v319
    %v2030 = vunpack.c.l.b16 %v320
    %v2031 = vunpack.c.h.b16 %v320
    %v2032 = vunpack.c.l.b16 %v321
    %v2033 = vunpack.c.h.b16 %v321
    %v2034 = vunpack.c.l.b16 %v322
    %v2035 = vunpack.c.h.b16 %v322
    %v2036 = vunpack.c.l.b16 %v323
    %v2037 = vunpack.c.h.b16 %v323
    %v2038 = vunpack.c.l.b16 %v324
    %v2039 = vunpack.c.h.b16 %v324
    %v2040 = vunpack.c.l.b16 %v325
    %v2041 = vunpack.c.h.b16 %v325
    %v2042 = vunpack.c.l.b16 %v326
    %v2043 = vunpack.c.h.b16 %v326
    %v2044 = vunpack.c.l.b16 %v327
    %v2045 = vunpack.c.h.b16 %v327
    %v2046 = vunpack.c.l.b16 %v328
    %v2047 = vunpack.c.h.b16 %v328
    %v2048 = vunpack.c.l.b16 %v329
    %v2049 = vunpack.c.h.b16 %v329
    %v2050 = vunpack.c.l.b16 %v330
    %v2051 = vunpack.c.h.b16 %v330
    %v2052 = vunpack.c.l.b16 %v331
    %v2053 = vunpack.c.h.b16 %v331
    %v2054 = vunpack.c.l.b16 %v332
    %v2055 = vunpack.c.h.b16 %v332
    %v2056 = vunpack.c.l.b16 %v333
    %v2057 = vunpack.c.h.b16 %v333
    %v2058 = vunpack.c.l.b16 %v334
    %v2059 = vunpack.c.h.b16 %v334
    %v2060 = vunpack.c.l.b16 %v335
    %v2061 = vunpack.c.h.b16 %v335
    %v2062 = vunpack.c.l.b16 %v336
    %v2063 = vunpack.c.h.b16 %v336
    %v2064 = vunpack.c.l.b16 %v337
    %v2065 = vunpack.c.h.b16 %v337
    %v2066 = vunpack.c.l.b16 %v338
    %v2067 = vunpack.c.h.b16 %v338
    %v2068 = vunpack.c.l.b16 %v339
    %v2069 = vunpack.c.h.b16 %v339
    %v2070 = vunpack.c.l.b16 %v340
    %v2071 = vunpack.c.h.b16 %v340
    %v2072 = vunpack.c.l.b16 %v341
    %v2073 = vunpack.c.h.b16 %v341
    %v2074 = vunpack.c.l.b16 %v342
    %v2075 = vunpack.c.h.b16 %v342
    %v2076 = vunpack.c.l.b16 %v343
    %v2077 = vunpack.c.h.b16 %v343
    %v2078 = vunpack.c.l.b16 %v344
    %v2079 = vunpack.c.h.b16 %v344
    %v2080 = vunpack.c.l.b16 %v345
    %v2081 = vunpack.c.h.b16 %v345
    %v2082 = vunpack.c.l.b16 %v346
    %v2083 = vunpack.c.h.b16 %v346
    %v2084 = vunpack.c.l.b16 %v347
    %v2085 = vunpack.c.h.b16 %v347
    %v2086 = vunpack.c.l.b16 %v348
    %v2087 = vunpack.c.h.b16 %v348
    %v2088 = vunpack.c.l.b16 %v349
    %v2089 = vunpack.c.h.b16 %v349
    %v2090 = vunpack.c.l.b16 %v350
    %v2091 = vunpack.c.h.b16 %v350
    %v2092 = vunpack.c.l.b16 %v351
    %v2093 = vunpack.c.h.b16 %v351
    %v2094 = vunpack.c.l.b16 %v352
    %v2095 = vunpack.c.h.b16 %v352
    %v2096 = vunpack.c.l.b16 %v353
    %v2097 = vunpack.c.h.b16 %v353
    %v2098 = vunpack.c.l.b16 %v354
    %v2099 = vunpack.c.h.b16 %v354
    %v2100 = vunpack.c.l.b16 %v355
    %v2101 = vunpack.c.h.b16 %v355
    %v2102 = vunpack.c.l.b16 %v356
    %v2103 = vunpack.c.h.b16 %v356
    %v2104 = vunpack.c.l.b16 %v357
    %v2105 = vunpack.c.h.b16 %v357
    %v2106 = vunpack.c.l.b16 %v358
    %v2107 = vunpack.c.h.b16 %v358
    %v2108 = vunpack.c.l.b16 %v359
    %v2109 = vunpack.c.h.b16 %v359
    %v2110 = vunpack.c.l.b16 %v360
    %v2111 = vunpack.c.h.b16 %v360
    %v2112 = vunpack.c.l.b16 %v361
    %v2113 = vunpack.c.h.b16 %v361
    %v2114 = vunpack.c.l.b16 %v362
    %v2115 = vunpack.c.h.b16 %v362
    %v2116 = vunpack.c.l.b16 %v363
    %v2117 = vunpack.c.h.b16 %v363
    %v2118 = vunpack.c.l.b16 %v364
    %v2119 = vunpack.c.h.b16 %v364
    %v2120 = vunpack.c.l.b16 %v365
    %v2121 = vunpack.c.h.b16 %v365
    %v2122 = vunpack.c.l.b16 %v366
    %v2123 = vunpack.c.h.b16 %v366
    %v2124 = vunpack.c.l.b16 %v367
    %v2125 = vunpack.c.h.b16 %v367
    %v2126 = vunpack.c.l.b16 %v368
    %v2127 = vunpack.c.h.b16 %v368
    %v2128 = vunpack.c.l.b16 %v369
    %v2129 = vunpack.c.h.b16 %v369
    %v2130 = vunpack.c.l.b16 %v370
    %v2131 = vunpack.c.h.b16 %v370
    %v2132 = vunpack.c.l.b16 %v371
    %v2133 = vunpack.c.h.b16 %v371
    %v2134 = vunpack.c.l.b16 %v372
    %v2135 = vunpack.c.h.b16 %v372
    %v2136 = vunpack.c.l.b16 %v373
    %v2137 = vunpack.c.h.b16 %v373
    %v2138 = vunpack.c.l.b16 %v374
    %v2139 = vunpack.c.h.b16 %v374
    %v2140 = vunpack.c.l.b16 %v375
    %v2141 = vunpack.c.h.b16 %v375
    %v2142 = vunpack.c.l.b16 %v376
    %v2143 = vunpack.c.h.b16 %v376
    %v2144 = vunpack.c.l.b16 %v377
    %v2145 = vunpack.c.h.b16 %v377
    %v2146 = vunpack.c.l.b16 %v378
    %v2147 = vunpack.c.h.b16 %v378
    %v2148 = vunpack.c.l.b16 %v379
    %v2149 = vunpack.c.h.b16 %v379
    %v2150 = vunpack.c.l.b16 %v380
    %v2151 = vunpack.c.h.b16 %v380
    %v2152 = vunpack.c.l.b16 %v381
    %v2153 = vunpack.c.h.b16 %v381
    %v2154 = vunpack.c.l.b16 %v382
    %v2155 = vunpack.c.h.b16 %v382
    %v2156 = vunpack.c.l.b16 %v383
    %v2157 = vunpack.c.h.b16 %v383
    %v2158 = vunpack.c.l.b16 %v384
    %v2159 = vunpack.c.h.b16 %v384
    %v2160 = vunpack.c.l.b16 %v385
    %v2161 = vunpack.c.h.b16 %v385
    %v2162 = vunpack.c.l.b16 %v386
    %v2163 = vunpack.c.h.b16 %v386
    %v2164 = vunpack.c.l.b16 %v387
    %v2165 = vunpack.c.h.b16 %v387
    %v2166 = vunpack.c.l.b16 %v388
    %v2167 = vunpack.c.h.b16 %v388
    %v2168 = vunpack.c.l.b16 %v389
    %v2169 = vunpack.c.h.b16 %v389
    %v2170 = vunpack.c.l.b16 %v390
    %v2171 = vunpack.c.h.b16 %v390
    %v2172 = vunpack.c.l.b16 %v391
    %v2173 = vunpack.c.h.b16 %v391
    %v2174 = vunpack.c.l.b16 %v392
    %v2175 = vunpack.c.h.b16 %v392
    %v2176 = vunpack.c.l.b16 %v393
    %v2177 = vunpack.c.h.b16 %v393
    %v2178 = vunpack.c.l.b16 %v394
    %v2179 = vunpack.c.h.b16 %v394
    %v2180 = vunpack.c.l.b16 %v395
    %v2181 = vunpack.c.h.b16 %v395
    %v2182 = vunpack.c.l.b16 %v396
    %v2183 = vunpack.c.h.b16 %v396
    %v2184 = vunpack.c.l.b16 %v397
    %v2185 = vunpack.c.h.b16 %v397
    %v2186 = vunpack.c.l.b16 %v398
    %v2187 = vunpack.c.h.b16 %v398
    %v2188 = vunpack.c.l.b16 %v399
    %v2189 = vunpack.c.h.b16 %v399
    %v2190 = vunpack.c.l.b16 %v400
    %v2191 = vunpack.c.h.b16 %v400
    %v2192 = vunpack.c.l.b16 %v401
    %v2193 = vunpack.c.h.b16 %v401
    %v2194 = vunpack.c.l.b16 %v402
    %v2195 = vunpack.c.h.b16 %v402
    %v2196 = vunpack.c.l.b16 %v403
    %v2197 = vunpack.c.h.b16 %v403
    %v2198 = vunpack.c.l.b16 %v404
    %v2199 = vunpack.c.h.b16 %v404
    %v2200 = vunpack.c.l.b16 %v405
    %v2201 = vunpack.c.h.b16 %v405
    %v2202 = vunpack.c.l.b16 %v406
    %v2203 = vunpack.c.h.b16 %v406
    %v2204 = vunpack.c.l.b16 %v407
    %v2205 = vunpack.c.h.b16 %v407
    %v2206 = vunpack.c.l.b16 %v408
    %v2207 = vunpack.c.h.b16 %v408
    %v2208 = vunpack.c.l.b16 %v409
    %v2209 = vunpack.c.h.b16 %v409
    %v2210 = vunpack.c.l.b16 %v410
    %v2211 = vunpack.c.h.b16 %v410
    %v2212 = vunpack.c.l.b16 %v411
    %v2213 = vunpack.c.h.b16 %v411
    %v2214 = vunpack.c.l.b16 %v412
    %v2215 = vunpack.c.h.b16 %v412
    %v2216 = vunpack.c.l.b16 %v413
    %v2217 = vunpack.c.h.b16 %v413
    %v2218 = vunpack.c.l.b16 %v414
    %v2219 = vunpack.c.h.b16 %v414
    %v2220 = vunpack.c.l.b16 %v415
    %v2221 = vunpack.c.h.b16 %v415
    %v2222 = vunpack.c.l.b16 %v416
    %v2223 = vunpack.c.h.b16 %v416
    %v2224 = vunpack.c.l.b16 %v417
    %v2225 = vunpack.c.h.b16 %v417
    %v2226 = vunpack.c.l.b16 %v418
    %v2227 = vunpack.c.h.b16 %v418
    %v2228 = vunpack.c.l.b16 %v419
    %v2229 = vunpack.c.h.b16 %v419
    %v2230 = vunpack.c.l.b16 %v420
    %v2231 = vunpack.c.h.b16 %v420
    %v2232 = vunpack.c.l.b16 %v421
    %v2233 = vunpack.c.h.b16 %v421
    %v2234 = vunpack.c.l.b16 %v422
    %v2235 = vunpack.c.h.b16 %v422
    %v2236 = vunpack.c.l.b16 %v423
    %v2237 = vunpack.c.h.b16 %v423
    %v2238 = vunpack.c.l.b16 %v424
    %v2239 = vunpack.c.h.b16 %v424
    %v2240 = vunpack.c.l.b16 %v425
    %v2241 = vunpack.c.h.b16 %v425
    %v2242 = vunpack.c.l.b16 %v426
    %v2243 = vunpack.c.h.b16 %v426
    %v2244 = vunpack.c.l.b16 %v427
    %v2245 = vunpack.c.h.b16 %v427
    %v2246 = vunpack.c.l.b16 %v428
    %v2247 = vunpack.c.h.b16 %v428
    %v2248 = vunpack.c.l.b16 %v429
    %v2249 = vunpack.c.h.b16 %v429
    %v2250 = vunpack.c.l.b16 %v430
    %v2251 = vunpack.c.h.b16 %v430
    %v2252 = vunpack.c.l.b16 %v431
    %v2253 = vunpack.c.h.b16 %v431
    %v2254 = vunpack.c.l.b16 %v432
    %v2255 = vunpack.c.h.b16 %v432
    %v2256 = vunpack.c.l.b16 %v433
    %v2257 = vunpack.c.h.b16 %v433
    %v2258 = vunpack.c.l.b16 %v434
    %v2259 = vunpack.c.h.b16 %v434
    %v2260 = vunpack.c.l.b16 %v435
    %v2261 = vunpack.c.h.b16 %v435
    %v2262 = vunpack.c.l.b16 %v436
    %v2263 = vunpack.c.h.b16 %v436
    %v2264 = vunpack.c.l.b16 %v437
    %v2265 = vunpack.c.h.b16 %v437
    %v2266 = vunpack.c.l.b16 %v438
    %v2267 = vunpack.c.h.b16 %v438
    %v2268 = vunpack.c.l.b16 %v439
    %v2269 = vunpack.c.h.b16 %v439
    %v2270 = vunpack.c.l.b16 %v440
    %v2271 = vunpack.c.h.b16 %v440
    %v2272 = vunpack.c.l.b16 %v441
    %v2273 = vunpack.c.h.b16 %v441
    %v2274 = vunpack.c.l.b16 %v442
    %v2275 = vunpack.c.h.b16 %v442
    %v2276 = vunpack.c.l.b16 %v443
    %v2277 = vunpack.c.h.b16 %v443
    %v2278 = vunpack.c.l.b16 %v444
    %v2279 = vunpack.c.h.b16 %v444
    %v2280 = vunpack.c.l.b16 %v445
    %v2281 = vunpack.c.h.b16 %v445
    %v2282 = vunpack.c.l.b16 %v446
    %v2283 = vunpack.c.h.b16 %v446
    %v2284 = vunpack.c.l.b16 %v447
    %v2285 = vunpack.c.h.b16 %v447
    %v2286 = vunpack.c.l.b16 %v448
    %v2287 = vunpack.c.h.b16 %v448
    %v2288 = vunpack.c.l.b16 %v449
    %v2289 = vunpack.c.h.b16 %v449
    %v2290 = vunpack.c.l.b16 %v450
    %v2291 = vunpack.c.h.b16 %v450
    %v2292 = vunpack.c.l.b16 %v451
    %v2293 = vunpack.c.h.b16 %v451
    %v2294 = vunpack.c.l.b16 %v452
    %v2295 = vunpack.c.h.b16 %v452
    %v2296 = vunpack.c.l.b16 %v453
    %v2297 = vunpack.c.h.b16 %v453
    %v2298 = vunpack.c.l.b16 %v454
    %v2299 = vunpack.c.h.b16 %v454
    %v2300 = vunpack.c.l.b16 %v455
    %v2301 = vunpack.c.h.b16 %v455
    %v2302 = vunpack.c.l.b16 %v456
    %v2303 = vunpack.c.h.b16 %v456
    %v2304 = vunpack.c.l.b16 %v457
    %v2305 = vunpack.c.h.b16 %v457
    %v2306 = vunpack.c.l.b16 %v458
    %v2307 = vunpack.c.h.b16 %v458
    %v2308 = vunpack.c.l.b16 %v459
    %v2309 = vunpack.c.h.b16 %v459
    %v2310 = vunpack.c.l.b16 %v460
    %v2311 = vunpack.c.h.b16 %v460
    %v2312 = vunpack.c.l.b16 %v461
    %v2313 = vunpack.c.h.b16 %v461
    %v2314 = vunpack.c.l.b16 %v462
    %v2315 = vunpack.c.h.b16 %v462
    %v2316 = vunpack.c.l.b16 %v463
    %v2317 = vunpack.c.h.b16 %v463
    %v2318 = vunpack.c.l.b16 %v464
    %v2319 = vunpack.c.h.b16 %v464
    %v2320 = vunpack.c.l.b16 %v465
    %v2321 = vunpack.c.h.b16 %v465
    %v2322 = vunpack.c.l.b16 %v466
    %v2323 = vunpack.c.h.b16 %v466
    %v2324 = vunpack.c.l.b16 %v467
    %v2325 = vunpack.c.h.b16 %v467
    %v2326 = vunpack.c.l.b16 %v468
    %v2327 = vunpack.c.h.b16 %v468
    %v2328 = vunpack.c.l.b16 %v469
    %v2329 = vunpack.c.h.b16 %v469
    %v2330 = vunpack.c.l.b16 %v470
    %v2331 = vunpack.c.h.b16 %v470
    %v2332 = vunpack.c.l.b16 %v471
    %v2333 = vunpack.c.h.b16 %v471
    %v2334 = vunpack.c.l.b16 %v472
    %v2335 = vunpack.c.h.b16 %v472
    %v2336 = vunpack.c.l.b16 %v473
    %v2337 = vunpack.c.h.b16 %v473
    %v2338 = vunpack.c.l.b16 %v474
    %v2339 = vunpack.c.h.b16 %v474
    %v2340 = vunpack.c.l.b16 %v475
    %v2341 = vunpack.c.h.b16 %v475
    %v2342 = vunpack.c.l.b16 %v476
    %v2343 = vunpack.c.h.b16 %v476
    %v2344 = vunpack.c.l.b16 %v477
    %v2345 = vunpack.c.h.b16 %v477
    %v2346 = vunpack.c.l.b16 %v478
    %v2347 = vunpack.c.h.b16 %v478
    %v2348 = vunpack.c.l.b16 %v479
    %v2349 = vunpack.c.h.b16 %v479
    %v2350 = vunpack.c.l.b16 %v480
    %v2351 = vunpack.c.h.b16 %v480
    %v2352 = vunpack.c.l.b16 %v481
    %v2353 = vunpack.c.h.b16 %v481
    %v2354 = vunpack.c.l.b16 %v482
    %v2355 = vunpack.c.h.b16 %v482
    %v2356 = vunpack.c.l.b16 %v483
    %v2357 = vunpack.c.h.b16 %v483
    %v2358 = vunpack.c.l.b16 %v484
    %v2359 = vunpack.c.h.b16 %v484
    %v2360 = vunpack.c.l.b16 %v485
    %v2361 = vunpack.c.h.b16 %v485
    %v2362 = vunpack.c.l.b16 %v486
    %v2363 = vunpack.c.h.b16 %v486
    %v2364 = vunpack.c.l.b16 %v487
    %v2365 = vunpack.c.h.b16 %v487
    %v2366 = vunpack.c.l.b16 %v488
    %v2367 = vunpack.c.h.b16 %v488
    %v2368 = vunpack.c.l.b16 %v489
    %v2369 = vunpack.c.h.b16 %v489
    %v2370 = vunpack.c.l.b16 %v490
    %v2371 = vunpack.c.h.b16 %v490
    %v2372 = vunpack.c.l.b16 %v491
    %v2373 = vunpack.c.h.b16 %v491
    %v2374 = vunpack.c.l.b16 %v492
    %v2375 = vunpack.c.h.b16 %v492
    %v2376 = vunpack.c.l.b16 %v493
    %v2377 = vunpack.c.h.b16 %v493
    %v2378 = vunpack.c.l.b16 %v494
    %v2379 = vunpack.c.h.b16 %v494
    %v2380 = vunpack.c.l.b16 %v495
    %v2381 = vunpack.c.h.b16 %v495
    %v2382 = vunpack.c.l.b16 %v496
    %v2383 = vunpack.c.h.b16 %v496
    %v2384 = vunpack.c.l.b16 %v497
    %v2385 = vunpack.c.h.b16 %v497
    %v2386 = vunpack.c.l.b16 %v498
    %v2387 = vunpack.c.h.b16 %v498
    %v2388 = vunpack.c.l.b16 %v499
    %v2389 = vunpack.c.h.b16 %v499
    %v2390 = vunpack.c.l.b16 %v500
    %v2391 = vunpack.c.h.b16 %v500
    %v2392 = vunpack.c.l.b16 %v501
    %v2393 = vunpack.c.h.b16 %v501
    %v2394 = vunpack.c.l.b16 %v502
    %v2395 = vunpack.c.h.b16 %v502
    %v2396 = vunpack.c.l.b16 %v503
    %v2397 = vunpack.c.h.b16 %v503
    %v2398 = vunpack.c.l.b16 %v504
    %v2399 = vunpack.c.h.b16 %v504
    %v2400 = vunpack.c.l.b16 %v505
    %v2401 = vunpack.c.h.b16 %v505
    %v2402 = vunpack.c.l.b16 %v506
    %v2403 = vunpack.c.h.b16 %v506
    %v2404 = vunpack.c.l.b16 %v507
    %v2405 = vunpack.c.h.b16 %v507
    %v2406 = vunpack.c.l.b16 %v508
    %v2407 = vunpack.c.h.b16 %v508
    %v2408 = vunpack.c.l.b16 %v509
    %v2409 = vunpack.c.h.b16 %v509
    %v2410 = vunpack.c.l.b16 %v510
    %v2411 = vunpack.c.h.b16 %v510
    %v2412 = vunpack.c.l.b16 %v511
    %v2413 = vunpack.c.h.b16 %v511
    %v2414 = vunpack.c.l.b16 %v512
    %v2415 = vunpack.c.h.b16 %v512
    %v2416 = vunpack.c.l.b16 %v513
    %v2417 = vunpack.c.h.b16 %v513
    %v2418 = vunpack.c.l.b16 %v514
    %v2419 = vunpack.c.h.b16 %v514
    %v2420 = vunpack.c.l.b16 %v515
    %v2421 = vunpack.c.h.b16 %v515
    %v2422 = vunpack.c.l.b16 %v516
    %v2423 = vunpack.c.h.b16 %v516
    %v2424 = vunpack.c.l.b16 %v517
    %v2425 = vunpack.c.h.b16 %v517
    %v2426 = vunpack.c.l.b16 %v518
    %v2427 = vunpack.c.h.b16 %v518
    %v2428 = vunpack.c.l.b16 %v519
    %v2429 = vunpack.c.h.b16 %v519
    %v2430 = vunpack.c.l.b16 %v520
    %v2431 = vunpack.c.h.b16 %v520
    %v2432 = vunpack.c.l.b16 %v521
    %v2433 = vunpack.c.h.b16 %v521
    %v2434 = vunpack.c.l.b16 %v522
    %v2435 = vunpack.c.h.b16 %v522
    %v2436 = vunpack.c.l.b16 %v523
    %v2437 = vunpack.c.h.b16 %v523
    %v2438 = vunpack.c.l.b16 %v524
    %v2439 = vunpack.c.h.b16 %v524
    %v2440 = vunpack.c.l.b16 %v525
    %v2441 = vunpack.c.h.b16 %v525
    %v2442 = vunpack.c.l.b16 %v526
    %v2443 = vunpack.c.h.b16 %v526
    %v2444 = vunpack.c.l.b16 %v527
    %v2445 = vunpack.c.h.b16 %v527
    %v2446 = vunpack.c.l.b16 %v528
    %v2447 = vunpack.c.h.b16 %v528
    %v2448 = vunpack.c.l.b16 %v529
    %v2449 = vunpack.c.h.b16 %v529
    %v2450 = vunpack.c.l.b16 %v530
    %v2451 = vunpack.c.h.b16 %v530
    %v2452 = vunpack.c.l.b16 %v531
    %v2453 = vunpack.c.h.b16 %v531
    %v2454 = vunpack.c.l.b16 %v532
    %v2455 = vunpack.c.h.b16 %v532
    %v2456 = vunpack.c.l.b16 %v533
    %v2457 = vunpack.c.h.b16 %v533
    %v2458 = vunpack.c.l.b16 %v534
    %v2459 = vunpack.c.h.b16 %v534
    %v2460 = vunpack.c.l.b16 %v535
    %v2461 = vunpack.c.h.b16 %v535
    %v2462 = vunpack.c.l.b16 %v536
    %v2463 = vunpack.c.h.b16 %v536
    %v2464 = vunpack.c.l.b16 %v537
    %v2465 = vunpack.c.h.b16 %v537
    %v2466 = vunpack.c.l.b16 %v538
    %v2467 = vunpack.c.h.b16 %v538
    %v2468 = vunpack.c.l.b16 %v539
    %v2469 = vunpack.c.h.b16 %v539
    %v2470 = vunpack.c.l.b16 %v540
    %v2471 = vunpack.c.h.b16 %v540
    %v2472 = vunpack.c.l.b16 %v541
    %v2473 = vunpack.c.h.b16 %v541
    %v2474 = vunpack.c.l.b16 %v542
    %v2475 = vunpack.c.h.b16 %v542
    %v2476 = vunpack.c.l.b16 %v543
    %v2477 = vunpack.c.h.b16 %v543
    %v2478 = vunpack.c.l.b16 %v544
    %v2479 = vunpack.c.h.b16 %v544
    %v2480 = vunpack.c.l.b16 %v545
    %v2481 = vunpack.c.h.b16 %v545
    %v2482 = vunpack.c.l.b16 %v546
    %v2483 = vunpack.c.h.b16 %v546
    %v2484 = vunpack.c.l.b16 %v547
    %v2485 = vunpack.c.h.b16 %v547
    %v2486 = vunpack.c.l.b16 %v548
    %v2487 = vunpack.c.h.b16 %v548
    %v2488 = vunpack.c.l.b16 %v549
    %v2489 = vunpack.c.h.b16 %v549
    %v2490 = vunpack.c.l.b16 %v550
    %v2491 = vunpack.c.h.b16 %v550
    %v2492 = vunpack.c.l.b16 %v551
    %v2493 = vunpack.c.h.b16 %v551
    %v2494 = vunpack.c.l.b16 %v552
    %v2495 = vunpack.c.h.b16 %v552
    %v2496 = vunpack.c.l.b16 %v553
    %v2497 = vunpack.c.h.b16 %v553
    %v2498 = vunpack.c.l.b16 %v554
    %v2499 = vunpack.c.h.b16 %v554
    %v2500 = vunpack.c.l.b16 %v555
    %v2501 = vunpack.c.h.b16 %v555
    %v2502 = vunpack.c.l.b16 %v556
    %v2503 = vunpack.c.h.b16 %v556
    %v2504 = vunpack.c.l.b16 %v557
    %v2505 = vunpack.c.h.b16 %v557
    %v2506 = vunpack.c.l.b16 %v558
    %v2507 = vunpack.c.h.b16 %v558
    %v2508 = vunpack.c.l.b16 %v559
    %v2509 = vunpack.c.h.b16 %v559
    %v2510 = vunpack.c.l.b16 %v560
    %v2511 = vunpack.c.h.b16 %v560
    %v2512 = vunpack.c.l.b16 %v561
    %v2513 = vunpack.c.h.b16 %v561
    %v2514 = vunpack.c.l.b16 %v562
    %v2515 = vunpack.c.h.b16 %v562
    %v2516 = vunpack.c.l.b16 %v563
    %v2517 = vunpack.c.h.b16 %v563
    %v2518 = vunpack.c.l.b16 %v564
    %v2519 = vunpack.c.h.b16 %v564
    %v2520 = vunpack.c.l.b16 %v565
    %v2521 = vunpack.c.h.b16 %v565
    %v2522 = vunpack.c.l.b16 %v566
    %v2523 = vunpack.c.h.b16 %v566
    %v2524 = vunpack.c.l.b16 %v567
    %v2525 = vunpack.c.h.b16 %v567
    %v2526 = vunpack.c.l.b16 %v568
    %v2527 = vunpack.c.h.b16 %v568
    %v2528 = vunpack.c.l.b16 %v569
    %v2529 = vunpack.c.h.b16 %v569
    %v2530 = vunpack.c.l.b16 %v570
    %v2531 = vunpack.c.h.b16 %v570
    %v2532 = vunpack.c.l.b16 %v571
    %v2533 = vunpack.c.h.b16 %v571
    %v2534 = vunpack.c.l.b16 %v572
    %v2535 = vunpack.c.h.b16 %v572
    %v2536 = vunpack.c.l.b16 %v573
    %v2537 = vunpack.c.h.b16 %v573
    %v2538 = vunpack.c.l.b16 %v574
    %v2539 = vunpack.c.h.b16 %v574
    %v2540 = vunpack.c.l.b16 %v575
    %v2541 = vunpack.c.h.b16 %v575
    %v2542 = vunpack.c.l.b16 %v576
    %v2543 = vunpack.c.h.b16 %v576
    %v2544 = vunpack.c.l.b16 %v577
    %v2545 = vunpack.c.h.b16 %v577
    %v2546 = vunpack.c.l.b16 %v578
    %v2547 = vunpack.c.h.b16 %v578
    %v2548 = vunpack.c.l.b16 %v579
    %v2549 = vunpack.c.h.b16 %v579
    %v2550 = vunpack.c.l.b16 %v580
    %v2551 = vunpack.c.h.b16 %v580
    %v2552 = vunpack.c.l.b16 %v581
    %v2553 = vunpack.c.h.b16 %v581
    %v2554 = vunpack.c.l.b16 %v582
    %v2555 = vunpack.c.h.b16 %v582
    %v2556 = vunpack.c.l.b16 %v583
    %v2557 = vunpack.c.h.b16 %v583
    %v2558 = vunpack.c.l.b16 %v584
    %v2559 = vunpack.c.h.b16 %v584
    %v2560 = vunpack.c.l.b16 %v585
    %v2561 = vunpack.c.h.b16 %v585
    %v2562 = vunpack.c.l.b16 %v586
    %v2563 = vunpack.c.h.b16 %v586
    %v2564 = vunpack.c.l.b16 %v587
    %v2565 = vunpack.c.h.b16 %v587
    %v2566 = vunpack.c.l.b16 %v588
    %v2567 = vunpack.c.h.b16 %v588
    %v2568 = vunpack.c.l.b16 %v589
    %v2569 = vunpack.c.h.b16 %v589
    %v2570 = vunpack.c.l.b16 %v590
    %v2571 = vunpack.c.h.b16 %v590
    %v2572 = vunpack.c.l.b16 %v591
    %v2573 = vunpack.c.h.b16 %v591
    %v2574 = vunpack.c.l.b16 %v592
    %v2575 = vunpack.c.h.b16 %v592
    %v2576 = vunpack.c.l.b16 %v593
    %v2577 = vunpack.c.h.b16 %v593
    %v2578 = vunpack.c.l.b16 %v594
    %v2579 = vunpack.c.h.b16 %v594
    %v2580 = vunpack.c.l.b16 %v595
    %v2581 = vunpack.c.h.b16 %v595
    %v2582 = vunpack.c.l.b16 %v596
    %v2583 = vunpack.c.h.b16 %v596
    %v2584 = vunpack.c.l.b16 %v597
    %v2585 = vunpack.c.h.b16 %v597
    %v2586 = vunpack.c.l.b16 %v598
    %v2587 = vunpack.c.h.b16 %v598
    %v2588 = vunpack.c.l.b16 %v599
    %v2589 = vunpack.c.h.b16 %v599
    %v2590 = vunpack.c.l.b16 %v600
    %v2591 = vunpack.c.h.b16 %v600
    %v2592 = vunpack.c.l.b16 %v601
    %v2593 = vunpack.c.h.b16 %v601
    %v2594 = vunpack.c.l.b16 %v602
    %v2595 = vunpack.c.h.b16 %v602
    %v2596 = vunpack.c.l.b16 %v603
    %v2597 = vunpack.c.h.b16 %v603
    %v2598 = vunpack.c.l.b16 %v604
    %v2599 = vunpack.c.h.b16 %v604
    %v2600 = vunpack.c.l.b16 %v605
    %v2601 = vunpack.c.h.b16 %v605
    %v2602 = vunpack.c.l.b16 %v606
    %v2603 = vunpack.c.h.b16 %v606
    %v2604 = vunpack.c.l.b16 %v607
    %v2605 = vunpack.c.h.b16 %v607
    %v2606 = vunpack.c.l.b16 %v608
    %v2607 = vunpack.c.h.b16 %v608
    %v2608 = vunpack.c.l.b16 %v609
    %v2609 = vunpack.c.h.b16 %v609
    %v2610 = vunpack.c.l.b16 %v610
    %v2611 = vunpack.c.h.b16 %v610
    %v2612 = vunpack.c.l.b16 %v611
    %v2613 = vunpack.c.h.b16 %v611
    %v2614 = vunpack.c.l.b16 %v612
    %v2615 = vunpack.c.h.b16 %v612
    %v2616 = vunpack.c.l.b16 %v613
    %v2617 = vunpack.c.h.b16 %v613
    %v2618 = vunpack.c.l.b16 %v614
    %v2619 = vunpack.c.h.b16 %v614
    %v2620 = vunpack.c.l.b16 %v615
    %v2621 = vunpack.c.h.b16 %v615
    %v2622 = vunpack.c.l.b16 %v616
    %v2623 = vunpack.c.h.b16 %v616
    %v2624 = vunpack.c.l.b16 %v617
    %v2625 = vunpack.c.h.b16 %v617
    %v2626 = vunpack.c.l.b16 %v618
    %v2627 = vunpack.c.h.b16 %v618
    %v2628 = vunpack.c.l.b16 %v619
    %v2629 = vunpack.c.h.b16 %v619
    %v2630 = vunpack.c.l.b16 %v620
    %v2631 = vunpack.c.h.b16 %v620
    %v2632 = vunpack.c.l.b16 %v621
    %v2633 = vunpack.c.h.b16 %v621
    %v2634 = vunpack.c.l.b16 %v622
    %v2635 = vunpack.c.h.b16 %v622
    %v2636 = vunpack.c.l.b16 %v623
    %v2637 = vunpack.c.h.b16 %v623
    %v2638 = vunpack.c.l.b16 %v624
    %v2639 = vunpack.c.h.b16 %v624
    %v2640 = vunpack.c.l.b16 %v625
    %v2641 = vunpack.c.h.b16 %v625
    %v2642 = vunpack.c.l.b16 %v626
    %v2643 = vunpack.c.h.b16 %v626
    %v2644 = vunpack.c.l.b16 %v627
    %v2645 = vunpack.c.h.b16 %v627
    %v2646 = vunpack.c.l.b16 %v628
    %v2647 = vunpack.c.h.b16 %v628
    %v2648 = vunpack.c.l.b16 %v629
    %v2649 = vunpack.c.h.b16 %v629
    %v2650 = vunpack.c.l.b16 %v630
    %v2651 = vunpack.c.h.b16 %v630
    %v2652 = vunpack.c.l.b16 %v631
    %v2653 = vunpack.c.h.b16 %v631
    %v2654 = vunpack.c.l.b16 %v632
    %v2655 = vunpack.c.h.b16 %v632
    %v2656 = vunpack.c.l.b16 %v633
    %v2657 = vunpack.c.h.b16 %v633
    %v2658 = vunpack.c.l.b16 %v634
    %v2659 = vunpack.c.h.b16 %v634
    %v2660 = vunpack.c.l.b16 %v635
    %v2661 = vunpack.c.h.b16 %v635
    %v2662 = vunpack.c.l.b16 %v636
    %v2663 = vunpack.c.h.b16 %v636
    %v2664 = vunpack.c.l.b16 %v637
    %v2665 = vunpack.c.h.b16 %v637
    %v2666 = vunpack.c.l.b16 %v638
    %v2667 = vunpack.c.h.b16 %v638
    %v2668 = vunpack.c.l.b16 %v639
    %v2669 = vunpack.c.h.b16 %v639
    %v2670 = vunpack.c.l.b16 %v640
    %v2671 = vunpack.c.h.b16 %v640
    %v2672 = vunpack.c.l.b16 %v641
    %v2673 = vunpack.c.h.b16 %v641
    %v2674 = vunpack.c.l.b16 %v642
    %v2675 = vunpack.c.h.b16 %v642
    %v2676 = vunpack.c.l.b16 %v643
    %v2677 = vunpack.c.h.b16 %v643
    %v2678 = vunpack.c.l.b16 %v644
    %v2679 = vunpack.c.h.b16 %v644
    %v2680 = vunpack.c.l.b16 %v645
    %v2681 = vunpack.c.h.b16 %v645
    %v2682 = vunpack.c.l.b16 %v646
    %v2683 = vunpack.c.h.b16 %v646
    %v2684 = vunpack.c.l.b16 %v647
    %v2685 = vunpack.c.h.b16 %v647
    %v2686 = vunpack.c.l.b16 %v648
    %v2687 = vunpack.c.h.b16 %v648
    %v2688 = vunpack.c.l.b16 %v649
    %v2689 = vunpack.c.h.b16 %v649
    %v2690 = vunpack.c.l.b16 %v650
    %v2691 = vunpack.c.h.b16 %v650
    %v2692 = vunpack.c.l.b16 %v651
    %v2693 = vunpack.c.h.b16 %v651
    %v2694 = vunpack.c.l.b16 %v652
    %v2695 = vunpack.c.h.b16 %v652
    %v2696 = vunpack.c.l.b16 %v653
    %v2697 = vunpack.c.h.b16 %v653
    %v2698 = vunpack.c.l.b16 %v654
    %v2699 = vunpack.c.h.b16 %v654
    %v2700 = vunpack.c.l.b16 %v655
    %v2701 = vunpack.c.h.b16 %v655
    %v2702 = vunpack.c.l.b16 %v656
    %v2703 = vunpack.c.h.b16 %v656
    %v2704 = vunpack.c.l.b16 %v657
    %v2705 = vunpack.c.h.b16 %v657
    %v2706 = vunpack.c.l.b16 %v658
    %v2707 = vunpack.c.h.b16 %v658
    %v2708 = vunpack.c.l.b16 %v659
    %v2709 = vunpack.c.h.b16 %v659
    %v2710 = vunpack.c.l.b16 %v660
    %v2711 = vunpack.c.h.b16 %v660
    %v2712 = vunpack.c.l.b16 %v661
    %v2713 = vunpack.c.h.b16 %v661
    %v2714 = vunpack.c.l.b16 %v662
    %v2715 = vunpack.c.h.b16 %v662
    %v2716 = vunpack.c.l.b16 %v663
    %v2717 = vunpack.c.h.b16 %v663
    %v2718 = vunpack.c.l.b16 %v664
    %v2719 = vunpack.c.h.b16 %v664
    %v2720 = vunpack.c.l.b16 %v665
    %v2721 = vunpack.c.h.b16 %v665
    %v2722 = vunpack.c.l.b16 %v666
    %v2723 = vunpack.c.h.b16 %v666
    %v2724 = vunpack.c.l.b16 %v667
    %v2725 = vunpack.c.h.b16 %v667
    %v2726 = vunpack.c.l.b16 %v668
    %v2727 = vunpack.c.h.b16 %v668
    %v2728 = vunpack.c.l.b16 %v669
    %v2729 = vunpack.c.h.b16 %v669
    %v2730 = vunpack.c.l.b16 %v670
    %v2731 = vunpack.c.h.b16 %v670
    %v2732 = vunpack.c.l.b16 %v671
    %v2733 = vunpack.c.h.b16 %v671
    %v2734 = vunpack.c.l.b16 %v672
    %v2735 = vunpack.c.h.b16 %v672
    %v2736 = vunpack.c.l.b16 %v673
    %v2737 = vunpack.c.h.b16 %v673
    %v2738 = vunpack.c.l.b16 %v674
    %v2739 = vunpack.c.h.b16 %v674
    %v2740 = vunpack.c.l.b16 %v675
    %v2741 = vunpack.c.h.b16 %v675
    %v2742 = vunpack.c.l.b16 %v676
    %v2743 = vunpack.c.h.b16 %v676
    %v2744 = vunpack.c.l.b16 %v677
    %v2745 = vunpack.c.h.b16 %v677
    %v2746 = vunpack.c.l.b16 %v678
    %v2747 = vunpack.c.h.b16 %v678
    %v2748 = vunpack.c.l.b16 %v679
    %v2749 = vunpack.c.h.b16 %v679
    %v2750 = vunpack.c.l.b16 %v680
    %v2751 = vunpack.c.h.b16 %v680
    %v2752 = vunpack.c.l.b16 %v681
    %v2753 = vunpack.c.h.b16 %v681
    %v2754 = vunpack.c.l.b16 %v682
    %v2755 = vunpack.c.h.b16 %v682
    %v2756 = vunpack.c.l.b16 %v683
    %v2757 = vunpack.c.h.b16 %v683
    %v2758 = vunpack.c.l.b16 %v684
    %v2759 = vunpack.c.h.b16 %v684
    %v2760 = vunpack.c.l.b16 %v685
    %v2761 = vunpack.c.h.b16 %v685
    %v2762 = vunpack.c.l.b16 %v686
    %v2763 = vunpack.c.h.b16 %v686
    %v2764 = vunpack.c.l.b16 %v687
    %v2765 = vunpack.c.h.b16 %v687
    %v2766 = vunpack.c.l.b16 %v688
    %v2767 = vunpack.c.h.b16 %v688
    %v2768 = vunpack.c.l.b16 %v689
    %v2769 = vunpack.c.h.b16 %v689
    %v2770 = vunpack.c.l.b16 %v690
    %v2771 = vunpack.c.h.b16 %v690
    %v2772 = vunpack.c.l.b16 %v691
    %v2773 = vunpack.c.h.b16 %v691
    %v2774 = vunpack.c.l.b16 %v692
    %v2775 = vunpack.c.h.b16 %v692
    %v2776 = vunpack.c.l.b16 %v693
    %v2777 = vunpack.c.h.b16 %v693
    %v2778 = vunpack.c.l.b16 %v694
    %v2779 = vunpack.c.h.b16 %v694
    %v2780 = vunpack.c.l.b16 %v695
    %v2781 = vunpack.c.h.b16 %v695
    %v2782 = vunpack.c.l.b16 %v696
    %v2783 = vunpack.c.h.b16 %v696
    %v2784 = vunpack.c.l.b16 %v697
    %v2785 = vunpack.c.h.b16 %v697
    %v2786 = vunpack.c.l.b16 %v698
    %v2787 = vunpack.c.h.b16 %v698
    %v2788 = vunpack.c.l.b16 %v699
    %v2789 = vunpack.c.h.b16 %v699
    %v2790 = vunpack.c.l.b16 %v700
    %v2791 = vunpack.c.h.b16 %v700
    %v2792 = vunpack.c.l.b16 %v701
    %v2793 = vunpack.c.h.b16 %v701
    %v2794 = vunpack.c.l.b16 %v702
    %v2795 = vunpack.c.h.b16 %v702
    %v2796 = vunpack.c.l.b16 %v703
    %v2797 = vunpack.c.h.b16 %v703
    %v2798 = vunpack.c.l.b16 %v704
    %v2799 = vunpack.c.h.b16 %v704
    %v2800 = vunpack.c.l.b16 %v705
    %v2801 = vunpack.c.h.b16 %v705
    %v2802 = vunpack.c.l.b16 %v706
    %v2803 = vunpack.c.h.b16 %v706
    %v2804 = vunpack.c.l.b16 %v707
    %v2805 = vunpack.c.h.b16 %v707
    %v2806 = vunpack.c.l.b16 %v708
    %v2807 = vunpack.c.h.b16 %v708
    %v2808 = vunpack.c.l.b16 %v709
    %v2809 = vunpack.c.h.b16 %v709
    %v2810 = vunpack.c.l.b16 %v710
    %v2811 = vunpack.c.h.b16 %v710
    %v2812 = vunpack.c.l.b16 %v711
    %v2813 = vunpack.c.h.b16 %v711
    %v2814 = vunpack.c.l.b16 %v712
    %v2815 = vunpack.c.h.b16 %v712
    %v2816 = vunpack.c.l.b16 %v713
    %v2817 = vunpack.c.h.b16 %v713
    %v2818 = vunpack.c.l.b16 %v714
    %v2819 = vunpack.c.h.b16 %v714
    %v2820 = vunpack.c.l.b16 %v715
    %v2821 = vunpack.c.h.b16 %v715
    %v2822 = vunpack.c.l.b16 %v716
    %v2823 = vunpack.c.h.b16 %v716
    %v2824 = vunpack.c.l.b16 %v717
    %v2825 = vunpack.c.h.b16 %v717
    %v2826 = vunpack.c.l.b16 %v718
    %v2827 = vunpack.c.h.b16 %v718
    %v2828 = vunpack.c.l.b16 %v719
    %v2829 = vunpack.c.h.b16 %v719
    %v2830 = vunpack.c.l.b16 %v720
    %v2831 = vunpack.c.h.b16 %v720
    %v2832 = vunpack.c.l.b16 %v721
    %v2833 = vunpack.c.h.b16 %v721
    %v2834 = vunpack.c.l.b16 %v722
    %v2835 = vunpack.c.h.b16 %v722
    %v2836 = vunpack.c.l.b16 %v723
    %v2837 = vunpack.c.h.b16 %v723
    %v2838 = vunpack.c.l.b16 %v724
    %v2839 = vunpack.c.h.b16 %v724
    %v2840 = vunpack.c.l.b16 %v725
    %v2841 = vunpack.c.h.b16 %v725
    %v2842 = vunpack.c.l.b16 %v726
    %v2843 = vunpack.c.h.b16 %v726
    %v2844 = vunpack.c.l.b16 %v727
    %v2845 = vunpack.c.h.b16 %v727
    %v2846 = vunpack.c.l.b16 %v728
    %v2847 = vunpack.c.h.b16 %v728
    %v2848 = vunpack.c.l.b16 %v729
    %v2849 = vunpack.c.h.b16 %v729
    %v2850 = vunpack.c.l.b16 %v730
    %v2851 = vunpack.c.h.b16 %v730
    %v2852 = vunpack.c.l.b16 %v731
    %v2853 = vunpack.c.h.b16 %v731
    %v2854 = vunpack.c.l.b16 %v732
    %v2855 = vunpack.c.h.b16 %v732
    %v2856 = vunpack.c.l.b16 %v733
    %v2857 = vunpack.c.h.b16 %v733
    %v2858 = vunpack.c.l.b16 %v734
    %v2859 = vunpack.c.h.b16 %v734
    %v2860 = vunpack.c.l.b16 %v735
    %v2861 = vunpack.c.h.b16 %v735
    %v2862 = vunpack.c.l.b16 %v736
    %v2863 = vunpack.c.h.b16 %v736
    %v2864 = vunpack.c.l.b16 %v737
    %v2865 = vunpack.c.h.b16 %v737
    %v2866 = vunpack.c.l.b16 %v738
    %v2867 = vunpack.c.h.b16 %v738
    %v2868 = vunpack.c.l.b16 %v739
    %v2869 = vunpack.c.h.b16 %v739
    %v2870 = vunpack.c.l.b16 %v740
    %v2871 = vunpack.c.h.b16 %v740
    %v2872 = vunpack.c.l.b16 %v741
    %v2873 = vunpack.c.h.b16 %v741
    %v2874 = vunpack.c.l.b16 %v742
    %v2875 = vunpack.c.h.b16 %v742
    %v2876 = vunpack.c.l.b16 %v743
    %v2877 = vunpack.c.h.b16 %v743
    %v2878 = vunpack.c.l.b16 %v744
    %v2879 = vunpack.c.h.b16 %v744
    %v2880 = vunpack.c.l.b16 %v745
    %v2881 = vunpack.c.h.b16 %v745
    %v2882 = vunpack.c.l.b16 %v746
    %v2883 = vunpack.c.h.b16 %v746
    %v2884 = vunpack.c.l.b16 %v747
    %v2885 = vunpack.c.h.b16 %v747
    %v2886 = vunpack.c.l.b16 %v748
    %v2887 = vunpack.c.h.b16 %v748
    %v2888 = vunpack.c.l.b16 %v749
    %v2889 = vunpack.c.h.b16 %v749
    %v2890 = vunpack.c.l.b16 %v750
    %v2891 = vunpack.c.h.b16 %v750
    %v2892 = vunpack.c.l.b16 %v751
    %v2893 = vunpack.c.h.b16 %v751
    %v2894 = vunpack.c.l.b16 %v752
    %v2895 = vunpack.c.h.b16 %v752
    %v2896 = vunpack.c.l.b16 %v753
    %v2897 = vunpack.c.h.b16 %v753
    %v2898 = vunpack.c.l.b16 %v754
    %v2899 = vunpack.c.h.b16 %v754
    %v2900 = vunpack.c.l.b16 %v755
    %v2901 = vunpack.c.h.b16 %v755
    %v2902 = vunpack.c.l.b16 %v756
    %v2903 = vunpack.c.h.b16 %v756
    %v2904 = vunpack.c.l.b16 %v757
    %v2905 = vunpack.c.h.b16 %v757
    %v2906 = vunpack.c.l.b16 %v758
    %v2907 = vunpack.c.h.b16 %v758
    %v2908 = vunpack.c.l.b16 %v759
    %v2909 = vunpack.c.h.b16 %v759
    %v2910 = vunpack.c.l.b16 %v760
    %v2911 = vunpack.c.h.b16 %v760
    %v2912 = vunpack.c.l.b16 %v761
    %v2913 = vunpack.c.h.b16 %v761
    %v2914 = vunpack.c.l.b16 %v762
    %v2915 = vunpack.c.h.b16 %v762
    %v2916 = vunpack.c.l.b16 %v763
    %v2917 = vunpack.c.h.b16 %v763
    %v2918 = vunpack.c.l.b16 %v764
    %v2919 = vunpack.c.h.b16 %v764
    %v2920 = vunpack.c.l.b16 %v765
    %v2921 = vunpack.c.h.b16 %v765
    %v2922 = vunpack.c.l.b16 %v766
    %v2923 = vunpack.c.h.b16 %v766
    %v2924 = vunpack.c.l.b16 %v767
    %v2925 = vunpack.c.h.b16 %v767
    %v2926 = vunpack.c.l.b16 %v768
    %v2927 = vunpack.c.h.b16 %v768
    %v2928 = vunpack.c.l.b16 %v769
    %v2929 = vunpack.c.h.b16 %v769
    %v2930 = vunpack.c.l.b16 %v770
    %v2931 = vunpack.c.h.b16 %v770
    %v2932 = vunpack.c.l.b16 %v771
    %v2933 = vunpack.c.h.b16 %v771
    %v2934 = vunpack.c.l.b16 %v772
    %v2935 = vunpack.c.h.b16 %v772
    %v2936 = vunpack.c.l.b16 %v773
    %v2937 = vunpack.c.h.b16 %v773
    %v2938 = vunpack.c.l.b16 %v774
    %v2939 = vunpack.c.h.b16 %v774
    %v2940 = vunpack.c.l.b16 %v775
    %v2941 = vunpack.c.h.b16 %v775
    %v2942 = vunpack.c.l.b16 %v776
    %v2943 = vunpack.c.h.b16 %v776
    %v2944 = vunpack.c.l.b16 %v777
    %v2945 = vunpack.c.h.b16 %v777
    %v2946 = vunpack.c.l.b16 %v778
    %v2947 = vunpack.c.h.b16 %v778
    %v2948 = vunpack.c.l.b16 %v779
    %v2949 = vunpack.c.h.b16 %v779
    %v2950 = vunpack.c.l.b16 %v780
    %v2951 = vunpack.c.h.b16 %v780
    %v2952 = vunpack.c.l.b16 %v781
    %v2953 = vunpack.c.h.b16 %v781
    %v2954 = vunpack.c.l.b16 %v782
    %v2955 = vunpack.c.h.b16 %v782
    %v2956 = vunpack.c.l.b16 %v783
    %v2957 = vunpack.c.h.b16 %v783
    %v2958 = vunpack.c.l.b16 %v784
    %v2959 = vunpack.c.h.b16 %v784
    %v2960 = vunpack.c.l.b16 %v785
    %v2961 = vunpack.c.h.b16 %v785
    %v2962 = vunpack.c.l.b16 %v786
    %v2963 = vunpack.c.h.b16 %v786
    %v2964 = vunpack.c.l.b16 %v787
    %v2965 = vunpack.c.h.b16 %v787
    %v2966 = vunpack.c.l.b16 %v788
    %v2967 = vunpack.c.h.b16 %v788
    %v2968 = vunpack.c.l.b16 %v789
    %v2969 = vunpack.c.h.b16 %v789
    %v2970 = vunpack.c.l.b16 %v790
    %v2971 = vunpack.c.h.b16 %v790
    %v2972 = vunpack.c.l.b16 %v791
    %v2973 = vunpack.c.h.b16 %v791
    %v2974 = vunpack.c.l.b16 %v792
    %v2975 = vunpack.c.h.b16 %v792
    %v2976 = vunpack.c.l.b16 %v793
    %v2977 = vunpack.c.h.b16 %v793
    %v2978 = vunpack.c.l.b16 %v794
    %v2979 = vunpack.c.h.b16 %v794
    %v2980 = vunpack.c.l.b16 %v795
    %v2981 = vunpack.c.h.b16 %v795
    %v2982 = vunpack.c.l.b16 %v796
    %v2983 = vunpack.c.h.b16 %v796
    %v2984 = vunpack.c.l.b16 %v797
    %v2985 = vunpack.c.h.b16 %v797
    %v2986 = vunpack.c.l.b16 %v798
    %v2987 = vunpack.c.h.b16 %v798
    %v2988 = vunpack.c.l.b16 %v799
    %v2989 = vunpack.c.h.b16 %v799
    %v2990 = vunpack.c.l.b16 %v800
    %v2991 = vunpack.c.h.b16 %v800
    %v2992 = vunpack.c.l.b16 %v801
    %v2993 = vunpack.c.h.b16 %v801
    %v2994 = vunpack.c.l.b16 %v802
    %v2995 = vunpack.c.h.b16 %v802
    %v2996 = vunpack.c.l.b16 %v803
    %v2997 = vunpack.c.h.b16 %v803
    %v2998 = vunpack.c.l.b16 %v804
    %v2999 = vunpack.c.h.b16 %v804
    %v3000 = vunpack.c.l.b16 %v805
    %v3001 = vunpack.c.h.b16 %v805
    %v3002 = vunpack.c.l.b16 %v806
    %v3003 = vunpack.c.h.b16 %v806
    %v3004 = vunpack.c.l.b16 %v807
    %v3005 = vunpack.c.h.b16 %v807
    %v3006 = vunpack.c.l.b16 %v808
    %v3007 = vunpack.c.h.b16 %v808
    %v3008 = vunpack.c.l.b16 %v809
    %v3009 = vunpack.c.h.b16 %v809
    %v3010 = vunpack.c.l.b16 %v810
    %v3011 = vunpack.c.h.b16 %v810
    %v3012 = vunpack.c.l.b16 %v811
    %v3013 = vunpack.c.h.b16 %v811
    %v3014 = vunpack.c.l.b16 %v812
    %v3015 = vunpack.c.h.b16 %v812
    %v3016 = vunpack.c.l.b16 %v813
    %v3017 = vunpack.c.h.b16 %v813
    %v3018 = vunpack.c.l.b16 %v814
    %v3019 = vunpack.c.h.b16 %v814
    %v3020 = vunpack.c.l.b16 %v815
    %v3021 = vunpack.c.h.b16 %v815
    %v3022 = vunpack.c.l.b16 %v816
    %v3023 = vunpack.c.h.b16 %v816
    %v3024 = vunpack.c.l.b16 %v817
    %v3025 = vunpack.c.h.b16 %v817
    %v3026 = vunpack.c.l.b16 %v818
    %v3027 = vunpack.c.h.b16 %v818
    %v3028 = vunpack.c.l.b16 %v819
    %v3029 = vunpack.c.h.b16 %v819
    %v3030 = vunpack.c.l.b16 %v820
    %v3031 = vunpack.c.h.b16 %v820
    %v3032 = vunpack.c.l.b16 %v821
    %v3033 = vunpack.c.h.b16 %v821
    %v3034 = vunpack.c.l.b16 %v822
    %v3035 = vunpack.c.h.b16 %v822
    %v3036 = vunpack.c.l.b16 %v823
    %v3037 = vunpack.c.h.b16 %v823
    %v3038 = vunpack.c.l.b16 %v824
    %v3039 = vunpack.c.h.b16 %v824
    %v3040 = vunpack.c.l.b16 %v825
    %v3041 = vunpack.c.h.b16 %v825
    %v3042 = vunpack.c.l.b16 %v826
    %v3043 = vunpack.c.h.b16 %v826
    %v3044 = vunpack.c.l.b16 %v827
    %v3045 = vunpack.c.h.b16 %v827
    %v3046 = vunpack.c.l.b16 %v828
    %v3047 = vunpack.c.h.b16 %v828
    %v3048 = vunpack.c.l.b16 %v829
    %v3049 = vunpack.c.h.b16 %v829
    %v3050 = vunpack.c.l.b16 %v830
    %v3051 = vunpack.c.h.b16 %v830
    %v3052 = vunpack.c.l.b16 %v831
    %v3053 = vunpack.c.h.b16 %v831
    %v3054 = vunpack.c.l.b16 %v832
    %v3055 = vunpack.c.h.b16 %v832
    %v3056 = vunpack.c.l.b16 %v833
    %v3057 = vunpack.c.h.b16 %v833
    %v3058 = vunpack.c.l.b16 %v834
    %v3059 = vunpack.c.h.b16 %v834
    %v3060 = vunpack.c.l.b16 %v835
    %v3061 = vunpack.c.h.b16 %v835
    %v3062 = vunpack.c.l.b16 %v836
    %v3063 = vunpack.c.h.b16 %v836
    %v3064 = vunpack.c.l.b16 %v837
    %v3065 = vunpack.c.h.b16 %v837
    %v3066 = vunpack.c.l.b16 %v838
    %v3067 = vunpack.c.h.b16 %v838
    %v3068 = vunpack.c.l.b16 %v839
    %v3069 = vunpack.c.h.b16 %v839
    %v3070 = vunpack.c.l.b16 %v840
    %v3071 = vunpack.c.h.b16 %v840
    %v3072 = vunpack.c.l.b16 %v841
    %v3073 = vunpack.c.h.b16 %v841
    %v3074 = vunpack.c.l.b16 %v842
    %v3075 = vunpack.c.h.b16 %v842
    %v3076 = vunpack.c.l.b16 %v843
    %v3077 = vunpack.c.h.b16 %v843
    %v3078 = vunpack.c.l.b16 %v844
    %v3079 = vunpack.c.h.b16 %v844
    %v3080 = vunpack.c.l.b16 %v845
    %v3081 = vunpack.c.h.b16 %v845
    %v3082 = vunpack.c.l.b16 %v846
    %v3083 = vunpack.c.h.b16 %v846
    %v3084 = vunpack.c.l.b16 %v847
    %v3085 = vunpack.c.h.b16 %v847
    %v3086 = vunpack.c.l.b16 %v848
    %v3087 = vunpack.c.h.b16 %v848
    %v3088 = vunpack.c.l.b16 %v849
    %v3089 = vunpack.c.h.b16 %v849
    %v3090 = vunpack.c.l.b16 %v850
    %v3091 = vunpack.c.h.b16 %v850
    %v3092 = vunpack.c.l.b16 %v851
    %v3093 = vunpack.c.h.b16 %v851
    %v3094 = vunpack.c.l.b16 %v852
    %v3095 = vunpack.c.h.b16 %v852
    %v3096 = vunpack.c.l.b16 %v853
    %v3097 = vunpack.c.h.b16 %v853
    %v3098 = vunpack.c.l.b16 %v854
    %v3099 = vunpack.c.h.b16 %v854
    %v3100 = vunpack.c.l.b16 %v855
    %v3101 = vunpack.c.h.b16 %v855
    %v3102 = vunpack.c.l.b16 %v856
    %v3103 = vunpack.c.h.b16 %v856
    %v3104 = vunpack.c.l.b16 %v857
    %v3105 = vunpack.c.h.b16 %v857
    %v3106 = vunpack.c.l.b16 %v858
    %v3107 = vunpack.c.h.b16 %v858
    %v3108 = vunpack.c.l.b16 %v859
    %v3109 = vunpack.c.h.b16 %v859
    %v3110 = vunpack.c.l.b16 %v860
    %v3111 = vunpack.c.h.b16 %v860
    %v3112 = vunpack.c.l.b16 %v861
    %v3113 = vunpack.c.h.b16 %v861
    %v3114 = vunpack.c.l.b16 %v862
    %v3115 = vunpack.c.h.b16 %v862
    %v3116 = vunpack.c.l.b16 %v863
    %v3117 = vunpack.c.h.b16 %v863
    %v3118 = vunpack.c.l.b16 %v864
    %v3119 = vunpack.c.h.b16 %v864
    %v3120 = vunpack.c.l.b16 %v865
    %v3121 = vunpack.c.h.b16 %v865
    %v3122 = vunpack.c.l.b16 %v866
    %v3123 = vunpack.c.h.b16 %v866
    %v3124 = vunpack.c.l.b16 %v867
    %v3125 = vunpack.c.h.b16 %v867
    %v3126 = vunpack.c.l.b16 %v868
    %v3127 = vunpack.c.h.b16 %v868
    %v3128 = vunpack.c.l.b16 %v869
    %v3129 = vunpack.c.h.b16 %v869
    %v3130 = vunpack.c.l.b16 %v870
    %v3131 = vunpack.c.h.b16 %v870
    %v3132 = vunpack.c.l.b16 %v871
    %v3133 = vunpack.c.h.b16 %v871
    %v3134 = vunpack.c.l.b16 %v872
    %v3135 = vunpack.c.h.b16 %v872
    %v3136 = vunpack.c.l.b16 %v873
    %v3137 = vunpack.c.h.b16 %v873
    %v3138 = vunpack.c.l.b16 %v874
    %v3139 = vunpack.c.h.b16 %v874
    %v3140 = vunpack.c.l.b16 %v875
    %v3141 = vunpack.c.h.b16 %v875
    %v3142 = vunpack.c.l.b16 %v876
    %v3143 = vunpack.c.h.b16 %v876
    %v3144 = vunpack.c.l.b16 %v877
    %v3145 = vunpack.c.h.b16 %v877
    %v3146 = vunpack.c.l.b16 %v878
    %v3147 = vunpack.c.h.b16 %v878
    %v3148 = vunpack.c.l.b16 %v879
    %v3149 = vunpack.c.h.b16 %v879
    %v3150 = vunpack.c.l.b16 %v880
    %v3151 = vunpack.c.h.b16 %v880
    %v3152 = vunpack.c.l.b16 %v881
    %v3153 = vunpack.c.h.b16 %v881
    %v3154 = vunpack.c.l.b16 %v882
    %v3155 = vunpack.c.h.b16 %v882
    %v3156 = vunpack.c.l.b16 %v883
    %v3157 = vunpack.c.h.b16 %v883
    %v3158 = vunpack.c.l.b16 %v884
    %v3159 = vunpack.c.h.b16 %v884
    %v3160 = vunpack.c.l.b16 %v885
    %v3161 = vunpack.c.h.b16 %v885
    %v3162 = vunpack.c.l.b16 %v886
    %v3163 = vunpack.c.h.b16 %v886
    %v3164 = vunpack.c.l.b16 %v887
    %v3165 = vunpack.c.h.b16 %v887
    %v3166 = vunpack.c.l.b16 %v888
    %v3167 = vunpack.c.h.b16 %v888
    %v3168 = vunpack.c.l.b16 %v889
    %v3169 = vunpack.c.h.b16 %v889
    %v3170 = vunpack.c.l.b16 %v890
    %v3171 = vunpack.c.h.b16 %v890
    %v3172 = vunpack.c.l.b16 %v891
    %v3173 = vunpack.c.h.b16 %v891
    %v3174 = vunpack.c.l.b16 %v892
    %v3175 = vunpack.c.h.b16 %v892
    %v3176 = vunpack.c.l.b16 %v893
    %v3177 = vunpack.c.h.b16 %v893
    %v3178 = vunpack.c.l.b16 %v894
    %v3179 = vunpack.c.h.b16 %v894
    %v3180 = vunpack.c.l.b16 %v895
    %v3181 = vunpack.c.h.b16 %v895
    %v3182 = vunpack.c.l.b16 %v896
    %v3183 = vunpack.c.h.b16 %v896
    %v3184 = vunpack.c.l.b16 %v897
    %v3185 = vunpack.c.h.b16 %v897
    %v3186 = vunpack.c.l.b16 %v898
    %v3187 = vunpack.c.h.b16 %v898
    %v3188 = vunpack.c.l.b16 %v899
    %v3189 = vunpack.c.h.b16 %v899
    %v3190 = vunpack.c.l.b16 %v900
    %v3191 = vunpack.c.h.b16 %v900
    %v3192 = vunpack.c.l.b16 %v901
    %v3193 = vunpack.c.h.b16 %v901
    %v3194 = vunpack.c.l.b16 %v902
    %v3195 = vunpack.c.h.b16 %v902
    %v3196 = vunpack.c.l.b16 %v903
    %v3197 = vunpack.c.h.b16 %v903
    %v3198 = vunpack.c.l.b16 %v904
    %v3199 = vunpack.c.h.b16 %v904
    %v3200 = vunpack.c.l.b16 %v905
    %v3201 = vunpack.c.h.b16 %v905
    %v3202 = vunpack.c.l.b16 %v906
    %v3203 = vunpack.c.h.b16 %v906
    %v3204 = vunpack.c.l.b16 %v907
    %v3205 = vunpack.c.h.b16 %v907
    %v3206 = vunpack.c.l.b16 %v908
    %v3207 = vunpack.c.h.b16 %v908
    %v3208 = vunpack.c.l.b16 %v909
    %v3209 = vunpack.c.h.b16 %v909
    %v3210 = vunpack.c.l.b16 %v910
    %v3211 = vunpack.c.h.b16 %v910
    %v3212 = vunpack.c.l.b16 %v911
    %v3213 = vunpack.c.h.b16 %v911
    %v3214 = vunpack.c.l.b16 %v912
    %v3215 = vunpack.c.h.b16 %v912
    %v3216 = vunpack.c.l.b16 %v913
    %v3217 = vunpack.c.h.b16 %v913
    %v3218 = vunpack.c.l.b16 %v914
    %v3219 = vunpack.c.h.b16 %v914
    %v3220 = vunpack.c.l.b16 %v915
    %v3221 = vunpack.c.h.b16 %v915
    %v3222 = vunpack.c.l.b16 %v916
    %v3223 = vunpack.c.h.b16 %v916
    %v3224 = vunpack.c.l.b16 %v917
    %v3225 = vunpack.c.h.b16 %v917
    %v3226 = vunpack.c.l.b16 %v918
    %v3227 = vunpack.c.h.b16 %v918
    %v3228 = vunpack.c.l.b16 %v919
    %v3229 = vunpack.c.h.b16 %v919
    %v3230 = vunpack.c.l.b16 %v920
    %v3231 = vunpack.c.h.b16 %v920
    %v3232 = vunpack.c.l.b16 %v921
    %v3233 = vunpack.c.h.b16 %v921
    %v3234 = vunpack.c.l.b16 %v922
    %v3235 = vunpack.c.h.b16 %v922
    %v3236 = vunpack.c.l.b16 %v923
    %v3237 = vunpack.c.h.b16 %v923
    %v3238 = vunpack.c.l.b16 %v924
    %v3239 = vunpack.c.h.b16 %v924
    %v3240 = vunpack.c.l.b16 %v925
    %v3241 = vunpack.c.h.b16 %v925
    %v3242 = vunpack.c.l.b16 %v926
    %v3243 = vunpack.c.h.b16 %v926
    %v3244 = vunpack.c.l.b16 %v927
    %v3245 = vunpack.c.h.b16 %v927
    %v3246 = vunpack.c.l.b16 %v928
    %v3247 = vunpack.c.h.b16 %v928
    %v3248 = vunpack.c.l.b16 %v929
    %v3249 = vunpack.c.h.b16 %v929
    %v3250 = vunpack.c.l.b16 %v930
    %v3251 = vunpack.c.h.b16 %v930
    %v3252 = vunpack.c.l.b16 %v931
    %v3253 = vunpack.c.h.b16 %v931
    %v3254 = vunpack.c.l.b16 %v932
    %v3255 = vunpack.c.h.b16 %v932
    %v3256 = vunpack.c.l.b16 %v933
    %v3257 = vunpack.c.h.b16 %v933
    %v3258 = vunpack.c.l.b16 %v934
    %v3259 = vunpack.c.h.b16 %v934
    %v3260 = vunpack.c.l.b16 %v935
    %v3261 = vunpack.c.h.b16 %v935
    %v3262 = vunpack.c.l.b16 %v936
    %v3263 = vunpack.c.h.b16 %v936
    %v3264 = vunpack.c.l.b16 %v937
    %v3265 = vunpack.c.h.b16 %v937
    %v3266 = vunpack.c.l.b16 %v938
    %v3267 = vunpack.c.h.b16 %v938
    %v3268 = vunpack.c.l.b16 %v939
    %v3269 = vunpack.c.h.b16 %v939
    %v3270 = vunpack.c.l.b16 %v940
    %v3271 = vunpack.c.h.b16 %v940
    %v3272 = vunpack.c.l.b16 %v941
    %v3273 = vunpack.c.h.b16 %v941
    %v3274 = vunpack.c.l.b16 %v942
    %v3275 = vunpack.c.h.b16 %v942
    %v3276 = vunpack.c.l.b16 %v943
    %v3277 = vunpack.c.h.b16 %v943
    %v3278 = vunpack.c.l.b16 %v944
    %v3279 = vunpack.c.h.b16 %v944
    %v3280 = vunpack.c.l.b16 %v945
    %v3281 = vunpack.c.h.b16 %v945
    %v3282 = vpack.c.b16 %v1752, %v1746
    %v3283 = vpack.c.b16 %v1753, %v1747
    %v3284 = vpack.c.b16 %v1754, %v1748
    %v3285 = vpack.c.b16 %v1755, %v1749
    %v3286 = vpack.c.b16 %v1756, %v1750
    %v3287 = vpack.c.b16 %v1757, %v1751
    %v3288 = vpack.c.b16 %v1764, %v1758
    %v3289 = vpack.c.b16 %v1765, %v1759
    %v3290 = vpack.c.b16 %v1766, %v1760
    %v3291 = vpack.c.b16 %v1767, %v1761
    %v3292 = vpack.c.b16 %v1768, %v1762
    %v3293 = vpack.c.b16 %v1769, %v1763
    %v3294 = vpack.c.b16 %v1776, %v1770
    %v3295 = vpack.c.b16 %v1777, %v1771
    %v3296 = vpack.c.b16 %v1778, %v1772
    %v3297 = vpack.c.b16 %v1779, %v1773
    %v3298 = vpack.c.b16 %v1780, %v1774
    %v3299 = vpack.c.b16 %v1781, %v1775
    %v3300 = vpack.c.b16 %v1788, %v1782
    %v3301 = vpack.c.b16 %v1789, %v1783
    %v3302 = vpack.c.b16 %v1790, %v1784
    %v3303 = vpack.c.b16 %v1791, %v1785
    %v3304 = vpack.c.b16 %v1792, %v1786
    %v3305 = vpack.c.b16 %v1793, %v1787
    %v3306 = vpack.c.b16 %v1800, %v1794
    %v3307 = vpack.c.b16 %v1801, %v1795
    %v3308 = vpack.c.b16 %v1802, %v1796
    %v3309 = vpack.c.b16 %v1803, %v1797
    %v3310 = vpack.c.b16 %v1804, %v1798
    %v3311 = vpack.c.b16 %v1805, %v1799
    %v3312 = vpack.c.b16 %v1812, %v1806
    %v3313 = vpack.c.b16 %v1813, %v1807
    %v3314 = vpack.c.b16 %v1814, %v1808
    %v3315 = vpack.c.b16 %v1815, %v1809
    %v3316 = vpack.c.b16 %v1816, %v1810
    %v3317 = vpack.c.b16 %v1817, %v1811
    %v3318 = vpack.c.b16 %v1824, %v1818
    %v3319 = vpack.c.b16 %v1825, %v1819
    %v3320 = vpack.c.b16 %v1826, %v1820
    %v3321 = vpack.c.b16 %v1827, %v1821
    %v3322 = vpack.c.b16 %v1828, %v1822
    %v3323 = vpack.c.b16 %v1829, %v1823
    %v3324 = vpack.c.b16 %v1836, %v1830
    %v3325 = vpack.c.b16 %v1837, %v1831
    %v3326 = vpack.c.b16 %v1838, %v1832
    %v3327 = vpack.c.b16 %v1839, %v1833
    %v3328 = vpack.c.b16 %v1840, %v1834
    %v3329 = vpack.c.b16 %v1841, %v1835
    %v3330 = vpack.c.b16 %v1848, %v1842
    %v3331 = vpack.c.b16 %v1849, %v1843
    %v3332 = vpack.c.b16 %v1850, %v1844
    %v3333 = vpack.c.b16 %v1851, %v1845
    %v3334 = vpack.c.b16 %v1852, %v1846
    %v3335 = vpack.c.b16 %v1853, %v1847
    %v3336 = vpack.c.b16 %v1860, %v1854
    %v3337 = vpack.c.b16 %v1861, %v1855
    %v3338 = vpack.c.b16 %v1862, %v1856
    %v3339 = vpack.c.b16 %v1863, %v1857
    %v3340 = vpack.c.b16 %v1864, %v1858
    %v3341 = vpack.c.b16 %v1865, %v1859
    %v3342 = vpack.c.b16 %v1872, %v1866
    %v3343 = vpack.c.b16 %v1873, %v1867
    %v3344 = vpack.c.b16 %v1874, %v1868
    %v3345 = vpack.c.b16 %v1875, %v1869
    %v3346 = vpack.c.b16 %v1876, %v1870
    %v3347 = vpack.c.b16 %v1877, %v1871
    %v3348 = vpack.c.b16 %v1884, %v1878
    %v3349 = vpack.c.b16 %v1885, %v1879
    %v3350 = vpack.c.b16 %v1886, %v1880
    %v3351 = vpack.c.b16 %v1887, %v1881
    %v3352 = vpack.c.b16 %v1888, %v1882
    %v3353 = vpack.c.b16 %v1889, %v1883
    %v3354 = vpack.c.b16 %v1896, %v1890
    %v3355 = vpack.c.b16 %v1897, %v1891
    %v3356 = vpack.c.b16 %v1898, %v1892
    %v3357 = vpack.c.b16 %v1899, %v1893
    %v3358 = vpack.c.b16 %v1900, %v1894
    %v3359 = vpack.c.b16 %v1901, %v1895
    %v3360 = vpack.c.b16 %v1908, %v1902
    %v3361 = vpack.c.b16 %v1909, %v1903
    %v3362 = vpack.c.b16 %v1910, %v1904
    %v3363 = vpack.c.b16 %v1911, %v1905
    %v3364 = vpack.c.b16 %v1912, %v1906
    %v3365 = vpack.c.b16 %v1913, %v1907
    %v3366 = vpack.c.b16 %v1920, %v1914
    %v3367 = vpack.c.b16 %v1921, %v1915
    %v3368 = vpack.c.b16 %v1922, %v1916
    %v3369 = vpack.c.b16 %v1923, %v1917
    %v3370 = vpack.c.b16 %v1924, %v1918
    %v3371 = vpack.c.b16 %v1925, %v1919
    %v3372 = vpack.c.b16 %v1932, %v1926
    %v3373 = vpack.c.b16 %v1933, %v1927
    %v3374 = vpack.c.b16 %v1934, %v1928
    %v3375 = vpack.c.b16 %v1935, %v1929
    %v3376 = vpack.c.b16 %v1936, %v1930
    %v3377 = vpack.c.b16 %v1937, %v1931
    %v3378 = vpack.c.b16 %v1944, %v1938
    %v3379 = vpack.c.b16 %v1945, %v1939
    %v3380 = vpack.c.b16 %v1946, %v1940
    %v3381 = vpack.c.b16 %v1947, %v1941
    %v3382 = vpack.c.b16 %v1948, %v1942
    %v3383 = vpack.c.b16 %v1949, %v1943
    %v3384 = vpack.c.b16 %v1956, %v1950
    %v3385 = vpack.c.b16 %v1957, %v1951
    %v3386 = vpack.c.b16 %v1958, %v1952
    %v3387 = vpack.c.b16 %v1959, %v1953
    %v3388 = vpack.c.b16 %v1960, %v1954
    %v3389 = vpack.c.b16 %v1961, %v1955
    %v3390 = vpack.c.b16 %v1968, %v1962
    %v3391 = vpack.c.b16 %v1969, %v1963
    %v3392 = vpack.c.b16 %v1970, %v1964
    %v3393 = vpack.c.b16 %v1971, %v1965
    %v3394 = vpack.c.b16 %v1972, %v1966
    %v3395 = vpack.c.b16 %v1973, %v1967
    %v3396 = vpack.c.b16 %v1980, %v1974
    %v3397 = vpack.c.b16 %v1981, %v1975
    %v3398 = vpack.c.b16 %v1982, %v1976
    %v3399 = vpack.c.b16 %v1983, %v1977
    %v3400 = vpack.c.b16 %v1984, %v1978
    %v3401 = vpack.c.b16 %v1985, %v1979
    %v3402 = vpack.c.b16 %v1992, %v1986
    %v3403 = vpack.c.b16 %v1993, %v1987
    %v3404 = vpack.c.b16 %v1994, %v1988
    %v3405 = vpack.c.b16 %v1995, %v1989
    %v3406 = vpack.c.b16 %v1996, %v1990
    %v3407 = vpack.c.b16 %v1997, %v1991
    %v3408 = vpack.c.b16 %v2004, %v1998
    %v3409 = vpack.c.b16 %v2005, %v1999
    %v3410 = vpack.c.b16 %v2006, %v2000
    %v3411 = vpack.c.b16 %v2007, %v2001
    %v3412 = vpack.c.b16 %v2008, %v2002
    %v3413 = vpack.c.b16 %v2009, %v2003
    %v3414 = vpack.c.b16 %v2016, %v2010
    %v3415 = vpack.c.b16 %v2017, %v2011
    %v3416 = vpack.c.b16 %v2018, %v2012
    %v3417 = vpack.c.b16 %v2019, %v2013
    %v3418 = vpack.c.b16 %v2020, %v2014
    %v3419 = vpack.c.b16 %v2021, %v2015
    %v3420 = vpack.c.b16 %v2028, %v2022
    %v3421 = vpack.c.b16 %v2029, %v2023
    %v3422 = vpack.c.b16 %v2030, %v2024
    %v3423 = vpack.c.b16 %v2031, %v2025
    %v3424 = vpack.c.b16 %v2032, %v2026
    %v3425 = vpack.c.b16 %v2033, %v2027
    %v3426 = vpack.c.b16 %v2040, %v2034
    %v3427 = vpack.c.b16 %v2041, %v2035
    %v3428 = vpack.c.b16 %v2042, %v2036
    %v3429 = vpack.c.b16 %v2043, %v2037
    %v3430 = vpack.c.b16 %v2044, %v2038
    %v3431 = vpack.c.b16 %v2045, %v2039
    %v3432 = vpack.c.b16 %v2052, %v2046
    %v3433 = vpack.c.b16 %v2053, %v2047
    %v3434 = vpack.c.b16 %v2054, %v2048
    %v3435 = vpack.c.b16 %v2055, %v2049
    %v3436 = vpack.c.b16 %v2056, %v2050
    %v3437 = vpack.c.b16 %v2057, %v2051
    %v3438 = vpack.c.b16 %v2064, %v2058
    %v3439 = vpack.c.b16 %v2065, %v2059
    %v3440 = vpack.c.b16 %v2066, %v2060
    %v3441 = vpack.c.b16 %v2067, %v2061
    %v3442 = vpack.c.b16 %v2068, %v2062
    %v3443 = vpack.c.b16 %v2069, %v2063
    %v3444 = vpack.c.b16 %v2076, %v2070
    %v3445 = vpack.c.b16 %v2077, %v2071
    %v3446 = vpack.c.b16 %v2078, %v2072
    %v3447 = vpack.c.b16 %v2079, %v2073
    %v3448 = vpack.c.b16 %v2080, %v2074
    %v3449 = vpack.c.b16 %v2081, %v2075
    %v3450 = vpack.c.b16 %v2088, %v2082
    %v3451 = vpack.c.b16 %v2089, %v2083
    %v3452 = vpack.c.b16 %v2090, %v2084
    %v3453 = vpack.c.b16 %v2091, %v2085
    %v3454 = vpack.c.b16 %v2092, %v2086
    %v3455 = vpack.c.b16 %v2093, %v2087
    %v3456 = vpack.c.b16 %v2100, %v2094
    %v3457 = vpack.c.b16 %v2101, %v2095
    %v3458 = vpack.c.b16 %v2102, %v2096
    %v3459 = vpack.c.b16 %v2103, %v2097
    %v3460 = vpack.c.b16 %v2104, %v2098
    %v3461 = vpack.c.b16 %v2105, %v2099
    %v3462 = vpack.c.b16 %v2112, %v2106
    %v3463 = vpack.c.b16 %v2113, %v2107
    %v3464 = vpack.c.b16 %v2114, %v2108
    %v3465 = vpack.c.b16 %v2115, %v2109
    %v3466 = vpack.c.b16 %v2116, %v2110
    %v3467 = vpack.c.b16 %v2117, %v2111
    %v3468 = vpack.c.b16 %v2124, %v2118
    %v3469 = vpack.c.b16 %v2125, %v2119
    %v3470 = vpack.c.b16 %v2126, %v2120
    %v3471 = vpack.c.b16 %v2127, %v2121
    %v3472 = vpack.c.b16 %v2128, %v2122
    %v3473 = vpack.c.b16 %v2129, %v2123
    %v3474 = vpack.c.b16 %v2136, %v2130
    %v3475 = vpack.c.b16 %v2137, %v2131
    %v3476 = vpack.c.b16 %v2138, %v2132
    %v3477 = vpack.c.b16 %v2139, %v2133
    %v3478 = vpack.c.b16 %v2140, %v2134
    %v3479 = vpack.c.b16 %v2141, %v2135
    %v3480 = vpack.c.b16 %v2148, %v2142
    %v3481 = vpack.c.b16 %v2149, %v2143
    %v3482 = vpack.c.b16 %v2150, %v2144
    %v3483 = vpack.c.b16 %v2151, %v2145
    %v3484 = vpack.c.b16 %v2152, %v2146
    %v3485 = vpack.c.b16 %v2153, %v2147
    %v3486 = vpack.c.b16 %v2160, %v2154
    %v3487 = vpack.c.b16 %v2161, %v2155
    %v3488 = vpack.c.b16 %v2162, %v2156
    %v3489 = vpack.c.b16 %v2163, %v2157
    %v3490 = vpack.c.b16 %v2164, %v2158
    %v3491 = vpack.c.b16 %v2165, %v2159
    %v3492 = vpack.c.b16 %v2172, %v2166
    %v3493 = vpack.c.b16 %v2173, %v2167
    %v3494 = vpack.c.b16 %v2174, %v2168
    %v3495 = vpack.c.b16 %v2175, %v2169
    %v3496 = vpack.c.b16 %v2176, %v2170
    %v3497 = vpack.c.b16 %v2177, %v2171
    %v3498 = vpack.c.b16 %v2184, %v2178
    %v3499 = vpack.c.b16 %v2185, %v2179
    %v3500 = vpack.c.b16 %v2186, %v2180
    %v3501 = vpack.c.b16 %v2187, %v2181
    %v3502 = vpack.c.b16 %v2188, %v2182
    %v3503 = vpack.c.b16 %v2189, %v2183
    %v3504 = vpack.c.b16 %v2196, %v2190
    %v3505 = vpack.c.b16 %v2197, %v2191
    %v3506 = vpack.c.b16 %v2198, %v2192
    %v3507 = vpack.c.b16 %v2199, %v2193
    %v3508 = vpack.c.b16 %v2200, %v2194
    %v3509 = vpack.c.b16 %v2201, %v2195
    %v3510 = vpack.c.b16 %v2208, %v2202
    %v3511 = vpack.c.b16 %v2209, %v2203
    %v3512 = vpack.c.b16 %v2210, %v2204
    %v3513 = vpack.c.b16 %v2211, %v2205
    %v3514 = vpack.c.b16 %v2212, %v2206
    %v3515 = vpack.c.b16 %v2213, %v2207
    %v3516 = vpack.c.b16 %v2220, %v2214
    %v3517 = vpack.c.b16 %v2221, %v2215
    %v3518 = vpack.c.b16 %v2222, %v2216
    %v3519 = vpack.c.b16 %v2223, %v2217
    %v3520 = vpack.c.b16 %v2224, %v2218
    %v3521 = vpack.c.b16 %v2225, %v2219
    %v3522 = vpack.c.b16 %v2232, %v2226
    %v3523 = vpack.c.b16 %v2233, %v2227
    %v3524 = vpack.c.b16 %v2234, %v2228
    %v3525 = vpack.c.b16 %v2235, %v2229
    %v3526 = vpack.c.b16 %v2236, %v2230
    %v3527 = vpack.c.b16 %v2237, %v2231
    %v3528 = vpack.c.b16 %v2244, %v2238
    %v3529 = vpack.c.b16 %v2245, %v2239
    %v3530 = vpack.c.b16 %v2246, %v2240
    %v3531 = vpack.c.b16 %v2247, %v2241
    %v3532 = vpack.c.b16 %v2248, %v2242
    %v3533 = vpack.c.b16 %v2249, %v2243
    %v3534 = vpack.c.b16 %v2256, %v2250
    %v3535 = vpack.c.b16 %v2257, %v2251
    %v3536 = vpack.c.b16 %v2258, %v2252
    %v3537 = vpack.c.b16 %v2259, %v2253
    %v3538 = vpack.c.b16 %v2260, %v2254
    %v3539 = vpack.c.b16 %v2261, %v2255
    %v3540 = vpack.c.b16 %v2268, %v2262
    %v3541 = vpack.c.b16 %v2269, %v2263
    %v3542 = vpack.c.b16 %v2270, %v2264
    %v3543 = vpack.c.b16 %v2271, %v2265
    %v3544 = vpack.c.b16 %v2272, %v2266
    %v3545 = vpack.c.b16 %v2273, %v2267
    %v3546 = vpack.c.b16 %v2280, %v2274
    %v3547 = vpack.c.b16 %v2281, %v2275
    %v3548 = vpack.c.b16 %v2282, %v2276
    %v3549 = vpack.c.b16 %v2283, %v2277
    %v3550 = vpack.c.b16 %v2284, %v2278
    %v3551 = vpack.c.b16 %v2285, %v2279
    %v3552 = vpack.c.b16 %v2292, %v2286
    %v3553 = vpack.c.b16 %v2293, %v2287
    %v3554 = vpack.c.b16 %v2294, %v2288
    %v3555 = vpack.c.b16 %v2295, %v2289
    %v3556 = vpack.c.b16 %v2296, %v2290
    %v3557 = vpack.c.b16 %v2297, %v2291
    %v3558 = vpack.c.b16 %v2304, %v2298
    %v3559 = vpack.c.b16 %v2305, %v2299
    %v3560 = vpack.c.b16 %v2306, %v2300
    %v3561 = vpack.c.b16 %v2307, %v2301
    %v3562 = vpack.c.b16 %v2308, %v2302
    %v3563 = vpack.c.b16 %v2309, %v2303
    %v3564 = vpack.c.b16 %v2316, %v2310
    %v3565 = vpack.c.b16 %v2317, %v2311
    %v3566 = vpack.c.b16 %v2318, %v2312
    %v3567 = vpack.c.b16 %v2319, %v2313
    %v3568 = vpack.c.b16 %v2320, %v2314
    %v3569 = vpack.c.b16 %v2321, %v2315
    %v3570 = vpack.c.b16 %v2328, %v2322
    %v3571 = vpack.c.b16 %v2329, %v2323
    %v3572 = vpack.c.b16 %v2330, %v2324
    %v3573 = vpack.c.b16 %v2331, %v2325
    %v3574 = vpack.c.b16 %v2332, %v2326
    %v3575 = vpack.c.b16 %v2333, %v2327
    %v3576 = vpack.c.b16 %v2340, %v2334
    %v3577 = vpack.c.b16 %v2341, %v2335
    %v3578 = vpack.c.b16 %v2342, %v2336
    %v3579 = vpack.c.b16 %v2343, %v2337
    %v3580 = vpack.c.b16 %v2344, %v2338
    %v3581 = vpack.c.b16 %v2345, %v2339
    %v3582 = vpack.c.b16 %v2352, %v2346
    %v3583 = vpack.c.b16 %v2353, %v2347
    %v3584 = vpack.c.b16 %v2354, %v2348
    %v3585 = vpack.c.b16 %v2355, %v2349
    %v3586 = vpack.c.b16 %v2356, %v2350
    %v3587 = vpack.c.b16 %v2357, %v2351
    %v3588 = vpack.c.b16 %v2364, %v2358
    %v3589 = vpack.c.b16 %v2365, %v2359
    %v3590 = vpack.c.b16 %v2366, %v2360
    %v3591 = vpack.c.b16 %v2367, %v2361
    %v3592 = vpack.c.b16 %v2368, %v2362
    %v3593 = vpack.c.b16 %v2369, %v2363
    %v3594 = vpack.c.b16 %v2376, %v2370
    %v3595 = vpack.c.b16 %v2377, %v2371
    %v3596 = vpack.c.b16 %v2378, %v2372
    %v3597 = vpack.c.b16 %v2379, %v2373
    %v3598 = vpack.c.b16 %v2380, %v2374
    %v3599 = vpack.c.b16 %v2381, %v2375
    %v3600 = vpack.c.b16 %v2388, %v2382
    %v3601 = vpack.c.b16 %v2389, %v2383
    %v3602 = vpack.c.b16 %v2390, %v2384
    %v3603 = vpack.c.b16 %v2391, %v2385
    %v3604 = vpack.c.b16 %v2392, %v2386
    %v3605 = vpack.c.b16 %v2393, %v2387
    %v3606 = vpack.c.b16 %v2400, %v2394
    %v3607 = vpack.c.b16 %v2401, %v2395
    %v3608 = vpack.c.b16 %v2402, %v2396
    %v3609 = vpack.c.b16 %v2403, %v2397
    %v3610 = vpack.c.b16 %v2404, %v2398
    %v3611 = vpack.c.b16 %v2405, %v2399
    %v3612 = vpack.c.b16 %v2412, %v2406
    %v3613 = vpack.c.b16 %v2413, %v2407
    %v3614 = vpack.c.b16 %v2414, %v2408
    %v3615 = vpack.c.b16 %v2415, %v2409
    %v3616 = vpack.c.b16 %v2416, %v2410
    %v3617 = vpack.c.b16 %v2417, %v2411
    %v3618 = vpack.c.b16 %v2424, %v2418
    %v3619 = vpack.c.b16 %v2425, %v2419
    %v3620 = vpack.c.b16 %v2426, %v2420
    %v3621 = vpack.c.b16 %v2427, %v2421
    %v3622 = vpack.c.b16 %v2428, %v2422
    %v3623 = vpack.c.b16 %v2429, %v2423
    %v3624 = vpack.c.b16 %v2436, %v2430
    %v3625 = vpack.c.b16 %v2437, %v2431
    %v3626 = vpack.c.b16 %v2438, %v2432
    %v3627 = vpack.c.b16 %v2439, %v2433
    %v3628 = vpack.c.b16 %v2440, %v2434
    %v3629 = vpack.c.b16 %v2441, %v2435
    %v3630 = vpack.c.b16 %v2448, %v2442
    %v3631 = vpack.c.b16 %v2449, %v2443
    %v3632 = vpack.c.b16 %v2450, %v2444
    %v3633 = vpack.c.b16 %v2451, %v2445
    %v3634 = vpack.c.b16 %v2452, %v2446
    %v3635 = vpack.c.b16 %v2453, %v2447
    %v3636 = vpack.c.b16 %v2460, %v2454
    %v3637 = vpack.c.b16 %v2461, %v2455
    %v3638 = vpack.c.b16 %v2462, %v2456
    %v3639 = vpack.c.b16 %v2463, %v2457
    %v3640 = vpack.c.b16 %v2464, %v2458
    %v3641 = vpack.c.b16 %v2465, %v2459
    %v3642 = vpack.c.b16 %v2472, %v2466
    %v3643 = vpack.c.b16 %v2473, %v2467
    %v3644 = vpack.c.b16 %v2474, %v2468
    %v3645 = vpack.c.b16 %v2475, %v2469
    %v3646 = vpack.c.b16 %v2476, %v2470
    %v3647 = vpack.c.b16 %v2477, %v2471
    %v3648 = vpack.c.b16 %v2484, %v2478
    %v3649 = vpack.c.b16 %v2485, %v2479
    %v3650 = vpack.c.b16 %v2486, %v2480
    %v3651 = vpack.c.b16 %v2487, %v2481
    %v3652 = vpack.c.b16 %v2488, %v2482
    %v3653 = vpack.c.b16 %v2489, %v2483
    %v3654 = vpack.c.b16 %v2496, %v2490
    %v3655 = vpack.c.b16 %v2497, %v2491
    %v3656 = vpack.c.b16 %v2498, %v2492
    %v3657 = vpack.c.b16 %v2499, %v2493
    %v3658 = vpack.c.b16 %v2500, %v2494
    %v3659 = vpack.c.b16 %v2501, %v2495
    %v3660 = vpack.c.b16 %v2508, %v2502
    %v3661 = vpack.c.b16 %v2509, %v2503
    %v3662 = vpack.c.b16 %v2510, %v2504
    %v3663 = vpack.c.b16 %v2511, %v2505
    %v3664 = vpack.c.b16 %v2512, %v2506
    %v3665 = vpack.c.b16 %v2513, %v2507
    %v3666 = vpack.c.b16 %v2520, %v2514
    %v3667 = vpack.c.b16 %v2521, %v2515
    %v3668 = vpack.c.b16 %v2522, %v2516
    %v3669 = vpack.c.b16 %v2523, %v2517
    %v3670 = vpack.c.b16 %v2524, %v2518
    %v3671 = vpack.c.b16 %v2525, %v2519
    %v3672 = vpack.c.b16 %v2532, %v2526
    %v3673 = vpack.c.b16 %v2533, %v2527
    %v3674 = vpack.c.b16 %v2534, %v2528
    %v3675 = vpack.c.b16 %v2535, %v2529
    %v3676 = vpack.c.b16 %v2536, %v2530
    %v3677 = vpack.c.b16 %v2537, %v2531
    %v3678 = vpack.c.b16 %v2544, %v2538
    %v3679 = vpack.c.b16 %v2545, %v2539
    %v3680 = vpack.c.b16 %v2546, %v2540
    %v3681 = vpack.c.b16 %v2547, %v2541
    %v3682 = vpack.c.b16 %v2548, %v2542
    %v3683 = vpack.c.b16 %v2549, %v2543
    %v3684 = vpack.c.b16 %v2556, %v2550
    %v3685 = vpack.c.b16 %v2557, %v2551
    %v3686 = vpack.c.b16 %v2558, %v2552
    %v3687 = vpack.c.b16 %v2559, %v2553
    %v3688 = vpack.c.b16 %v2560, %v2554
    %v3689 = vpack.c.b16 %v2561, %v2555
    %v3690 = vpack.c.b16 %v2568, %v2562
    %v3691 = vpack.c.b16 %v2569, %v2563
    %v3692 = vpack.c.b16 %v2570, %v2564
    %v3693 = vpack.c.b16 %v2571, %v2565
    %v3694 = vpack.c.b16 %v2572, %v2566
    %v3695 = vpack.c.b16 %v2573, %v2567
    %v3696 = vpack.c.b16 %v2580, %v2574
    %v3697 = vpack.c.b16 %v2581, %v2575
    %v3698 = vpack.c.b16 %v2582, %v2576
    %v3699 = vpack.c.b16 %v2583, %v2577
    %v3700 = vpack.c.b16 %v2584, %v2578
    %v3701 = vpack.c.b16 %v2585, %v2579
    %v3702 = vpack.c.b16 %v2592, %v2586
    %v3703 = vpack.c.b16 %v2593, %v2587
    %v3704 = vpack.c.b16 %v2594, %v2588
    %v3705 = vpack.c.b16 %v2595, %v2589
    %v3706 = vpack.c.b16 %v2596, %v2590
    %v3707 = vpack.c.b16 %v2597, %v2591
    %v3708 = vpack.c.b16 %v2604, %v2598
    %v3709 = vpack.c.b16 %v2605, %v2599
    %v3710 = vpack.c.b16 %v2606, %v2600
    %v3711 = vpack.c.b16 %v2607, %v2601
    %v3712 = vpack.c.b16 %v2608, %v2602
    %v3713 = vpack.c.b16 %v2609, %v2603
    %v3714 = vpack.c.b16 %v2616, %v2610
    %v3715 = vpack.c.b16 %v2617, %v2611
    %v3716 = vpack.c.b16 %v2618, %v2612
    %v3717 = vpack.c.b16 %v2619, %v2613
    %v3718 = vpack.c.b16 %v2620, %v2614
    %v3719 = vpack.c.b16 %v2621, %v2615
    %v3720 = vpack.c.b16 %v2628, %v2622
    %v3721 = vpack.c.b16 %v2629, %v2623
    %v3722 = vpack.c.b16 %v2630, %v2624
    %v3723 = vpack.c.b16 %v2631, %v2625
    %v3724 = vpack.c.b16 %v2632, %v2626
    %v3725 = vpack.c.b16 %v2633, %v2627
    %v3726 = vpack.c.b16 %v2640, %v2634
    %v3727 = vpack.c.b16 %v2641, %v2635
    %v3728 = vpack.c.b16 %v2642, %v2636
    %v3729 = vpack.c.b16 %v2643, %v2637
    %v3730 = vpack.c.b16 %v2644, %v2638
    %v3731 = vpack.c.b16 %v2645, %v2639
    %v3732 = vpack.c.b16 %v2652, %v2646
    %v3733 = vpack.c.b16 %v2653, %v2647
    %v3734 = vpack.c.b16 %v2654, %v2648
    %v3735 = vpack.c.b16 %v2655, %v2649
    %v3736 = vpack.c.b16 %v2656, %v2650
    %v3737 = vpack.c.b16 %v2657, %v2651
    %v3738 = vpack.c.b16 %v2664, %v2658
    %v3739 = vpack.c.b16 %v2665, %v2659
    %v3740 = vpack.c.b16 %v2666, %v2660
    %v3741 = vpack.c.b16 %v2667, %v2661
    %v3742 = vpack.c.b16 %v2668, %v2662
    %v3743 = vpack.c.b16 %v2669, %v2663
    %v3744 = vpack.c.b16 %v2676, %v2670
    %v3745 = vpack.c.b16 %v2677, %v2671
    %v3746 = vpack.c.b16 %v2678, %v2672
    %v3747 = vpack.c.b16 %v2679, %v2673
    %v3748 = vpack.c.b16 %v2680, %v2674
    %v3749 = vpack.c.b16 %v2681, %v2675
    %v3750 = vpack.c.b16 %v2688, %v2682
    %v3751 = vpack.c.b16 %v2689, %v2683
    %v3752 = vpack.c.b16 %v2690, %v2684
    %v3753 = vpack.c.b16 %v2691, %v2685
    %v3754 = vpack.c.b16 %v2692, %v2686
    %v3755 = vpack.c.b16 %v2693, %v2687
    %v3756 = vpack.c.b16 %v2700, %v2694
    %v3757 = vpack.c.b16 %v2701, %v2695
    %v3758 = vpack.c.b16 %v2702, %v2696
    %v3759 = vpack.c.b16 %v2703, %v2697
    %v3760 = vpack.c.b16 %v2704, %v2698
    %v3761 = vpack.c.b16 %v2705, %v2699
    %v3762 = vpack.c.b16 %v2712, %v2706
    %v3763 = vpack.c.b16 %v2713, %v2707
    %v3764 = vpack.c.b16 %v2714, %v2708
    %v3765 = vpack.c.b16 %v2715, %v2709
    %v3766 = vpack.c.b16 %v2716, %v2710
    %v3767 = vpack.c.b16 %v2717, %v2711
    %v3768 = vpack.c.b16 %v2724, %v2718
    %v3769 = vpack.c.b16 %v2725, %v2719
    %v3770 = vpack.c.b16 %v2726, %v2720
    %v3771 = vpack.c.b16 %v2727, %v2721
    %v3772 = vpack.c.b16 %v2728, %v2722
    %v3773 = vpack.c.b16 %v2729, %v2723
    %v3774 = vpack.c.b16 %v2736, %v2730
    %v3775 = vpack.c.b16 %v2737, %v2731
    %v3776 = vpack.c.b16 %v2738, %v2732
    %v3777 = vpack.c.b16 %v2739, %v2733
    %v3778 = vpack.c.b16 %v2740, %v2734
    %v3779 = vpack.c.b16 %v2741, %v2735
    %v3780 = vpack.c.b16 %v2748, %v2742
    %v3781 = vpack.c.b16 %v2749, %v2743
    %v3782 = vpack.c.b16 %v2750, %v2744
    %v3783 = vpack.c.b16 %v2751, %v2745
    %v3784 = vpack.c.b16 %v2752, %v2746
    %v3785 = vpack.c.b16 %v2753, %v2747
    %v3786 = vpack.c.b16 %v2760, %v2754
    %v3787 = vpack.c.b16 %v2761, %v2755
    %v3788 = vpack.c.b16 %v2762, %v2756
    %v3789 = vpack.c.b16 %v2763, %v2757
    %v3790 = vpack.c.b16 %v2764, %v2758
    %v3791 = vpack.c.b16 %v2765, %v2759
    %v3792 = vpack.c.b16 %v2772, %v2766
    %v3793 = vpack.c.b16 %v2773, %v2767
    %v3794 = vpack.c.b16 %v2774, %v2768
    %v3795 = vpack.c.b16 %v2775, %v2769
    %v3796 = vpack.c.b16 %v2776, %v2770
    %v3797 = vpack.c.b16 %v2777, %v2771
    %v3798 = vpack.c.b16 %v2784, %v2778
    %v3799 = vpack.c.b16 %v2785, %v2779
    %v3800 = vpack.c.b16 %v2786, %v2780
    %v3801 = vpack.c.b16 %v2787, %v2781
    %v3802 = vpack.c.b16 %v2788, %v2782
    %v3803 = vpack.c.b16 %v2789, %v2783
    %v3804 = vpack.c.b16 %v2796, %v2790
    %v3805 = vpack.c.b16 %v2797, %v2791
    %v3806 = vpack.c.b16 %v2798, %v2792
    %v3807 = vpack.c.b16 %v2799, %v2793
    %v3808 = vpack.c.b16 %v2800, %v2794
    %v3809 = vpack.c.b16 %v2801, %v2795
    %v3810 = vpack.c.b16 %v2808, %v2802
    %v3811 = vpack.c.b16 %v2809, %v2803
    %v3812 = vpack.c.b16 %v2810, %v2804
    %v3813 = vpack.c.b16 %v2811, %v2805
    %v3814 = vpack.c.b16 %v2812, %v2806
    %v3815 = vpack.c.b16 %v2813, %v2807
    %v3816 = vpack.c.b16 %v2820, %v2814
    %v3817 = vpack.c.b16 %v2821, %v2815
    %v3818 = vpack.c.b16 %v2822, %v2816
    %v3819 = vpack.c.b16 %v2823, %v2817
    %v3820 = vpack.c.b16 %v2824, %v2818
    %v3821 = vpack.c.b16 %v2825, %v2819
    %v3822 = vpack.c.b16 %v2832, %v2826
    %v3823 = vpack.c.b16 %v2833, %v2827
    %v3824 = vpack.c.b16 %v2834, %v2828
    %v3825 = vpack.c.b16 %v2835, %v2829
    %v3826 = vpack.c.b16 %v2836, %v2830
    %v3827 = vpack.c.b16 %v2837, %v2831
    %v3828 = vpack.c.b16 %v2844, %v2838
    %v3829 = vpack.c.b16 %v2845, %v2839
    %v3830 = vpack.c.b16 %v2846, %v2840
    %v3831 = vpack.c.b16 %v2847, %v2841
    %v3832 = vpack.c.b16 %v2848, %v2842
    %v3833 = vpack.c.b16 %v2849, %v2843
    %v3834 = vpack.c.b16 %v2856, %v2850
    %v3835 = vpack.c.b16 %v2857, %v2851
    %v3836 = vpack.c.b16 %v2858, %v2852
    %v3837 = vpack.c.b16 %v2859, %v2853
    %v3838 = vpack.c.b16 %v2860, %v2854
    %v3839 = vpack.c.b16 %v2861, %v2855
    %v3840 = vpack.c.b16 %v2868, %v2862
    %v3841 = vpack.c.b16 %v2869, %v2863
    %v3842 = vpack.c.b16 %v2870, %v2864
    %v3843 = vpack.c.b16 %v2871, %v2865
    %v3844 = vpack.c.b16 %v2872, %v2866
    %v3845 = vpack.c.b16 %v2873, %v2867
    %v3846 = vpack.c.b16 %v2880, %v2874
    %v3847 = vpack.c.b16 %v2881, %v2875
    %v3848 = vpack.c.b16 %v2882, %v2876
    %v3849 = vpack.c.b16 %v2883, %v2877
    %v3850 = vpack.c.b16 %v2884, %v2878
    %v3851 = vpack.c.b16 %v2885, %v2879
    %v3852 = vpack.c.b16 %v2892, %v2886
    %v3853 = vpack.c.b16 %v2893, %v2887
    %v3854 = vpack.c.b16 %v2894, %v2888
    %v3855 = vpack.c.b16 %v2895, %v2889
    %v3856 = vpack.c.b16 %v2896, %v2890
    %v3857 = vpack.c.b16 %v2897, %v2891
    %v3858 = vpack.c.b16 %v2904, %v2898
    %v3859 = vpack.c.b16 %v2905, %v2899
    %v3860 = vpack.c.b16 %v2906, %v2900
    %v3861 = vpack.c.b16 %v2907, %v2901
    %v3862 = vpack.c.b16 %v2908, %v2902
    %v3863 = vpack.c.b16 %v2909, %v2903
    %v3864 = vpack.c.b16 %v2916, %v2910
    %v3865 = vpack.c.b16 %v2917, %v2911
    %v3866 = vpack.c.b16 %v2918, %v2912
    %v3867 = vpack.c.b16 %v2919, %v2913
    %v3868 = vpack.c.b16 %v2920, %v2914
    %v3869 = vpack.c.b16 %v2921, %v2915
    %v3870 = vpack.c.b16 %v2928, %v2922
    %v3871 = vpack.c.b16 %v2929, %v2923
    %v3872 = vpack.c.b16 %v2930, %v2924
    %v3873 = vpack.c.b16 %v2931, %v2925
    %v3874 = vpack.c.b16 %v2932, %v2926
    %v3875 = vpack.c.b16 %v2933, %v2927
    %v3876 = vpack.c.b16 %v2940, %v2934
    %v3877 = vpack.c.b16 %v2941, %v2935
    %v3878 = vpack.c.b16 %v2942, %v2936
    %v3879 = vpack.c.b16 %v2943, %v2937
    %v3880 = vpack.c.b16 %v2944, %v2938
    %v3881 = vpack.c.b16 %v2945, %v2939
    %v3882 = vpack.c.b16 %v2952, %v2946
    %v3883 = vpack.c.b16 %v2953, %v2947
    %v3884 = vpack.c.b16 %v2954, %v2948
    %v3885 = vpack.c.b16 %v2955, %v2949
    %v3886 = vpack.c.b16 %v2956, %v2950
    %v3887 = vpack.c.b16 %v2957, %v2951
    %v3888 = vpack.c.b16 %v2964, %v2958
    %v3889 = vpack.c.b16 %v2965, %v2959
    %v3890 = vpack.c.b16 %v2966, %v2960
    %v3891 = vpack.c.b16 %v2967, %v2961
    %v3892 = vpack.c.b16 %v2968, %v2962
    %v3893 = vpack.c.b16 %v2969, %v2963
    %v3894 = vpack.c.b16 %v2976, %v2970
    %v3895 = vpack.c.b16 %v2977, %v2971
    %v3896 = vpack.c.b16 %v2978, %v2972
    %v3897 = vpack.c.b16 %v2979, %v2973
    %v3898 = vpack.c.b16 %v2980, %v2974
    %v3899 = vpack.c.b16 %v2981, %v2975
    %v3900 = vpack.c.b16 %v2988, %v2982
    %v3901 = vpack.c.b16 %v2989, %v2983
    %v3902 = vpack.c.b16 %v2990, %v2984
    %v3903 = vpack.c.b16 %v2991, %v2985
    %v3904 = vpack.c.b16 %v2992, %v2986
    %v3905 = vpack.c.b16 %v2993, %v2987
    %v3906 = vpack.c.b16 %v3000, %v2994
    %v3907 = vpack.c.b16 %v3001, %v2995
    %v3908 = vpack.c.b16 %v3002, %v2996
    %v3909 = vpack.c.b16 %v3003, %v2997
    %v3910 = vpack.c.b16 %v3004, %v2998
    %v3911 = vpack.c.b16 %v3005, %v2999
    %v3912 = vpack.c.b16 %v3012, %v3006
    %v3913 = vpack.c.b16 %v3013, %v3007
    %v3914 = vpack.c.b16 %v3014, %v3008
    %v3915 = vpack.c.b16 %v3015, %v3009
    %v3916 = vpack.c.b16 %v3016, %v3010
    %v3917 = vpack.c.b16 %v3017, %v3011
    %v3918 = vpack.c.b16 %v3024, %v3018
    %v3919 = vpack.c.b16 %v3025, %v3019
    %v3920 = vpack.c.b16 %v3026, %v3020
    %v3921 = vpack.c.b16 %v3027, %v3021
    %v3922 = vpack.c.b16 %v3028, %v3022
    %v3923 = vpack.c.b16 %v3029, %v3023
    %v3924 = vpack.c.b16 %v3036, %v3030
    %v3925 = vpack.c.b16 %v3037, %v3031
    %v3926 = vpack.c.b16 %v3038, %v3032
    %v3927 = vpack.c.b16 %v3039, %v3033
    %v3928 = vpack.c.b16 %v3040, %v3034
    %v3929 = vpack.c.b16 %v3041, %v3035
    %v3930 = vpack.c.b16 %v3048, %v3042
    %v3931 = vpack.c.b16 %v3049, %v3043
    %v3932 = vpack.c.b16 %v3050, %v3044
    %v3933 = vpack.c.b16 %v3051, %v3045
    %v3934 = vpack.c.b16 %v3052, %v3046
    %v3935 = vpack.c.b16 %v3053, %v3047
    %v3936 = vpack.c.b16 %v3060, %v3054
    %v3937 = vpack.c.b16 %v3061, %v3055
    %v3938 = vpack.c.b16 %v3062, %v3056
    %v3939 = vpack.c.b16 %v3063, %v3057
    %v3940 = vpack.c.b16 %v3064, %v3058
    %v3941 = vpack.c.b16 %v3065, %v3059
    %v3942 = vpack.c.b16 %v3072, %v3066
    %v3943 = vpack.c.b16 %v3073, %v3067
    %v3944 = vpack.c.b16 %v3074, %v3068
    %v3945 = vpack.c.b16 %v3075, %v3069
    %v3946 = vpack.c.b16 %v3076, %v3070
    %v3947 = vpack.c.b16 %v3077, %v3071
    %v3948 = vpack.c.b16 %v3084, %v3078
    %v3949 = vpack.c.b16 %v3085, %v3079
    %v3950 = vpack.c.b16 %v3086, %v3080
    %v3951 = vpack.c.b16 %v3087, %v3081
    %v3952 = vpack.c.b16 %v3088, %v3082
    %v3953 = vpack.c.b16 %v3089, %v3083
    %v3954 = vpack.c.b16 %v3096, %v3090
    %v3955 = vpack.c.b16 %v3097, %v3091
    %v3956 = vpack.c.b16 %v3098, %v3092
    %v3957 = vpack.c.b16 %v3099, %v3093
    %v3958 = vpack.c.b16 %v3100, %v3094
    %v3959 = vpack.c.b16 %v3101, %v3095
    %v3960 = vpack.c.b16 %v3108, %v3102
    %v3961 = vpack.c.b16 %v3109, %v3103
    %v3962 = vpack.c.b16 %v3110, %v3104
    %v3963 = vpack.c.b16 %v3111, %v3105
    %v3964 = vpack.c.b16 %v3112, %v3106
    %v3965 = vpack.c.b16 %v3113, %v3107
    %v3966 = vpack.c.b16 %v3120, %v3114
    %v3967 = vpack.c.b16 %v3121, %v3115
    %v3968 = vpack.c.b16 %v3122, %v3116
    %v3969 = vpack.c.b16 %v3123, %v3117
    %v3970 = vpack.c.b16 %v3124, %v3118
    %v3971 = vpack.c.b16 %v3125, %v3119
    %v3972 = vpack.c.b16 %v3132, %v3126
    %v3973 = vpack.c.b16 %v3133, %v3127
    %v3974 = vpack.c.b16 %v3134, %v3128
    %v3975 = vpack.c.b16 %v3135, %v3129
    %v3976 = vpack.c.b16 %v3136, %v3130
    %v3977 = vpack.c.b16 %v3137, %v3131
    %v3978 = vpack.c.b16 %v3144, %v3138
    %v3979 = vpack.c.b16 %v3145, %v3139
    %v3980 = vpack.c.b16 %v3146, %v3140
    %v3981 = vpack.c.b16 %v3147, %v3141
    %v3982 = vpack.c.b16 %v3148, %v3142
    %v3983 = vpack.c.b16 %v3149, %v3143
    %v3984 = vpack.c.b16 %v3156, %v3150
    %v3985 = vpack.c.b16 %v3157, %v3151
    %v3986 = vpack.c.b16 %v3158, %v3152
    %v3987 = vpack.c.b16 %v3159, %v3153
    %v3988 = vpack.c.b16 %v3160, %v3154
    %v3989 = vpack.c.b16 %v3161, %v3155
    %v3990 = vpack.c.b16 %v3168, %v3162
    %v3991 = vpack.c.b16 %v3169, %v3163
    %v3992 = vpack.c.b16 %v3170, %v3164
    %v3993 = vpack.c.b16 %v3171, %v3165
    %v3994 = vpack.c.b16 %v3172, %v3166
    %v3995 = vpack.c.b16 %v3173, %v3167
    %v3996 = vpack.c.b16 %v3180, %v3174
    %v3997 = vpack.c.b16 %v3181, %v3175
    %v3998 = vpack.c.b16 %v3182, %v3176
    %v3999 = vpack.c.b16 %v3183, %v3177
    %v4000 = vpack.c.b16 %v3184, %v3178
    %v4001 = vpack.c.b16 %v3185, %v3179
    %v4002 = vpack.c.b16 %v3192, %v3186
    %v4003 = vpack.c.b16 %v3193, %v3187
    %v4004 = vpack.c.b16 %v3194, %v3188
    %v4005 = vpack.c.b16 %v3195, %v3189
    %v4006 = vpack.c.b16 %v3196, %v3190
    %v4007 = vpack.c.b16 %v3197, %v3191
    %v4008 = vpack.c.b16 %v3204, %v3198
    %v4009 = vpack.c.b16 %v3205, %v3199
    %v4010 = vpack.c.b16 %v3206, %v3200
    %v4011 = vpack.c.b16 %v3207, %v3201
    %v4012 = vpack.c.b16 %v3208, %v3202
    %v4013 = vpack.c.b16 %v3209, %v3203
    %v4014 = vpack.c.b16 %v3216, %v3210
    %v4015 = vpack.c.b16 %v3217, %v3211
    %v4016 = vpack.c.b16 %v3218, %v3212
    %v4017 = vpack.c.b16 %v3219, %v3213
    %v4018 = vpack.c.b16 %v3220, %v3214
    %v4019 = vpack.c.b16 %v3221, %v3215
    %v4020 = vpack.c.b16 %v3228, %v3222
    %v4021 = vpack.c.b16 %v3229, %v3223
    %v4022 = vpack.c.b16 %v3230, %v3224
    %v4023 = vpack.c.b16 %v3231, %v3225
    %v4024 = vpack.c.b16 %v3232, %v3226
    %v4025 = vpack.c.b16 %v3233, %v3227
    %v4026 = vpack.c.b16 %v3240, %v3234
    %v4027 = vpack.c.b16 %v3241, %v3235
    %v4028 = vpack.c.b16 %v3242, %v3236
    %v4029 = vpack.c.b16 %v3243, %v3237
    %v4030 = vpack.c.b16 %v3244, %v3238
    %v4031 = vpack.c.b16 %v3245, %v3239
    %v4032 = vpack.c.b16 %v3252, %v3246
    %v4033 = vpack.c.b16 %v3253, %v3247
    %v4034 = vpack.c.b16 %v3254, %v3248
    %v4035 = vpack.c.b16 %v3255, %v3249
    %v4036 = vpack.c.b16 %v3256, %v3250
    %v4037 = vpack.c.b16 %v3257, %v3251
    %v4038 = vpack.c.b16 %v3264, %v3258
    %v4039 = vpack.c.b16 %v3265, %v3259
    %v4040 = vpack.c.b16 %v3266, %v3260
    %v4041 = vpack.c.b16 %v3267, %v3261
    %v4042 = vpack.c.b16 %v3268, %v3262
    %v4043 = vpack.c.b16 %v3269, %v3263
    %v4044 = vpack.c.b16 %v3276, %v3270
    %v4045 = vpack.c.b16 %v3277, %v3271
    %v4046 = vpack.c.b16 %v3278, %v3272
    %v4047 = vpack.c.b16 %v3279, %v3273
    %v4048 = vpack.c.b16 %v3280, %v3274
    %v4049 = vpack.c.b16 %v3281, %v3275
    %4818 = vmatprep.subr.bf16.mxu0 %v3325
    %4819 = vmatpush1.bf16.msra.mxu0 %v3324
    %4820 = vmatprep.subr.bf16.mxu0 %v3319
    %4821 = vmatpush1.bf16.msra.mxu0 %v3318
    %4822 = vmatprep.subr.bf16.mxu0 %v3313
    %4823 = vmatpush1.bf16.msra.mxu0 %v3312
    %4824 = vmatprep.subr.bf16.mxu0 %v3307
    %4825 = vmatpush1.bf16.msra.mxu0 %v3306
    %4826 = vmatprep.subr.bf16.mxu0 %v3301
    %4827 = vmatpush1.bf16.msra.mxu0 %v3300
    %4828 = vmatprep.subr.bf16.mxu0 %v3295
    %4829 = vmatpush1.bf16.msra.mxu0 %v3294
    %4830 = vmatprep.subr.bf16.mxu0 %v3289
    %4831 = vmatpush1.bf16.msra.mxu0 %v3288
    %4832 = vmatprep.subr.bf16.mxu0 %v3283
    %4833 = vmatpush1.bf16.msra.mxu0 %v3282
    %4834 = vmatprep.subr.bf16.mxu0 %v3373
    %4835 = vmatpush2.bf16.msra.mxu0 %v3372
    %4836 = vmatprep.subr.bf16.mxu0 %v3367
    %4837 = vmatpush2.bf16.msra.mxu0 %v3366
    %4838 = vmatprep.subr.bf16.mxu0 %v3361
    %4839 = vmatpush2.bf16.msra.mxu0 %v3360
    %4840 = vmatprep.subr.bf16.mxu0 %v3355
    %4841 = vmatpush2.bf16.msra.mxu0 %v3354
    %4842 = vmatprep.subr.bf16.mxu0 %v3349
    %4843 = vmatpush2.bf16.msra.mxu0 %v3348
    %4844 = vmatprep.subr.bf16.mxu0 %v3343
    %4845 = vmatpush2.bf16.msra.mxu0 %v3342
    %4846 = vmatprep.subr.bf16.mxu0 %v3337
    %4847 = vmatpush2.bf16.msra.mxu0 %v3336
    %4848 = vmatprep.subr.bf16.mxu0 %v3331
    %4849 = vmatpush2.bf16.msra.mxu0 %v3330
    %4850 = vmatprep.mubr.bf16.mxu0 %v163
    %4851 = vmatmul.mubr.bf16.gmra.mxu0 %v162
    %v4852 = vpop.f32.mrf.mxu0
    %v4853 = vadd.f32 %v951, %v4852
    %v4854 = vpop.f32.mrf.mxu0
    %v4855 = vadd.f32 %v955, %v4854
    %v4856 = vpop.f32.mrf.mxu0
    %v4857 = vpop.f32.mrf.mxu0
    %4858 = vdwg.mxu0
    %4859 = vmatprep.subr.bf16.mxu0 %v3421
    %4860 = vmatpush1.bf16.msra.mxu0 %v3420
    %4861 = vmatprep.subr.bf16.mxu0 %v3415
    %4862 = vmatpush1.bf16.msra.mxu0 %v3414
    %4863 = vmatprep.subr.bf16.mxu0 %v3409
    %4864 = vmatpush1.bf16.msra.mxu0 %v3408
    %4865 = vmatprep.subr.bf16.mxu0 %v3403
    %4866 = vmatpush1.bf16.msra.mxu0 %v3402
    %4867 = vmatprep.subr.bf16.mxu0 %v3397
    %4868 = vmatpush1.bf16.msra.mxu0 %v3396
    %4869 = vmatprep.subr.bf16.mxu0 %v3391
    %4870 = vmatpush1.bf16.msra.mxu0 %v3390
    %4871 = vmatprep.subr.bf16.mxu0 %v3385
    %4872 = vmatpush1.bf16.msra.mxu0 %v3384
    %4873 = vmatprep.subr.bf16.mxu0 %v3379
    %4874 = vmatpush1.bf16.msra.mxu0 %v3378
    %4875 = vmatprep.subr.bf16.mxu0 %v3469
    %4876 = vmatpush2.bf16.msra.mxu0 %v3468
    %4877 = vmatprep.subr.bf16.mxu0 %v3463
    %4878 = vmatpush2.bf16.msra.mxu0 %v3462
    %4879 = vmatprep.subr.bf16.mxu0 %v3457
    %4880 = vmatpush2.bf16.msra.mxu0 %v3456
    %4881 = vmatprep.subr.bf16.mxu0 %v3451
    %4882 = vmatpush2.bf16.msra.mxu0 %v3450
    %4883 = vmatprep.subr.bf16.mxu0 %v3445
    %4884 = vmatpush2.bf16.msra.mxu0 %v3444
    %4885 = vmatprep.subr.bf16.mxu0 %v3439
    %4886 = vmatpush2.bf16.msra.mxu0 %v3438
    %4887 = vmatprep.subr.bf16.mxu0 %v3433
    %4888 = vmatpush2.bf16.msra.mxu0 %v3432
    %4889 = vmatprep.subr.bf16.mxu0 %v3427
    %4890 = vmatpush2.bf16.msra.mxu0 %v3426
    %4891 = vmatprep.mubr.bf16.mxu0 %v165
    %4892 = vmatmul.mubr.bf16.gmra.mxu0 %v164
    %v4893 = vpop.f32.mrf.mxu0
    %v4894 = vadd.f32 %v4853, %v4893
    %v4895 = vpop.f32.mrf.mxu0
    %v4896 = vadd.f32 %v4855, %v4895
    %v4897 = vpop.f32.mrf.mxu0
    %v4898 = vpop.f32.mrf.mxu0
    %4899 = vdwg.mxu0
    %4900 = vmatprep.subr.bf16.mxu0 %v3517
    %4901 = vmatpush1.bf16.msra.mxu0 %v3516
    %4902 = vmatprep.subr.bf16.mxu0 %v3511
    %4903 = vmatpush1.bf16.msra.mxu0 %v3510
    %4904 = vmatprep.subr.bf16.mxu0 %v3505
    %4905 = vmatpush1.bf16.msra.mxu0 %v3504
    %4906 = vmatprep.subr.bf16.mxu0 %v3499
    %4907 = vmatpush1.bf16.msra.mxu0 %v3498
    %4908 = vmatprep.subr.bf16.mxu0 %v3493
    %4909 = vmatpush1.bf16.msra.mxu0 %v3492
    %4910 = vmatprep.subr.bf16.mxu0 %v3487
    %4911 = vmatpush1.bf16.msra.mxu0 %v3486
    %4912 = vmatprep.subr.bf16.mxu0 %v3481
    %4913 = vmatpush1.bf16.msra.mxu0 %v3480
    %4914 = vmatprep.subr.bf16.mxu0 %v3475
    %4915 = vmatpush1.bf16.msra.mxu0 %v3474
    %4916 = vmatprep.subr.bf16.mxu0 %v3565
    %4917 = vmatpush2.bf16.msra.mxu0 %v3564
    %4918 = vmatprep.subr.bf16.mxu0 %v3559
    %4919 = vmatpush2.bf16.msra.mxu0 %v3558
    %4920 = vmatprep.subr.bf16.mxu0 %v3553
    %4921 = vmatpush2.bf16.msra.mxu0 %v3552
    %4922 = vmatprep.subr.bf16.mxu0 %v3547
    %4923 = vmatpush2.bf16.msra.mxu0 %v3546
    %4924 = vmatprep.subr.bf16.mxu0 %v3541
    %4925 = vmatpush2.bf16.msra.mxu0 %v3540
    %4926 = vmatprep.subr.bf16.mxu0 %v3535
    %4927 = vmatpush2.bf16.msra.mxu0 %v3534
    %4928 = vmatprep.subr.bf16.mxu0 %v3529
    %4929 = vmatpush2.bf16.msra.mxu0 %v3528
    %4930 = vmatprep.subr.bf16.mxu0 %v3523
    %4931 = vmatpush2.bf16.msra.mxu0 %v3522
    %4932 = vmatprep.mubr.bf16.mxu0 %v167
    %4933 = vmatmul.mubr.bf16.gmra.mxu0 %v166
    %v4934 = vpop.f32.mrf.mxu0
    %v4935 = vadd.f32 %v4894, %v4934
    %v4936 = vpop.f32.mrf.mxu0
    %v4937 = vadd.f32 %v4896, %v4936
    %v4938 = vpop.f32.mrf.mxu0
    %v4939 = vpop.f32.mrf.mxu0
    %4940 = vdwg.mxu0
    %4941 = vmatprep.subr.bf16.mxu0 %v3613
    %4942 = vmatpush1.bf16.msra.mxu0 %v3612
    %4943 = vmatprep.subr.bf16.mxu0 %v3607
    %4944 = vmatpush1.bf16.msra.mxu0 %v3606
    %4945 = vmatprep.subr.bf16.mxu0 %v3601
    %4946 = vmatpush1.bf16.msra.mxu0 %v3600
    %4947 = vmatprep.subr.bf16.mxu0 %v3595
    %4948 = vmatpush1.bf16.msra.mxu0 %v3594
    %4949 = vmatprep.subr.bf16.mxu0 %v3589
    %4950 = vmatpush1.bf16.msra.mxu0 %v3588
    %4951 = vmatprep.subr.bf16.mxu0 %v3583
    %4952 = vmatpush1.bf16.msra.mxu0 %v3582
    %4953 = vmatprep.subr.bf16.mxu0 %v3577
    %4954 = vmatpush1.bf16.msra.mxu0 %v3576
    %4955 = vmatprep.subr.bf16.mxu0 %v3571
    %4956 = vmatpush1.bf16.msra.mxu0 %v3570
    %4957 = vmatprep.subr.bf16.mxu0 %v3661
    %4958 = vmatpush2.bf16.msra.mxu0 %v3660
    %4959 = vmatprep.subr.bf16.mxu0 %v3655
    %4960 = vmatpush2.bf16.msra.mxu0 %v3654
    %4961 = vmatprep.subr.bf16.mxu0 %v3649
    %4962 = vmatpush2.bf16.msra.mxu0 %v3648
    %4963 = vmatprep.subr.bf16.mxu0 %v3643
    %4964 = vmatpush2.bf16.msra.mxu0 %v3642
    %4965 = vmatprep.subr.bf16.mxu0 %v3637
    %4966 = vmatpush2.bf16.msra.mxu0 %v3636
    %4967 = vmatprep.subr.bf16.mxu0 %v3631
    %4968 = vmatpush2.bf16.msra.mxu0 %v3630
    %4969 = vmatprep.subr.bf16.mxu0 %v3625
    %4970 = vmatpush2.bf16.msra.mxu0 %v3624
    %4971 = vmatprep.subr.bf16.mxu0 %v3619
    %4972 = vmatpush2.bf16.msra.mxu0 %v3618
    %4973 = vmatprep.mubr.bf16.mxu0 %v169
    %4974 = vmatmul.mubr.bf16.gmra.mxu0 %v168
    %v4975 = vpop.f32.mrf.mxu0
    %v4976 = vadd.f32 %v4935, %v4975
    %v4977 = vpop.f32.mrf.mxu0
    %v4978 = vadd.f32 %v4937, %v4977
    %v4979 = vpop.f32.mrf.mxu0
    %v4980 = vpop.f32.mrf.mxu0
    %4981 = vdwg.mxu0
    %4982 = vmatprep.subr.bf16.mxu0 %v3709
    %4983 = vmatpush1.bf16.msra.mxu0 %v3708
    %4984 = vmatprep.subr.bf16.mxu0 %v3703
    %4985 = vmatpush1.bf16.msra.mxu0 %v3702
    %4986 = vmatprep.subr.bf16.mxu0 %v3697
    %4987 = vmatpush1.bf16.msra.mxu0 %v3696
    %4988 = vmatprep.subr.bf16.mxu0 %v3691
    %4989 = vmatpush1.bf16.msra.mxu0 %v3690
    %4990 = vmatprep.subr.bf16.mxu0 %v3685
    %4991 = vmatpush1.bf16.msra.mxu0 %v3684
    %4992 = vmatprep.subr.bf16.mxu0 %v3679
    %4993 = vmatpush1.bf16.msra.mxu0 %v3678
    %4994 = vmatprep.subr.bf16.mxu0 %v3673
    %4995 = vmatpush1.bf16.msra.mxu0 %v3672
    %4996 = vmatprep.subr.bf16.mxu0 %v3667
    %4997 = vmatpush1.bf16.msra.mxu0 %v3666
    %4998 = vmatprep.subr.bf16.mxu0 %v3757
    %4999 = vmatpush2.bf16.msra.mxu0 %v3756
    %5000 = vmatprep.subr.bf16.mxu0 %v3751
    %5001 = vmatpush2.bf16.msra.mxu0 %v3750
    %5002 = vmatprep.subr.bf16.mxu0 %v3745
    %5003 = vmatpush2.bf16.msra.mxu0 %v3744
    %5004 = vmatprep.subr.bf16.mxu0 %v3739
    %5005 = vmatpush2.bf16.msra.mxu0 %v3738
    %5006 = vmatprep.subr.bf16.mxu0 %v3733
    %5007 = vmatpush2.bf16.msra.mxu0 %v3732
    %5008 = vmatprep.subr.bf16.mxu0 %v3727
    %5009 = vmatpush2.bf16.msra.mxu0 %v3726
    %5010 = vmatprep.subr.bf16.mxu0 %v3721
    %5011 = vmatpush2.bf16.msra.mxu0 %v3720
    %5012 = vmatprep.subr.bf16.mxu0 %v3715
    %5013 = vmatpush2.bf16.msra.mxu0 %v3714
    %5014 = vmatprep.mubr.bf16.mxu0 %v171
    %5015 = vmatmul.mubr.bf16.gmra.mxu0 %v170
    %v5016 = vpop.f32.mrf.mxu0
    %v5017 = vadd.f32 %v4976, %v5016
    %v5018 = vpop.f32.mrf.mxu0
    %v5019 = vadd.f32 %v4978, %v5018
    %v5020 = vpop.f32.mrf.mxu0
    %v5021 = vpop.f32.mrf.mxu0
    %5022 = vdwg.mxu0
    %5023 = vmatprep.subr.bf16.mxu0 %v3805
    %5024 = vmatpush1.bf16.msra.mxu0 %v3804
    %5025 = vmatprep.subr.bf16.mxu0 %v3799
    %5026 = vmatpush1.bf16.msra.mxu0 %v3798
    %5027 = vmatprep.subr.bf16.mxu0 %v3793
    %5028 = vmatpush1.bf16.msra.mxu0 %v3792
    %5029 = vmatprep.subr.bf16.mxu0 %v3787
    %5030 = vmatpush1.bf16.msra.mxu0 %v3786
    %5031 = vmatprep.subr.bf16.mxu0 %v3781
    %5032 = vmatpush1.bf16.msra.mxu0 %v3780
    %5033 = vmatprep.subr.bf16.mxu0 %v3775
    %5034 = vmatpush1.bf16.msra.mxu0 %v3774
    %5035 = vmatprep.subr.bf16.mxu0 %v3769
    %5036 = vmatpush1.bf16.msra.mxu0 %v3768
    %5037 = vmatprep.subr.bf16.mxu0 %v3763
    %5038 = vmatpush1.bf16.msra.mxu0 %v3762
    %5039 = vmatprep.subr.bf16.mxu0 %v3853
    %5040 = vmatpush2.bf16.msra.mxu0 %v3852
    %5041 = vmatprep.subr.bf16.mxu0 %v3847
    %5042 = vmatpush2.bf16.msra.mxu0 %v3846
    %5043 = vmatprep.subr.bf16.mxu0 %v3841
    %5044 = vmatpush2.bf16.msra.mxu0 %v3840
    %5045 = vmatprep.subr.bf16.mxu0 %v3835
    %5046 = vmatpush2.bf16.msra.mxu0 %v3834
    %5047 = vmatprep.subr.bf16.mxu0 %v3829
    %5048 = vmatpush2.bf16.msra.mxu0 %v3828
    %5049 = vmatprep.subr.bf16.mxu0 %v3823
    %5050 = vmatpush2.bf16.msra.mxu0 %v3822
    %5051 = vmatprep.subr.bf16.mxu0 %v3817
    %5052 = vmatpush2.bf16.msra.mxu0 %v3816
    %5053 = vmatprep.subr.bf16.mxu0 %v3811
    %5054 = vmatpush2.bf16.msra.mxu0 %v3810
    %5055 = vmatprep.mubr.bf16.mxu0 %v173
    %5056 = vmatmul.mubr.bf16.gmra.mxu0 %v172
    %v5057 = vpop.f32.mrf.mxu0
    %v5058 = vadd.f32 %v5017, %v5057
    %v5059 = vpop.f32.mrf.mxu0
    %v5060 = vadd.f32 %v5019, %v5059
    %v5061 = vpop.f32.mrf.mxu0
    %v5062 = vpop.f32.mrf.mxu0
    %5063 = vdwg.mxu0
    %5064 = vmatprep.subr.bf16.mxu0 %v3901
    %5065 = vmatpush1.bf16.msra.mxu0 %v3900
    %5066 = vmatprep.subr.bf16.mxu0 %v3895
    %5067 = vmatpush1.bf16.msra.mxu0 %v3894
    %5068 = vmatprep.subr.bf16.mxu0 %v3889
    %5069 = vmatpush1.bf16.msra.mxu0 %v3888
    %5070 = vmatprep.subr.bf16.mxu0 %v3883
    %5071 = vmatpush1.bf16.msra.mxu0 %v3882
    %5072 = vmatprep.subr.bf16.mxu0 %v3877
    %5073 = vmatpush1.bf16.msra.mxu0 %v3876
    %5074 = vmatprep.subr.bf16.mxu0 %v3871
    %5075 = vmatpush1.bf16.msra.mxu0 %v3870
    %5076 = vmatprep.subr.bf16.mxu0 %v3865
    %5077 = vmatpush1.bf16.msra.mxu0 %v3864
    %5078 = vmatprep.subr.bf16.mxu0 %v3859
    %5079 = vmatpush1.bf16.msra.mxu0 %v3858
    %5080 = vmatprep.subr.bf16.mxu0 %v3949
    %5081 = vmatpush2.bf16.msra.mxu0 %v3948
    %5082 = vmatprep.subr.bf16.mxu0 %v3943
    %5083 = vmatpush2.bf16.msra.mxu0 %v3942
    %5084 = vmatprep.subr.bf16.mxu0 %v3937
    %5085 = vmatpush2.bf16.msra.mxu0 %v3936
    %5086 = vmatprep.subr.bf16.mxu0 %v3931
    %5087 = vmatpush2.bf16.msra.mxu0 %v3930
    %5088 = vmatprep.subr.bf16.mxu0 %v3925
    %5089 = vmatpush2.bf16.msra.mxu0 %v3924
    %5090 = vmatprep.subr.bf16.mxu0 %v3919
    %5091 = vmatpush2.bf16.msra.mxu0 %v3918
    %5092 = vmatprep.subr.bf16.mxu0 %v3913
    %5093 = vmatpush2.bf16.msra.mxu0 %v3912
    %5094 = vmatprep.subr.bf16.mxu0 %v3907
    %5095 = vmatpush2.bf16.msra.mxu0 %v3906
    %5096 = vmatprep.mubr.bf16.mxu0 %v175
    %5097 = vmatmul.mubr.bf16.gmra.mxu0 %v174
    %v5098 = vpop.f32.mrf.mxu0
    %v5099 = vadd.f32 %v5058, %v5098
    %v5100 = vpop.f32.mrf.mxu0
    %v5101 = vadd.f32 %v5060, %v5100
    %v5102 = vpop.f32.mrf.mxu0
    %v5103 = vpop.f32.mrf.mxu0
    %5104 = vdwg.mxu0
    %5105 = vmatprep.subr.bf16.mxu0 %v3997
    %5106 = vmatpush1.bf16.msra.mxu0 %v3996
    %5107 = vmatprep.subr.bf16.mxu0 %v3991
    %5108 = vmatpush1.bf16.msra.mxu0 %v3990
    %5109 = vmatprep.subr.bf16.mxu0 %v3985
    %5110 = vmatpush1.bf16.msra.mxu0 %v3984
    %5111 = vmatprep.subr.bf16.mxu0 %v3979
    %5112 = vmatpush1.bf16.msra.mxu0 %v3978
    %5113 = vmatprep.subr.bf16.mxu0 %v3973
    %5114 = vmatpush1.bf16.msra.mxu0 %v3972
    %5115 = vmatprep.subr.bf16.mxu0 %v3967
    %5116 = vmatpush1.bf16.msra.mxu0 %v3966
    %5117 = vmatprep.subr.bf16.mxu0 %v3961
    %5118 = vmatpush1.bf16.msra.mxu0 %v3960
    %5119 = vmatprep.subr.bf16.mxu0 %v3955
    %5120 = vmatpush1.bf16.msra.mxu0 %v3954
    %5121 = vmatprep.subr.bf16.mxu0 %v4045
    %5122 = vmatpush2.bf16.msra.mxu0 %v4044
    %5123 = vmatprep.subr.bf16.mxu0 %v4039
    %5124 = vmatpush2.bf16.msra.mxu0 %v4038
    %5125 = vmatprep.subr.bf16.mxu0 %v4033
    %5126 = vmatpush2.bf16.msra.mxu0 %v4032
    %5127 = vmatprep.subr.bf16.mxu0 %v4027
    %5128 = vmatpush2.bf16.msra.mxu0 %v4026
    %5129 = vmatprep.subr.bf16.mxu0 %v4021
    %5130 = vmatpush2.bf16.msra.mxu0 %v4020
    %5131 = vmatprep.subr.bf16.mxu0 %v4015
    %5132 = vmatpush2.bf16.msra.mxu0 %v4014
    %5133 = vmatprep.subr.bf16.mxu0 %v4009
    %5134 = vmatpush2.bf16.msra.mxu0 %v4008
    %5135 = vmatprep.subr.bf16.mxu0 %v4003
    %5136 = vmatpush2.bf16.msra.mxu0 %v4002
    %5137 = vmatprep.mubr.bf16.mxu0 %v177
    %5138 = vmatmul.mubr.bf16.gmra.mxu0 %v176
    %v5139 = vpop.f32.mrf.mxu0
    %v5140 = vadd.f32 %v5099, %v5139
    %v5141 = vpop.f32.mrf.mxu0
    %v5142 = vadd.f32 %v5101, %v5141
    %v5143 = vpop.f32.mrf.mxu0
    %v5144 = vpop.f32.mrf.mxu0
    %5145 = vdwg.mxu0
    %5146 = vmatprep.subr.bf16.mxu0 %v3327
    %5147 = vmatpush1.bf16.msra.mxu0 %v3326
    %5148 = vmatprep.subr.bf16.mxu0 %v3321
    %5149 = vmatpush1.bf16.msra.mxu0 %v3320
    %5150 = vmatprep.subr.bf16.mxu0 %v3315
    %5151 = vmatpush1.bf16.msra.mxu0 %v3314
    %5152 = vmatprep.subr.bf16.mxu0 %v3309
    %5153 = vmatpush1.bf16.msra.mxu0 %v3308
    %5154 = vmatprep.subr.bf16.mxu0 %v3303
    %5155 = vmatpush1.bf16.msra.mxu0 %v3302
    %5156 = vmatprep.subr.bf16.mxu0 %v3297
    %5157 = vmatpush1.bf16.msra.mxu0 %v3296
    %5158 = vmatprep.subr.bf16.mxu0 %v3291
    %5159 = vmatpush1.bf16.msra.mxu0 %v3290
    %5160 = vmatprep.subr.bf16.mxu0 %v3285
    %5161 = vmatpush1.bf16.msra.mxu0 %v3284
    %5162 = vmatprep.subr.bf16.mxu0 %v3375
    %5163 = vmatpush2.bf16.msra.mxu0 %v3374
    %5164 = vmatprep.subr.bf16.mxu0 %v3369
    %5165 = vmatpush2.bf16.msra.mxu0 %v3368
    %5166 = vmatprep.subr.bf16.mxu0 %v3363
    %5167 = vmatpush2.bf16.msra.mxu0 %v3362
    %5168 = vmatprep.subr.bf16.mxu0 %v3357
    %5169 = vmatpush2.bf16.msra.mxu0 %v3356
    %5170 = vmatprep.subr.bf16.mxu0 %v3351
    %5171 = vmatpush2.bf16.msra.mxu0 %v3350
    %5172 = vmatprep.subr.bf16.mxu0 %v3345
    %5173 = vmatpush2.bf16.msra.mxu0 %v3344
    %5174 = vmatprep.subr.bf16.mxu0 %v3339
    %5175 = vmatpush2.bf16.msra.mxu0 %v3338
    %5176 = vmatprep.subr.bf16.mxu0 %v3333
    %5177 = vmatpush2.bf16.msra.mxu0 %v3332
    %5178 = vmatprep.mubr.bf16.mxu0 %v163
    %5179 = vmatmul.mubr.bf16.gmra.mxu0 %v162
    %v5180 = vpop.f32.mrf.mxu0
    %v5181 = vadd.f32 %v959, %v5180
    %v5182 = vpop.f32.mrf.mxu0
    %v5183 = vadd.f32 %v963, %v5182
    %v5184 = vpop.f32.mrf.mxu0
    %v5185 = vpop.f32.mrf.mxu0
    %5186 = vdwg.mxu0
    %5187 = vmatprep.subr.bf16.mxu0 %v3423
    %5188 = vmatpush1.bf16.msra.mxu0 %v3422
    %5189 = vmatprep.subr.bf16.mxu0 %v3417
    %5190 = vmatpush1.bf16.msra.mxu0 %v3416
    %5191 = vmatprep.subr.bf16.mxu0 %v3411
    %5192 = vmatpush1.bf16.msra.mxu0 %v3410
    %5193 = vmatprep.subr.bf16.mxu0 %v3405
    %5194 = vmatpush1.bf16.msra.mxu0 %v3404
    %5195 = vmatprep.subr.bf16.mxu0 %v3399
    %5196 = vmatpush1.bf16.msra.mxu0 %v3398
    %5197 = vmatprep.subr.bf16.mxu0 %v3393
    %5198 = vmatpush1.bf16.msra.mxu0 %v3392
    %5199 = vmatprep.subr.bf16.mxu0 %v3387
    %5200 = vmatpush1.bf16.msra.mxu0 %v3386
    %5201 = vmatprep.subr.bf16.mxu0 %v3381
    %5202 = vmatpush1.bf16.msra.mxu0 %v3380
    %5203 = vmatprep.subr.bf16.mxu0 %v3471
    %5204 = vmatpush2.bf16.msra.mxu0 %v3470
    %5205 = vmatprep.subr.bf16.mxu0 %v3465
    %5206 = vmatpush2.bf16.msra.mxu0 %v3464
    %5207 = vmatprep.subr.bf16.mxu0 %v3459
    %5208 = vmatpush2.bf16.msra.mxu0 %v3458
    %5209 = vmatprep.subr.bf16.mxu0 %v3453
    %5210 = vmatpush2.bf16.msra.mxu0 %v3452
    %5211 = vmatprep.subr.bf16.mxu0 %v3447
    %5212 = vmatpush2.bf16.msra.mxu0 %v3446
    %5213 = vmatprep.subr.bf16.mxu0 %v3441
    %5214 = vmatpush2.bf16.msra.mxu0 %v3440
    %5215 = vmatprep.subr.bf16.mxu0 %v3435
    %5216 = vmatpush2.bf16.msra.mxu0 %v3434
    %5217 = vmatprep.subr.bf16.mxu0 %v3429
    %5218 = vmatpush2.bf16.msra.mxu0 %v3428
    %5219 = vmatprep.mubr.bf16.mxu0 %v165
    %5220 = vmatmul.mubr.bf16.gmra.mxu0 %v164
    %v5221 = vpop.f32.mrf.mxu0
    %v5222 = vadd.f32 %v5181, %v5221
    %v5223 = vpop.f32.mrf.mxu0
    %v5224 = vadd.f32 %v5183, %v5223
    %v5225 = vpop.f32.mrf.mxu0
    %v5226 = vpop.f32.mrf.mxu0
    %5227 = vdwg.mxu0
    %5228 = vmatprep.subr.bf16.mxu0 %v3519
    %5229 = vmatpush1.bf16.msra.mxu0 %v3518
    %5230 = vmatprep.subr.bf16.mxu0 %v3513
    %5231 = vmatpush1.bf16.msra.mxu0 %v3512
    %5232 = vmatprep.subr.bf16.mxu0 %v3507
    %5233 = vmatpush1.bf16.msra.mxu0 %v3506
    %5234 = vmatprep.subr.bf16.mxu0 %v3501
    %5235 = vmatpush1.bf16.msra.mxu0 %v3500
    %5236 = vmatprep.subr.bf16.mxu0 %v3495
    %5237 = vmatpush1.bf16.msra.mxu0 %v3494
    %5238 = vmatprep.subr.bf16.mxu0 %v3489
    %5239 = vmatpush1.bf16.msra.mxu0 %v3488
    %5240 = vmatprep.subr.bf16.mxu0 %v3483
    %5241 = vmatpush1.bf16.msra.mxu0 %v3482
    %5242 = vmatprep.subr.bf16.mxu0 %v3477
    %5243 = vmatpush1.bf16.msra.mxu0 %v3476
    %5244 = vmatprep.subr.bf16.mxu0 %v3567
    %5245 = vmatpush2.bf16.msra.mxu0 %v3566
    %5246 = vmatprep.subr.bf16.mxu0 %v3561
    %5247 = vmatpush2.bf16.msra.mxu0 %v3560
    %5248 = vmatprep.subr.bf16.mxu0 %v3555
    %5249 = vmatpush2.bf16.msra.mxu0 %v3554
    %5250 = vmatprep.subr.bf16.mxu0 %v3549
    %5251 = vmatpush2.bf16.msra.mxu0 %v3548
    %5252 = vmatprep.subr.bf16.mxu0 %v3543
    %5253 = vmatpush2.bf16.msra.mxu0 %v3542
    %5254 = vmatprep.subr.bf16.mxu0 %v3537
    %5255 = vmatpush2.bf16.msra.mxu0 %v3536
    %5256 = vmatprep.subr.bf16.mxu0 %v3531
    %5257 = vmatpush2.bf16.msra.mxu0 %v3530
    %5258 = vmatprep.subr.bf16.mxu0 %v3525
    %5259 = vmatpush2.bf16.msra.mxu0 %v3524
    %5260 = vmatprep.mubr.bf16.mxu0 %v167
    %5261 = vmatmul.mubr.bf16.gmra.mxu0 %v166
    %v5262 = vpop.f32.mrf.mxu0
    %v5263 = vadd.f32 %v5222, %v5262
    %v5264 = vpop.f32.mrf.mxu0
    %v5265 = vadd.f32 %v5224, %v5264
    %v5266 = vpop.f32.mrf.mxu0
    %v5267 = vpop.f32.mrf.mxu0
    %5268 = vdwg.mxu0
    %5269 = vmatprep.subr.bf16.mxu0 %v3615
    %5270 = vmatpush1.bf16.msra.mxu0 %v3614
    %5271 = vmatprep.subr.bf16.mxu0 %v3609
    %5272 = vmatpush1.bf16.msra.mxu0 %v3608
    %5273 = vmatprep.subr.bf16.mxu0 %v3603
    %5274 = vmatpush1.bf16.msra.mxu0 %v3602
    %5275 = vmatprep.subr.bf16.mxu0 %v3597
    %5276 = vmatpush1.bf16.msra.mxu0 %v3596
    %5277 = vmatprep.subr.bf16.mxu0 %v3591
    %5278 = vmatpush1.bf16.msra.mxu0 %v3590
    %5279 = vmatprep.subr.bf16.mxu0 %v3585
    %5280 = vmatpush1.bf16.msra.mxu0 %v3584
    %5281 = vmatprep.subr.bf16.mxu0 %v3579
    %5282 = vmatpush1.bf16.msra.mxu0 %v3578
    %5283 = vmatprep.subr.bf16.mxu0 %v3573
    %5284 = vmatpush1.bf16.msra.mxu0 %v3572
    %5285 = vmatprep.subr.bf16.mxu0 %v3663
    %5286 = vmatpush2.bf16.msra.mxu0 %v3662
    %5287 = vmatprep.subr.bf16.mxu0 %v3657
    %5288 = vmatpush2.bf16.msra.mxu0 %v3656
    %5289 = vmatprep.subr.bf16.mxu0 %v3651
    %5290 = vmatpush2.bf16.msra.mxu0 %v3650
    %5291 = vmatprep.subr.bf16.mxu0 %v3645
    %5292 = vmatpush2.bf16.msra.mxu0 %v3644
    %5293 = vmatprep.subr.bf16.mxu0 %v3639
    %5294 = vmatpush2.bf16.msra.mxu0 %v3638
    %5295 = vmatprep.subr.bf16.mxu0 %v3633
    %5296 = vmatpush2.bf16.msra.mxu0 %v3632
    %5297 = vmatprep.subr.bf16.mxu0 %v3627
    %5298 = vmatpush2.bf16.msra.mxu0 %v3626
    %5299 = vmatprep.subr.bf16.mxu0 %v3621
    %5300 = vmatpush2.bf16.msra.mxu0 %v3620
    %5301 = vmatprep.mubr.bf16.mxu0 %v169
    %5302 = vmatmul.mubr.bf16.gmra.mxu0 %v168
    %v5303 = vpop.f32.mrf.mxu0
    %v5304 = vadd.f32 %v5263, %v5303
    %v5305 = vpop.f32.mrf.mxu0
    %v5306 = vadd.f32 %v5265, %v5305
    %v5307 = vpop.f32.mrf.mxu0
    %v5308 = vpop.f32.mrf.mxu0
    %5309 = vdwg.mxu0
    %5310 = vmatprep.subr.bf16.mxu0 %v3711
    %5311 = vmatpush1.bf16.msra.mxu0 %v3710
    %5312 = vmatprep.subr.bf16.mxu0 %v3705
    %5313 = vmatpush1.bf16.msra.mxu0 %v3704
    %5314 = vmatprep.subr.bf16.mxu0 %v3699
    %5315 = vmatpush1.bf16.msra.mxu0 %v3698
    %5316 = vmatprep.subr.bf16.mxu0 %v3693
    %5317 = vmatpush1.bf16.msra.mxu0 %v3692
    %5318 = vmatprep.subr.bf16.mxu0 %v3687
    %5319 = vmatpush1.bf16.msra.mxu0 %v3686
    %5320 = vmatprep.subr.bf16.mxu0 %v3681
    %5321 = vmatpush1.bf16.msra.mxu0 %v3680
    %5322 = vmatprep.subr.bf16.mxu0 %v3675
    %5323 = vmatpush1.bf16.msra.mxu0 %v3674
    %5324 = vmatprep.subr.bf16.mxu0 %v3669
    %5325 = vmatpush1.bf16.msra.mxu0 %v3668
    %5326 = vmatprep.subr.bf16.mxu0 %v3759
    %5327 = vmatpush2.bf16.msra.mxu0 %v3758
    %5328 = vmatprep.subr.bf16.mxu0 %v3753
    %5329 = vmatpush2.bf16.msra.mxu0 %v3752
    %5330 = vmatprep.subr.bf16.mxu0 %v3747
    %5331 = vmatpush2.bf16.msra.mxu0 %v3746
    %5332 = vmatprep.subr.bf16.mxu0 %v3741
    %5333 = vmatpush2.bf16.msra.mxu0 %v3740
    %5334 = vmatprep.subr.bf16.mxu0 %v3735
    %5335 = vmatpush2.bf16.msra.mxu0 %v3734
    %5336 = vmatprep.subr.bf16.mxu0 %v3729
    %5337 = vmatpush2.bf16.msra.mxu0 %v3728
    %5338 = vmatprep.subr.bf16.mxu0 %v3723
    %5339 = vmatpush2.bf16.msra.mxu0 %v3722
    %5340 = vmatprep.subr.bf16.mxu0 %v3717
    %5341 = vmatpush2.bf16.msra.mxu0 %v3716
    %5342 = vmatprep.mubr.bf16.mxu0 %v171
    %5343 = vmatmul.mubr.bf16.gmra.mxu0 %v170
    %v5344 = vpop.f32.mrf.mxu0
    %v5345 = vadd.f32 %v5304, %v5344
    %v5346 = vpop.f32.mrf.mxu0
    %v5347 = vadd.f32 %v5306, %v5346
    %v5348 = vpop.f32.mrf.mxu0
    %v5349 = vpop.f32.mrf.mxu0
    %5350 = vdwg.mxu0
    %5351 = vmatprep.subr.bf16.mxu0 %v3807
    %5352 = vmatpush1.bf16.msra.mxu0 %v3806
    %5353 = vmatprep.subr.bf16.mxu0 %v3801
    %5354 = vmatpush1.bf16.msra.mxu0 %v3800
    %5355 = vmatprep.subr.bf16.mxu0 %v3795
    %5356 = vmatpush1.bf16.msra.mxu0 %v3794
    %5357 = vmatprep.subr.bf16.mxu0 %v3789
    %5358 = vmatpush1.bf16.msra.mxu0 %v3788
    %5359 = vmatprep.subr.bf16.mxu0 %v3783
    %5360 = vmatpush1.bf16.msra.mxu0 %v3782
    %5361 = vmatprep.subr.bf16.mxu0 %v3777
    %5362 = vmatpush1.bf16.msra.mxu0 %v3776
    %5363 = vmatprep.subr.bf16.mxu0 %v3771
    %5364 = vmatpush1.bf16.msra.mxu0 %v3770
    %5365 = vmatprep.subr.bf16.mxu0 %v3765
    %5366 = vmatpush1.bf16.msra.mxu0 %v3764
    %5367 = vmatprep.subr.bf16.mxu0 %v3855
    %5368 = vmatpush2.bf16.msra.mxu0 %v3854
    %5369 = vmatprep.subr.bf16.mxu0 %v3849
    %5370 = vmatpush2.bf16.msra.mxu0 %v3848
    %5371 = vmatprep.subr.bf16.mxu0 %v3843
    %5372 = vmatpush2.bf16.msra.mxu0 %v3842
    %5373 = vmatprep.subr.bf16.mxu0 %v3837
    %5374 = vmatpush2.bf16.msra.mxu0 %v3836
    %5375 = vmatprep.subr.bf16.mxu0 %v3831
    %5376 = vmatpush2.bf16.msra.mxu0 %v3830
    %5377 = vmatprep.subr.bf16.mxu0 %v3825
    %5378 = vmatpush2.bf16.msra.mxu0 %v3824
    %5379 = vmatprep.subr.bf16.mxu0 %v3819
    %5380 = vmatpush2.bf16.msra.mxu0 %v3818
    %5381 = vmatprep.subr.bf16.mxu0 %v3813
    %5382 = vmatpush2.bf16.msra.mxu0 %v3812
    %5383 = vmatprep.mubr.bf16.mxu0 %v173
    %5384 = vmatmul.mubr.bf16.gmra.mxu0 %v172
    %v5385 = vpop.f32.mrf.mxu0
    %v5386 = vadd.f32 %v5345, %v5385
    %v5387 = vpop.f32.mrf.mxu0
    %v5388 = vadd.f32 %v5347, %v5387
    %v5389 = vpop.f32.mrf.mxu0
    %v5390 = vpop.f32.mrf.mxu0
    %5391 = vdwg.mxu0
    %5392 = vmatprep.subr.bf16.mxu0 %v3903
    %5393 = vmatpush1.bf16.msra.mxu0 %v3902
    %5394 = vmatprep.subr.bf16.mxu0 %v3897
    %5395 = vmatpush1.bf16.msra.mxu0 %v3896
    %5396 = vmatprep.subr.bf16.mxu0 %v3891
    %5397 = vmatpush1.bf16.msra.mxu0 %v3890
    %5398 = vmatprep.subr.bf16.mxu0 %v3885
    %5399 = vmatpush1.bf16.msra.mxu0 %v3884
    %5400 = vmatprep.subr.bf16.mxu0 %v3879
    %5401 = vmatpush1.bf16.msra.mxu0 %v3878
    %5402 = vmatprep.subr.bf16.mxu0 %v3873
    %5403 = vmatpush1.bf16.msra.mxu0 %v3872
    %5404 = vmatprep.subr.bf16.mxu0 %v3867
    %5405 = vmatpush1.bf16.msra.mxu0 %v3866
    %5406 = vmatprep.subr.bf16.mxu0 %v3861
    %5407 = vmatpush1.bf16.msra.mxu0 %v3860
    %5408 = vmatprep.subr.bf16.mxu0 %v3951
    %5409 = vmatpush2.bf16.msra.mxu0 %v3950
    %5410 = vmatprep.subr.bf16.mxu0 %v3945
    %5411 = vmatpush2.bf16.msra.mxu0 %v3944
    %5412 = vmatprep.subr.bf16.mxu0 %v3939
    %5413 = vmatpush2.bf16.msra.mxu0 %v3938
    %5414 = vmatprep.subr.bf16.mxu0 %v3933
    %5415 = vmatpush2.bf16.msra.mxu0 %v3932
    %5416 = vmatprep.subr.bf16.mxu0 %v3927
    %5417 = vmatpush2.bf16.msra.mxu0 %v3926
    %5418 = vmatprep.subr.bf16.mxu0 %v3921
    %5419 = vmatpush2.bf16.msra.mxu0 %v3920
    %5420 = vmatprep.subr.bf16.mxu0 %v3915
    %5421 = vmatpush2.bf16.msra.mxu0 %v3914
    %5422 = vmatprep.subr.bf16.mxu0 %v3909
    %5423 = vmatpush2.bf16.msra.mxu0 %v3908
    %5424 = vmatprep.mubr.bf16.mxu0 %v175
    %5425 = vmatmul.mubr.bf16.gmra.mxu0 %v174
    %v5426 = vpop.f32.mrf.mxu0
    %v5427 = vadd.f32 %v5386, %v5426
    %v5428 = vpop.f32.mrf.mxu0
    %v5429 = vadd.f32 %v5388, %v5428
    %v5430 = vpop.f32.mrf.mxu0
    %v5431 = vpop.f32.mrf.mxu0
    %5432 = vdwg.mxu0
    %5433 = vmatprep.subr.bf16.mxu0 %v3999
    %5434 = vmatpush1.bf16.msra.mxu0 %v3998
    %5435 = vmatprep.subr.bf16.mxu0 %v3993
    %5436 = vmatpush1.bf16.msra.mxu0 %v3992
    %5437 = vmatprep.subr.bf16.mxu0 %v3987
    %5438 = vmatpush1.bf16.msra.mxu0 %v3986
    %5439 = vmatprep.subr.bf16.mxu0 %v3981
    %5440 = vmatpush1.bf16.msra.mxu0 %v3980
    %5441 = vmatprep.subr.bf16.mxu0 %v3975
    %5442 = vmatpush1.bf16.msra.mxu0 %v3974
    %5443 = vmatprep.subr.bf16.mxu0 %v3969
    %5444 = vmatpush1.bf16.msra.mxu0 %v3968
    %5445 = vmatprep.subr.bf16.mxu0 %v3963
    %5446 = vmatpush1.bf16.msra.mxu0 %v3962
    %5447 = vmatprep.subr.bf16.mxu0 %v3957
    %5448 = vmatpush1.bf16.msra.mxu0 %v3956
    %5449 = vmatprep.subr.bf16.mxu0 %v4047
    %5450 = vmatpush2.bf16.msra.mxu0 %v4046
    %5451 = vmatprep.subr.bf16.mxu0 %v4041
    %5452 = vmatpush2.bf16.msra.mxu0 %v4040
    %5453 = vmatprep.subr.bf16.mxu0 %v4035
    %5454 = vmatpush2.bf16.msra.mxu0 %v4034
    %5455 = vmatprep.subr.bf16.mxu0 %v4029
    %5456 = vmatpush2.bf16.msra.mxu0 %v4028
    %5457 = vmatprep.subr.bf16.mxu0 %v4023
    %5458 = vmatpush2.bf16.msra.mxu0 %v4022
    %5459 = vmatprep.subr.bf16.mxu0 %v4017
    %5460 = vmatpush2.bf16.msra.mxu0 %v4016
    %5461 = vmatprep.subr.bf16.mxu0 %v4011
    %5462 = vmatpush2.bf16.msra.mxu0 %v4010
    %5463 = vmatprep.subr.bf16.mxu0 %v4005
    %5464 = vmatpush2.bf16.msra.mxu0 %v4004
    %5465 = vmatprep.mubr.bf16.mxu0 %v177
    %5466 = vmatmul.mubr.bf16.gmra.mxu0 %v176
    %v5467 = vpop.f32.mrf.mxu0
    %v5468 = vadd.f32 %v5427, %v5467
    %v5469 = vpop.f32.mrf.mxu0
    %v5470 = vadd.f32 %v5429, %v5469
    %v5471 = vpop.f32.mrf.mxu0
    %v5472 = vpop.f32.mrf.mxu0
    %5473 = vdwg.mxu0
    %5474 = vmatprep.subr.bf16.mxu0 %v3329
    %5475 = vmatpush1.bf16.msra.mxu0 %v3328
    %5476 = vmatprep.subr.bf16.mxu0 %v3323
    %5477 = vmatpush1.bf16.msra.mxu0 %v3322
    %5478 = vmatprep.subr.bf16.mxu0 %v3317
    %5479 = vmatpush1.bf16.msra.mxu0 %v3316
    %5480 = vmatprep.subr.bf16.mxu0 %v3311
    %5481 = vmatpush1.bf16.msra.mxu0 %v3310
    %5482 = vmatprep.subr.bf16.mxu0 %v3305
    %5483 = vmatpush1.bf16.msra.mxu0 %v3304
    %5484 = vmatprep.subr.bf16.mxu0 %v3299
    %5485 = vmatpush1.bf16.msra.mxu0 %v3298
    %5486 = vmatprep.subr.bf16.mxu0 %v3293
    %5487 = vmatpush1.bf16.msra.mxu0 %v3292
    %5488 = vmatprep.subr.bf16.mxu0 %v3287
    %5489 = vmatpush1.bf16.msra.mxu0 %v3286
    %5490 = vmatprep.subr.bf16.mxu0 %v3377
    %5491 = vmatpush2.bf16.msra.mxu0 %v3376
    %5492 = vmatprep.subr.bf16.mxu0 %v3371
    %5493 = vmatpush2.bf16.msra.mxu0 %v3370
    %5494 = vmatprep.subr.bf16.mxu0 %v3365
    %5495 = vmatpush2.bf16.msra.mxu0 %v3364
    %5496 = vmatprep.subr.bf16.mxu0 %v3359
    %5497 = vmatpush2.bf16.msra.mxu0 %v3358
    %5498 = vmatprep.subr.bf16.mxu0 %v3353
    %5499 = vmatpush2.bf16.msra.mxu0 %v3352
    %5500 = vmatprep.subr.bf16.mxu0 %v3347
    %5501 = vmatpush2.bf16.msra.mxu0 %v3346
    %5502 = vmatprep.subr.bf16.mxu0 %v3341
    %5503 = vmatpush2.bf16.msra.mxu0 %v3340
    %5504 = vmatprep.subr.bf16.mxu0 %v3335
    %5505 = vmatpush2.bf16.msra.mxu0 %v3334
    %5506 = vmatprep.mubr.bf16.mxu0 %v163
    %5507 = vmatmul.mubr.bf16.gmra.mxu0 %v162
    %v5508 = vpop.f32.mrf.mxu0
    %v5509 = vadd.f32 %v967, %v5508
    %v5510 = vpop.f32.mrf.mxu0
    %v5511 = vadd.f32 %v971, %v5510
    %v5512 = vpop.f32.mrf.mxu0
    %v5513 = vpop.f32.mrf.mxu0
    %5514 = vdwg.mxu0
    %5515 = vmatprep.subr.bf16.mxu0 %v3425
    %5516 = vmatpush1.bf16.msra.mxu0 %v3424
    %5517 = vmatprep.subr.bf16.mxu0 %v3419
    %5518 = vmatpush1.bf16.msra.mxu0 %v3418
    %5519 = vmatprep.subr.bf16.mxu0 %v3413
    %5520 = vmatpush1.bf16.msra.mxu0 %v3412
    %5521 = vmatprep.subr.bf16.mxu0 %v3407
    %5522 = vmatpush1.bf16.msra.mxu0 %v3406
    %5523 = vmatprep.subr.bf16.mxu0 %v3401
    %5524 = vmatpush1.bf16.msra.mxu0 %v3400
    %5525 = vmatprep.subr.bf16.mxu0 %v3395
    %5526 = vmatpush1.bf16.msra.mxu0 %v3394
    %5527 = vmatprep.subr.bf16.mxu0 %v3389
    %5528 = vmatpush1.bf16.msra.mxu0 %v3388
    %5529 = vmatprep.subr.bf16.mxu0 %v3383
    %5530 = vmatpush1.bf16.msra.mxu0 %v3382
    %5531 = vmatprep.subr.bf16.mxu0 %v3473
    %5532 = vmatpush2.bf16.msra.mxu0 %v3472
    %5533 = vmatprep.subr.bf16.mxu0 %v3467
    %5534 = vmatpush2.bf16.msra.mxu0 %v3466
    %5535 = vmatprep.subr.bf16.mxu0 %v3461
    %5536 = vmatpush2.bf16.msra.mxu0 %v3460
    %5537 = vmatprep.subr.bf16.mxu0 %v3455
    %5538 = vmatpush2.bf16.msra.mxu0 %v3454
    %5539 = vmatprep.subr.bf16.mxu0 %v3449
    %5540 = vmatpush2.bf16.msra.mxu0 %v3448
    %5541 = vmatprep.subr.bf16.mxu0 %v3443
    %5542 = vmatpush2.bf16.msra.mxu0 %v3442
    %5543 = vmatprep.subr.bf16.mxu0 %v3437
    %5544 = vmatpush2.bf16.msra.mxu0 %v3436
    %5545 = vmatprep.subr.bf16.mxu0 %v3431
    %5546 = vmatpush2.bf16.msra.mxu0 %v3430
    %5547 = vmatprep.mubr.bf16.mxu0 %v165
    %5548 = vmatmul.mubr.bf16.gmra.mxu0 %v164
    %v5549 = vpop.f32.mrf.mxu0
    %v5550 = vadd.f32 %v5509, %v5549
    %v5551 = vpop.f32.mrf.mxu0
    %v5552 = vadd.f32 %v5511, %v5551
    %v5553 = vpop.f32.mrf.mxu0
    %v5554 = vpop.f32.mrf.mxu0
    %5555 = vdwg.mxu0
    %5556 = vmatprep.subr.bf16.mxu0 %v3521
    %5557 = vmatpush1.bf16.msra.mxu0 %v3520
    %5558 = vmatprep.subr.bf16.mxu0 %v3515
    %5559 = vmatpush1.bf16.msra.mxu0 %v3514
    %5560 = vmatprep.subr.bf16.mxu0 %v3509
    %5561 = vmatpush1.bf16.msra.mxu0 %v3508
    %5562 = vmatprep.subr.bf16.mxu0 %v3503
    %5563 = vmatpush1.bf16.msra.mxu0 %v3502
    %5564 = vmatprep.subr.bf16.mxu0 %v3497
    %5565 = vmatpush1.bf16.msra.mxu0 %v3496
    %5566 = vmatprep.subr.bf16.mxu0 %v3491
    %5567 = vmatpush1.bf16.msra.mxu0 %v3490
    %5568 = vmatprep.subr.bf16.mxu0 %v3485
    %5569 = vmatpush1.bf16.msra.mxu0 %v3484
    %5570 = vmatprep.subr.bf16.mxu0 %v3479
    %5571 = vmatpush1.bf16.msra.mxu0 %v3478
    %5572 = vmatprep.subr.bf16.mxu0 %v3569
    %5573 = vmatpush2.bf16.msra.mxu0 %v3568
    %5574 = vmatprep.subr.bf16.mxu0 %v3563
    %5575 = vmatpush2.bf16.msra.mxu0 %v3562
    %5576 = vmatprep.subr.bf16.mxu0 %v3557
    %5577 = vmatpush2.bf16.msra.mxu0 %v3556
    %5578 = vmatprep.subr.bf16.mxu0 %v3551
    %5579 = vmatpush2.bf16.msra.mxu0 %v3550
    %5580 = vmatprep.subr.bf16.mxu0 %v3545
    %5581 = vmatpush2.bf16.msra.mxu0 %v3544
    %5582 = vmatprep.subr.bf16.mxu0 %v3539
    %5583 = vmatpush2.bf16.msra.mxu0 %v3538
    %5584 = vmatprep.subr.bf16.mxu0 %v3533
    %5585 = vmatpush2.bf16.msra.mxu0 %v3532
    %5586 = vmatprep.subr.bf16.mxu0 %v3527
    %5587 = vmatpush2.bf16.msra.mxu0 %v3526
    %5588 = vmatprep.mubr.bf16.mxu0 %v167
    %5589 = vmatmul.mubr.bf16.gmra.mxu0 %v166
    %v5590 = vpop.f32.mrf.mxu0
    %v5591 = vadd.f32 %v5550, %v5590
    %v5592 = vpop.f32.mrf.mxu0
    %v5593 = vadd.f32 %v5552, %v5592
    %v5594 = vpop.f32.mrf.mxu0
    %v5595 = vpop.f32.mrf.mxu0
    %5596 = vdwg.mxu0
    %5597 = vmatprep.subr.bf16.mxu0 %v3617
    %5598 = vmatpush1.bf16.msra.mxu0 %v3616
    %5599 = vmatprep.subr.bf16.mxu0 %v3611
    %5600 = vmatpush1.bf16.msra.mxu0 %v3610
    %5601 = vmatprep.subr.bf16.mxu0 %v3605
    %5602 = vmatpush1.bf16.msra.mxu0 %v3604
    %5603 = vmatprep.subr.bf16.mxu0 %v3599
    %5604 = vmatpush1.bf16.msra.mxu0 %v3598
    %5605 = vmatprep.subr.bf16.mxu0 %v3593
    %5606 = vmatpush1.bf16.msra.mxu0 %v3592
    %5607 = vmatprep.subr.bf16.mxu0 %v3587
    %5608 = vmatpush1.bf16.msra.mxu0 %v3586
    %5609 = vmatprep.subr.bf16.mxu0 %v3581
    %5610 = vmatpush1.bf16.msra.mxu0 %v3580
    %5611 = vmatprep.subr.bf16.mxu0 %v3575
    %5612 = vmatpush1.bf16.msra.mxu0 %v3574
    %5613 = vmatprep.subr.bf16.mxu0 %v3665
    %5614 = vmatpush2.bf16.msra.mxu0 %v3664
    %5615 = vmatprep.subr.bf16.mxu0 %v3659
    %5616 = vmatpush2.bf16.msra.mxu0 %v3658
    %5617 = vmatprep.subr.bf16.mxu0 %v3653
    %5618 = vmatpush2.bf16.msra.mxu0 %v3652
    %5619 = vmatprep.subr.bf16.mxu0 %v3647
    %5620 = vmatpush2.bf16.msra.mxu0 %v3646
    %5621 = vmatprep.subr.bf16.mxu0 %v3641
    %5622 = vmatpush2.bf16.msra.mxu0 %v3640
    %5623 = vmatprep.subr.bf16.mxu0 %v3635
    %5624 = vmatpush2.bf16.msra.mxu0 %v3634
    %5625 = vmatprep.subr.bf16.mxu0 %v3629
    %5626 = vmatpush2.bf16.msra.mxu0 %v3628
    %5627 = vmatprep.subr.bf16.mxu0 %v3623
    %5628 = vmatpush2.bf16.msra.mxu0 %v3622
    %5629 = vmatprep.mubr.bf16.mxu0 %v169
    %5630 = vmatmul.mubr.bf16.gmra.mxu0 %v168
    %v5631 = vpop.f32.mrf.mxu0
    %v5632 = vadd.f32 %v5591, %v5631
    %v5633 = vpop.f32.mrf.mxu0
    %v5634 = vadd.f32 %v5593, %v5633
    %v5635 = vpop.f32.mrf.mxu0
    %v5636 = vpop.f32.mrf.mxu0
    %5637 = vdwg.mxu0
    %5638 = vmatprep.subr.bf16.mxu0 %v3713
    %5639 = vmatpush1.bf16.msra.mxu0 %v3712
    %5640 = vmatprep.subr.bf16.mxu0 %v3707
    %5641 = vmatpush1.bf16.msra.mxu0 %v3706
    %5642 = vmatprep.subr.bf16.mxu0 %v3701
    %5643 = vmatpush1.bf16.msra.mxu0 %v3700
    %5644 = vmatprep.subr.bf16.mxu0 %v3695
    %5645 = vmatpush1.bf16.msra.mxu0 %v3694
    %5646 = vmatprep.subr.bf16.mxu0 %v3689
    %5647 = vmatpush1.bf16.msra.mxu0 %v3688
    %5648 = vmatprep.subr.bf16.mxu0 %v3683
    %5649 = vmatpush1.bf16.msra.mxu0 %v3682
    %5650 = vmatprep.subr.bf16.mxu0 %v3677
    %5651 = vmatpush1.bf16.msra.mxu0 %v3676
    %5652 = vmatprep.subr.bf16.mxu0 %v3671
    %5653 = vmatpush1.bf16.msra.mxu0 %v3670
    %5654 = vmatprep.subr.bf16.mxu0 %v3761
    %5655 = vmatpush2.bf16.msra.mxu0 %v3760
    %5656 = vmatprep.subr.bf16.mxu0 %v3755
    %5657 = vmatpush2.bf16.msra.mxu0 %v3754
    %5658 = vmatprep.subr.bf16.mxu0 %v3749
    %5659 = vmatpush2.bf16.msra.mxu0 %v3748
    %5660 = vmatprep.subr.bf16.mxu0 %v3743
    %5661 = vmatpush2.bf16.msra.mxu0 %v3742
    %5662 = vmatprep.subr.bf16.mxu0 %v3737
    %5663 = vmatpush2.bf16.msra.mxu0 %v3736
    %5664 = vmatprep.subr.bf16.mxu0 %v3731
    %5665 = vmatpush2.bf16.msra.mxu0 %v3730
    %5666 = vmatprep.subr.bf16.mxu0 %v3725
    %5667 = vmatpush2.bf16.msra.mxu0 %v3724
    %5668 = vmatprep.subr.bf16.mxu0 %v3719
    %5669 = vmatpush2.bf16.msra.mxu0 %v3718
    %5670 = vmatprep.mubr.bf16.mxu0 %v171
    %5671 = vmatmul.mubr.bf16.gmra.mxu0 %v170
    %v5672 = vpop.f32.mrf.mxu0
    %v5673 = vadd.f32 %v5632, %v5672
    %v5674 = vpop.f32.mrf.mxu0
    %v5675 = vadd.f32 %v5634, %v5674
    %v5676 = vpop.f32.mrf.mxu0
    %v5677 = vpop.f32.mrf.mxu0
    %5678 = vdwg.mxu0
    %5679 = vmatprep.subr.bf16.mxu0 %v3809
    %5680 = vmatpush1.bf16.msra.mxu0 %v3808
    %5681 = vmatprep.subr.bf16.mxu0 %v3803
    %5682 = vmatpush1.bf16.msra.mxu0 %v3802
    %5683 = vmatprep.subr.bf16.mxu0 %v3797
    %5684 = vmatpush1.bf16.msra.mxu0 %v3796
    %5685 = vmatprep.subr.bf16.mxu0 %v3791
    %5686 = vmatpush1.bf16.msra.mxu0 %v3790
    %5687 = vmatprep.subr.bf16.mxu0 %v3785
    %5688 = vmatpush1.bf16.msra.mxu0 %v3784
    %5689 = vmatprep.subr.bf16.mxu0 %v3779
    %5690 = vmatpush1.bf16.msra.mxu0 %v3778
    %5691 = vmatprep.subr.bf16.mxu0 %v3773
    %5692 = vmatpush1.bf16.msra.mxu0 %v3772
    %5693 = vmatprep.subr.bf16.mxu0 %v3767
    %5694 = vmatpush1.bf16.msra.mxu0 %v3766
    %5695 = vmatprep.subr.bf16.mxu0 %v3857
    %5696 = vmatpush2.bf16.msra.mxu0 %v3856
    %5697 = vmatprep.subr.bf16.mxu0 %v3851
    %5698 = vmatpush2.bf16.msra.mxu0 %v3850
    %5699 = vmatprep.subr.bf16.mxu0 %v3845
    %5700 = vmatpush2.bf16.msra.mxu0 %v3844
    %5701 = vmatprep.subr.bf16.mxu0 %v3839
    %5702 = vmatpush2.bf16.msra.mxu0 %v3838
    %5703 = vmatprep.subr.bf16.mxu0 %v3833
    %5704 = vmatpush2.bf16.msra.mxu0 %v3832
    %5705 = vmatprep.subr.bf16.mxu0 %v3827
    %5706 = vmatpush2.bf16.msra.mxu0 %v3826
    %5707 = vmatprep.subr.bf16.mxu0 %v3821
    %5708 = vmatpush2.bf16.msra.mxu0 %v3820
    %5709 = vmatprep.subr.bf16.mxu0 %v3815
    %5710 = vmatpush2.bf16.msra.mxu0 %v3814
    %5711 = vmatprep.mubr.bf16.mxu0 %v173
    %5712 = vmatmul.mubr.bf16.gmra.mxu0 %v172
    %v5713 = vpop.f32.mrf.mxu0
    %v5714 = vadd.f32 %v5673, %v5713
    %v5715 = vpop.f32.mrf.mxu0
    %v5716 = vadd.f32 %v5675, %v5715
    %v5717 = vpop.f32.mrf.mxu0
    %v5718 = vpop.f32.mrf.mxu0
    %5719 = vdwg.mxu0
    %5720 = vmatprep.subr.bf16.mxu0 %v3905
    %5721 = vmatpush1.bf16.msra.mxu0 %v3904
    %5722 = vmatprep.subr.bf16.mxu0 %v3899
    %5723 = vmatpush1.bf16.msra.mxu0 %v3898
    %5724 = vmatprep.subr.bf16.mxu0 %v3893
    %5725 = vmatpush1.bf16.msra.mxu0 %v3892
    %5726 = vmatprep.subr.bf16.mxu0 %v3887
    %5727 = vmatpush1.bf16.msra.mxu0 %v3886
    %5728 = vmatprep.subr.bf16.mxu0 %v3881
    %5729 = vmatpush1.bf16.msra.mxu0 %v3880
    %5730 = vmatprep.subr.bf16.mxu0 %v3875
    %5731 = vmatpush1.bf16.msra.mxu0 %v3874
    %5732 = vmatprep.subr.bf16.mxu0 %v3869
    %5733 = vmatpush1.bf16.msra.mxu0 %v3868
    %5734 = vmatprep.subr.bf16.mxu0 %v3863
    %5735 = vmatpush1.bf16.msra.mxu0 %v3862
    %5736 = vmatprep.subr.bf16.mxu0 %v3953
    %5737 = vmatpush2.bf16.msra.mxu0 %v3952
    %5738 = vmatprep.subr.bf16.mxu0 %v3947
    %5739 = vmatpush2.bf16.msra.mxu0 %v3946
    %5740 = vmatprep.subr.bf16.mxu0 %v3941
    %5741 = vmatpush2.bf16.msra.mxu0 %v3940
    %5742 = vmatprep.subr.bf16.mxu0 %v3935
    %5743 = vmatpush2.bf16.msra.mxu0 %v3934
    %5744 = vmatprep.subr.bf16.mxu0 %v3929
    %5745 = vmatpush2.bf16.msra.mxu0 %v3928
    %5746 = vmatprep.subr.bf16.mxu0 %v3923
    %5747 = vmatpush2.bf16.msra.mxu0 %v3922
    %5748 = vmatprep.subr.bf16.mxu0 %v3917
    %5749 = vmatpush2.bf16.msra.mxu0 %v3916
    %5750 = vmatprep.subr.bf16.mxu0 %v3911
    %5751 = vmatpush2.bf16.msra.mxu0 %v3910
    %5752 = vmatprep.mubr.bf16.mxu0 %v175
    %5753 = vmatmul.mubr.bf16.gmra.mxu0 %v174
    %v5754 = vpop.f32.mrf.mxu0
    %v5755 = vadd.f32 %v5714, %v5754
    %v5756 = vpop.f32.mrf.mxu0
    %v5757 = vadd.f32 %v5716, %v5756
    %v5758 = vpop.f32.mrf.mxu0
    %v5759 = vpop.f32.mrf.mxu0
    %5760 = vdwg.mxu0
    %5761 = vmatprep.subr.bf16.mxu0 %v4001
    %5762 = vmatpush1.bf16.msra.mxu0 %v4000
    %5763 = vmatprep.subr.bf16.mxu0 %v3995
    %5764 = vmatpush1.bf16.msra.mxu0 %v3994
    %5765 = vmatprep.subr.bf16.mxu0 %v3989
    %5766 = vmatpush1.bf16.msra.mxu0 %v3988
    %5767 = vmatprep.subr.bf16.mxu0 %v3983
    %5768 = vmatpush1.bf16.msra.mxu0 %v3982
    %5769 = vmatprep.subr.bf16.mxu0 %v3977
    %5770 = vmatpush1.bf16.msra.mxu0 %v3976
    %5771 = vmatprep.subr.bf16.mxu0 %v3971
    %5772 = vmatpush1.bf16.msra.mxu0 %v3970
    %5773 = vmatprep.subr.bf16.mxu0 %v3965
    %5774 = vmatpush1.bf16.msra.mxu0 %v3964
    %5775 = vmatprep.subr.bf16.mxu0 %v3959
    %5776 = vmatpush1.bf16.msra.mxu0 %v3958
    %5777 = vmatprep.subr.bf16.mxu0 %v4049
    %5778 = vmatpush2.bf16.msra.mxu0 %v4048
    %5779 = vmatprep.subr.bf16.mxu0 %v4043
    %5780 = vmatpush2.bf16.msra.mxu0 %v4042
    %5781 = vmatprep.subr.bf16.mxu0 %v4037
    %5782 = vmatpush2.bf16.msra.mxu0 %v4036
    %5783 = vmatprep.subr.bf16.mxu0 %v4031
    %5784 = vmatpush2.bf16.msra.mxu0 %v4030
    %5785 = vmatprep.subr.bf16.mxu0 %v4025
    %5786 = vmatpush2.bf16.msra.mxu0 %v4024
    %5787 = vmatprep.subr.bf16.mxu0 %v4019
    %5788 = vmatpush2.bf16.msra.mxu0 %v4018
    %5789 = vmatprep.subr.bf16.mxu0 %v4013
    %5790 = vmatpush2.bf16.msra.mxu0 %v4012
    %5791 = vmatprep.subr.bf16.mxu0 %v4007
    %5792 = vmatpush2.bf16.msra.mxu0 %v4006
    %5793 = vmatprep.mubr.bf16.mxu0 %v177
    %5794 = vmatmul.mubr.bf16.gmra.mxu0 %v176
    %v5795 = vpop.f32.mrf.mxu0
    %v5796 = vadd.f32 %v5755, %v5795
    %v5797 = vpop.f32.mrf.mxu0
    %v5798 = vadd.f32 %v5757, %v5797
    %v5799 = vpop.f32.mrf.mxu0
    %v5800 = vpop.f32.mrf.mxu0
    %5801 = vdwg.mxu0
    %v5802 = vxor.u32 %v5140, 2147483648
    %v5803 = vxor.u32 %v5142, 2147483648
    %v5804 = vmul.f32 %v5802, 1.442695
    %v5805 = vpow.pop %v5804
    %v5806 = vmul.f32 %v5803, 1.442695
    %v5807 = vpow.pop %v5806
    %v5808 = vadd.f32 %v5805, 1.0
    %v5809 = vadd.f32 %v5807, 1.0
    %v5810 = vrcp.pop %v5808
    %v5811 = vmul.f32 1.0, %v5810
    %v5812 = vrcp.pop %v5809
    %v5813 = vmul.f32 1.0, %v5812
    %v5814 = vtanh.pop %v5468
    %v5815 = vtanh.pop %v5470
    %v5816 = vxor.u32 %v5796, 2147483648
    %v5817 = vxor.u32 %v5798, 2147483648
    %v5818 = vmul.f32 %v5816, 1.442695
    %v5819 = vpow.pop %v5818
    %v5820 = vmul.f32 %v5817, 1.442695
    %v5821 = vpow.pop %v5820
    %v5822 = vadd.f32 %v5819, 1.0
    %v5823 = vadd.f32 %v5821, 1.0
    %v5824 = vrcp.pop %v5822
    %v5825 = vmul.f32 1.0, %v5824
    %v5826 = vrcp.pop %v5823
    %v5827 = vmul.f32 1.0, %v5826
    %v5828 = vmul.f32 %v5811, %v5814
    %v5829 = vmul.f32 %v5813, %v5815
    %v5830 = vtanh.pop %v5828
    %v5831 = vtanh.pop %v5829
    %v5832 = vmul.f32 %v5825, %v5830
    %v5833 = vmul.f32 %v5827, %v5831
    %v5834 = vpack.c.bf16 %v5832, %v5832
    %v5835 = vpack.c.bf16 %v5833, %v5833
    %v5836 = vld [vmem:[#allocation8] sm:$0xff]
    %v5837 = vld [vmem:[#allocation8 + $0x8] sm:$0xff]
    %v5838 = vld [vmem:[#allocation8 + $0x10] sm:$0xff]
    %v5839 = vld [vmem:[#allocation8 + $0x18] sm:$0xff]
    %v5840 = vld [vmem:[#allocation8 + $0x20] sm:$0xff]
    %v5841 = vld [vmem:[#allocation8 + $0x28] sm:$0xff]
    %v5842 = vld [vmem:[#allocation8 + $0x30] sm:$0xff]
    %v5843 = vld [vmem:[#allocation8 + $0x38] sm:$0xff]
    %v5844 = vld [vmem:[#allocation8 + $0x40] sm:$0xff]
    %v5845 = vld [vmem:[#allocation8 + $0x48] sm:$0xff]
    %v5846 = vld [vmem:[#allocation8 + $0x50] sm:$0xff]
    %v5847 = vld [vmem:[#allocation8 + $0x58] sm:$0xff]
    %v5848 = vld [vmem:[#allocation8 + $0x60] sm:$0xff]
    %v5849 = vld [vmem:[#allocation8 + $0x68] sm:$0xff]
    %v5850 = vld [vmem:[#allocation8 + $0x70] sm:$0xff]
    %v5851 = vld [vmem:[#allocation8 + $0x78] sm:$0xff]
    %v5852 = vld [vmem:[#allocation8 + $0x80] sm:$0xff]
    %v5853 = vld [vmem:[#allocation8 + $0x88] sm:$0xff]
    %v5854 = vld [vmem:[#allocation8 + $0x90] sm:$0xff]
    %v5855 = vld [vmem:[#allocation8 + $0x98] sm:$0xff]
    %v5856 = vld [vmem:[#allocation8 + $0xa0] sm:$0xff]
    %v5857 = vld [vmem:[#allocation8 + $0xa8] sm:$0xff]
    %v5858 = vld [vmem:[#allocation8 + $0xb0] sm:$0xff]
    %v5859 = vld [vmem:[#allocation8 + $0xb8] sm:$0xff]
    %v5860 = vld [vmem:[#allocation8 + $0xc0] sm:$0xff]
    %v5861 = vld [vmem:[#allocation8 + $0xc8] sm:$0xff]
    %v5862 = vld [vmem:[#allocation8 + $0xd0] sm:$0xff]
    %v5863 = vld [vmem:[#allocation8 + $0xd8] sm:$0xff]
    %v5864 = vld [vmem:[#allocation8 + $0xe0] sm:$0xff]
    %v5865 = vld [vmem:[#allocation8 + $0xe8] sm:$0xff]
    %v5866 = vld [vmem:[#allocation8 + $0xf0] sm:$0xff]
    %v5867 = vld [vmem:[#allocation8 + $0xf8] sm:$0xff]
    %v5868 = vld [vmem:[#allocation8 + $0x100] sm:$0xff]
    %v5869 = vld [vmem:[#allocation8 + $0x108] sm:$0xff]
    %v5870 = vld [vmem:[#allocation8 + $0x110] sm:$0xff]
    %v5871 = vld [vmem:[#allocation8 + $0x118] sm:$0xff]
    %v5872 = vld [vmem:[#allocation8 + $0x120] sm:$0xff]
    %v5873 = vld [vmem:[#allocation8 + $0x128] sm:$0xff]
    %v5874 = vld [vmem:[#allocation8 + $0x130] sm:$0xff]
    %v5875 = vld [vmem:[#allocation8 + $0x138] sm:$0xff]
    %v5876 = vld [vmem:[#allocation8 + $0x140] sm:$0xff]
    %v5877 = vld [vmem:[#allocation8 + $0x148] sm:$0xff]
    %v5878 = vld [vmem:[#allocation8 + $0x150] sm:$0xff]
    %v5879 = vld [vmem:[#allocation8 + $0x158] sm:$0xff]
    %v5880 = vld [vmem:[#allocation8 + $0x160] sm:$0xff]
    %v5881 = vld [vmem:[#allocation8 + $0x168] sm:$0xff]
    %v5882 = vld [vmem:[#allocation8 + $0x170] sm:$0xff]
    %v5883 = vld [vmem:[#allocation8 + $0x178] sm:$0xff]
    %v5884 = vld [vmem:[#allocation8 + $0x180] sm:$0xff]
    %v5885 = vld [vmem:[#allocation8 + $0x188] sm:$0xff]
    %v5886 = vld [vmem:[#allocation8 + $0x190] sm:$0xff]
    %v5887 = vld [vmem:[#allocation8 + $0x198] sm:$0xff]
    %v5888 = vld [vmem:[#allocation8 + $0x1a0] sm:$0xff]
    %v5889 = vld [vmem:[#allocation8 + $0x1a8] sm:$0xff]
    %v5890 = vld [vmem:[#allocation8 + $0x1b0] sm:$0xff]
    %v5891 = vld [vmem:[#allocation8 + $0x1b8] sm:$0xff]
    %v5892 = vld [vmem:[#allocation8 + $0x1c0] sm:$0xff]
    %v5893 = vld [vmem:[#allocation8 + $0x1c8] sm:$0xff]
    %v5894 = vld [vmem:[#allocation8 + $0x1d0] sm:$0xff]
    %v5895 = vld [vmem:[#allocation8 + $0x1d8] sm:$0xff]
    %v5896 = vld [vmem:[#allocation8 + $0x1e0] sm:$0xff]
    %v5897 = vld [vmem:[#allocation8 + $0x1e8] sm:$0xff]
    %v5898 = vld [vmem:[#allocation8 + $0x1f0] sm:$0xff]
    %v5899 = vld [vmem:[#allocation8 + $0x1f8] sm:$0xff]
    %v5900 = vld [vmem:[#allocation8 + $0x200] sm:$0xff]
    %v5901 = vld [vmem:[#allocation8 + $0x208] sm:$0xff]
    %v5902 = vld [vmem:[#allocation8 + $0x210] sm:$0xff]
    %v5903 = vld [vmem:[#allocation8 + $0x218] sm:$0xff]
    %v5904 = vld [vmem:[#allocation8 + $0x220] sm:$0xff]
    %v5905 = vld [vmem:[#allocation8 + $0x228] sm:$0xff]
    %v5906 = vld [vmem:[#allocation8 + $0x230] sm:$0xff]
    %v5907 = vld [vmem:[#allocation8 + $0x238] sm:$0xff]
    %v5908 = vld [vmem:[#allocation8 + $0x240] sm:$0xff]
    %v5909 = vld [vmem:[#allocation8 + $0x248] sm:$0xff]
    %v5910 = vld [vmem:[#allocation8 + $0x250] sm:$0xff]
    %v5911 = vld [vmem:[#allocation8 + $0x258] sm:$0xff]
    %v5912 = vld [vmem:[#allocation8 + $0x260] sm:$0xff]
    %v5913 = vld [vmem:[#allocation8 + $0x268] sm:$0xff]
    %v5914 = vld [vmem:[#allocation8 + $0x270] sm:$0xff]
    %v5915 = vld [vmem:[#allocation8 + $0x278] sm:$0xff]
    %v5916 = vld [vmem:[#allocation8 + $0x280] sm:$0xff]
    %v5917 = vld [vmem:[#allocation8 + $0x288] sm:$0xff]
    %v5918 = vld [vmem:[#allocation8 + $0x290] sm:$0xff]
    %v5919 = vld [vmem:[#allocation8 + $0x298] sm:$0xff]
    %v5920 = vld [vmem:[#allocation8 + $0x2a0] sm:$0xff]
    %v5921 = vld [vmem:[#allocation8 + $0x2a8] sm:$0xff]
    %v5922 = vld [vmem:[#allocation8 + $0x2b0] sm:$0xff]
    %v5923 = vld [vmem:[#allocation8 + $0x2b8] sm:$0xff]
    %v5924 = vld [vmem:[#allocation8 + $0x2c0] sm:$0xff]
    %v5925 = vld [vmem:[#allocation8 + $0x2c8] sm:$0xff]
    %v5926 = vld [vmem:[#allocation8 + $0x2d0] sm:$0xff]
    %v5927 = vld [vmem:[#allocation8 + $0x2d8] sm:$0xff]
    %v5928 = vld [vmem:[#allocation8 + $0x2e0] sm:$0xff]
    %v5929 = vld [vmem:[#allocation8 + $0x2e8] sm:$0xff]
    %v5930 = vld [vmem:[#allocation8 + $0x2f0] sm:$0xff]
    %v5931 = vld [vmem:[#allocation8 + $0x2f8] sm:$0xff]
    %v5932 = vld [vmem:[#allocation10] sm:$0x3f]
    %v5934 = vlaneseq
    %v5935 = vshrl.u32 %v5934, 7
    %v5936 = vsub.s32 0, %v5935
    %v5937 = vrot.slane %v5932, %v5936
    %v5938 = vlaneseq
    %v5939 = vshrl.u32 %v5938, 7
    %v5940 = vsub.s32 1, %v5939
    %v5941 = vrot.slane %v5932, %v5940
    %v5942 = vlaneseq
    %v5943 = vshrl.u32 %v5942, 7
    %v5944 = vsub.s32 2, %v5943
    %v5945 = vrot.slane %v5932, %v5944
    %v5946 = vlaneseq
    %v5947 = vshrl.u32 %v5946, 7
    %v5948 = vsub.s32 3, %v5947
    %v5949 = vrot.slane %v5932, %v5948
    %v5950 = vlaneseq
    %v5951 = vshrl.u32 %v5950, 7
    %v5952 = vsub.s32 4, %v5951
    %v5953 = vrot.slane %v5932, %v5952
    %v5954 = vlaneseq
    %v5955 = vshrl.u32 %v5954, 7
    %v5956 = vsub.s32 5, %v5955
    %v5957 = vrot.slane %v5932, %v5956
    %v6060 = vunpack.c.l.b16 %v5836
    %v6061 = vunpack.c.h.b16 %v5836
    %v6062 = vunpack.c.l.b16 %v5837
    %v6063 = vunpack.c.h.b16 %v5837
    %v6064 = vunpack.c.l.b16 %v5838
    %v6065 = vunpack.c.h.b16 %v5838
    %v6066 = vunpack.c.l.b16 %v5839
    %v6067 = vunpack.c.h.b16 %v5839
    %v6068 = vunpack.c.l.b16 %v5840
    %v6069 = vunpack.c.h.b16 %v5840
    %v6070 = vunpack.c.l.b16 %v5841
    %v6071 = vunpack.c.h.b16 %v5841
    %v6072 = vunpack.c.l.b16 %v5842
    %v6073 = vunpack.c.h.b16 %v5842
    %v6074 = vunpack.c.l.b16 %v5843
    %v6075 = vunpack.c.h.b16 %v5843
    %v6076 = vunpack.c.l.b16 %v5844
    %v6077 = vunpack.c.h.b16 %v5844
    %v6078 = vunpack.c.l.b16 %v5845
    %v6079 = vunpack.c.h.b16 %v5845
    %v6080 = vunpack.c.l.b16 %v5846
    %v6081 = vunpack.c.h.b16 %v5846
    %v6082 = vunpack.c.l.b16 %v5847
    %v6083 = vunpack.c.h.b16 %v5847
    %v6084 = vunpack.c.l.b16 %v5848
    %v6085 = vunpack.c.h.b16 %v5848
    %v6086 = vunpack.c.l.b16 %v5849
    %v6087 = vunpack.c.h.b16 %v5849
    %v6088 = vunpack.c.l.b16 %v5850
    %v6089 = vunpack.c.h.b16 %v5850
    %v6090 = vunpack.c.l.b16 %v5851
    %v6091 = vunpack.c.h.b16 %v5851
    %v6092 = vunpack.c.l.b16 %v5852
    %v6093 = vunpack.c.h.b16 %v5852
    %v6094 = vunpack.c.l.b16 %v5853
    %v6095 = vunpack.c.h.b16 %v5853
    %v6096 = vunpack.c.l.b16 %v5854
    %v6097 = vunpack.c.h.b16 %v5854
    %v6098 = vunpack.c.l.b16 %v5855
    %v6099 = vunpack.c.h.b16 %v5855
    %v6100 = vunpack.c.l.b16 %v5856
    %v6101 = vunpack.c.h.b16 %v5856
    %v6102 = vunpack.c.l.b16 %v5857
    %v6103 = vunpack.c.h.b16 %v5857
    %v6104 = vunpack.c.l.b16 %v5858
    %v6105 = vunpack.c.h.b16 %v5858
    %v6106 = vunpack.c.l.b16 %v5859
    %v6107 = vunpack.c.h.b16 %v5859
    %v6108 = vunpack.c.l.b16 %v5860
    %v6109 = vunpack.c.h.b16 %v5860
    %v6110 = vunpack.c.l.b16 %v5861
    %v6111 = vunpack.c.h.b16 %v5861
    %v6112 = vunpack.c.l.b16 %v5862
    %v6113 = vunpack.c.h.b16 %v5862
    %v6114 = vunpack.c.l.b16 %v5863
    %v6115 = vunpack.c.h.b16 %v5863
    %v6116 = vunpack.c.l.b16 %v5864
    %v6117 = vunpack.c.h.b16 %v5864
    %v6118 = vunpack.c.l.b16 %v5865
    %v6119 = vunpack.c.h.b16 %v5865
    %v6120 = vunpack.c.l.b16 %v5866
    %v6121 = vunpack.c.h.b16 %v5866
    %v6122 = vunpack.c.l.b16 %v5867
    %v6123 = vunpack.c.h.b16 %v5867
    %v6124 = vunpack.c.l.b16 %v5868
    %v6125 = vunpack.c.h.b16 %v5868
    %v6126 = vunpack.c.l.b16 %v5869
    %v6127 = vunpack.c.h.b16 %v5869
    %v6128 = vunpack.c.l.b16 %v5870
    %v6129 = vunpack.c.h.b16 %v5870
    %v6130 = vunpack.c.l.b16 %v5871
    %v6131 = vunpack.c.h.b16 %v5871
    %v6132 = vunpack.c.l.b16 %v5872
    %v6133 = vunpack.c.h.b16 %v5872
    %v6134 = vunpack.c.l.b16 %v5873
    %v6135 = vunpack.c.h.b16 %v5873
    %v6136 = vunpack.c.l.b16 %v5874
    %v6137 = vunpack.c.h.b16 %v5874
    %v6138 = vunpack.c.l.b16 %v5875
    %v6139 = vunpack.c.h.b16 %v5875
    %v6140 = vunpack.c.l.b16 %v5876
    %v6141 = vunpack.c.h.b16 %v5876
    %v6142 = vunpack.c.l.b16 %v5877
    %v6143 = vunpack.c.h.b16 %v5877
    %v6144 = vunpack.c.l.b16 %v5878
    %v6145 = vunpack.c.h.b16 %v5878
    %v6146 = vunpack.c.l.b16 %v5879
    %v6147 = vunpack.c.h.b16 %v5879
    %v6148 = vunpack.c.l.b16 %v5880
    %v6149 = vunpack.c.h.b16 %v5880
    %v6150 = vunpack.c.l.b16 %v5881
    %v6151 = vunpack.c.h.b16 %v5881
    %v6152 = vunpack.c.l.b16 %v5882
    %v6153 = vunpack.c.h.b16 %v5882
    %v6154 = vunpack.c.l.b16 %v5883
    %v6155 = vunpack.c.h.b16 %v5883
    %v6156 = vunpack.c.l.b16 %v5884
    %v6157 = vunpack.c.h.b16 %v5884
    %v6158 = vunpack.c.l.b16 %v5885
    %v6159 = vunpack.c.h.b16 %v5885
    %v6160 = vunpack.c.l.b16 %v5886
    %v6161 = vunpack.c.h.b16 %v5886
    %v6162 = vunpack.c.l.b16 %v5887
    %v6163 = vunpack.c.h.b16 %v5887
    %v6164 = vunpack.c.l.b16 %v5888
    %v6165 = vunpack.c.h.b16 %v5888
    %v6166 = vunpack.c.l.b16 %v5889
    %v6167 = vunpack.c.h.b16 %v5889
    %v6168 = vunpack.c.l.b16 %v5890
    %v6169 = vunpack.c.h.b16 %v5890
    %v6170 = vunpack.c.l.b16 %v5891
    %v6171 = vunpack.c.h.b16 %v5891
    %v6172 = vunpack.c.l.b16 %v5892
    %v6173 = vunpack.c.h.b16 %v5892
    %v6174 = vunpack.c.l.b16 %v5893
    %v6175 = vunpack.c.h.b16 %v5893
    %v6176 = vunpack.c.l.b16 %v5894
    %v6177 = vunpack.c.h.b16 %v5894
    %v6178 = vunpack.c.l.b16 %v5895
    %v6179 = vunpack.c.h.b16 %v5895
    %v6180 = vunpack.c.l.b16 %v5896
    %v6181 = vunpack.c.h.b16 %v5896
    %v6182 = vunpack.c.l.b16 %v5897
    %v6183 = vunpack.c.h.b16 %v5897
    %v6184 = vunpack.c.l.b16 %v5898
    %v6185 = vunpack.c.h.b16 %v5898
    %v6186 = vunpack.c.l.b16 %v5899
    %v6187 = vunpack.c.h.b16 %v5899
    %v6188 = vunpack.c.l.b16 %v5900
    %v6189 = vunpack.c.h.b16 %v5900
    %v6190 = vunpack.c.l.b16 %v5901
    %v6191 = vunpack.c.h.b16 %v5901
    %v6192 = vunpack.c.l.b16 %v5902
    %v6193 = vunpack.c.h.b16 %v5902
    %v6194 = vunpack.c.l.b16 %v5903
    %v6195 = vunpack.c.h.b16 %v5903
    %v6196 = vunpack.c.l.b16 %v5904
    %v6197 = vunpack.c.h.b16 %v5904
    %v6198 = vunpack.c.l.b16 %v5905
    %v6199 = vunpack.c.h.b16 %v5905
    %v6200 = vunpack.c.l.b16 %v5906
    %v6201 = vunpack.c.h.b16 %v5906
    %v6202 = vunpack.c.l.b16 %v5907
    %v6203 = vunpack.c.h.b16 %v5907
    %v6204 = vunpack.c.l.b16 %v5908
    %v6205 = vunpack.c.h.b16 %v5908
    %v6206 = vunpack.c.l.b16 %v5909
    %v6207 = vunpack.c.h.b16 %v5909
    %v6208 = vunpack.c.l.b16 %v5910
    %v6209 = vunpack.c.h.b16 %v5910
    %v6210 = vunpack.c.l.b16 %v5911
    %v6211 = vunpack.c.h.b16 %v5911
    %v6212 = vunpack.c.l.b16 %v5912
    %v6213 = vunpack.c.h.b16 %v5912
    %v6214 = vunpack.c.l.b16 %v5913
    %v6215 = vunpack.c.h.b16 %v5913
    %v6216 = vunpack.c.l.b16 %v5914
    %v6217 = vunpack.c.h.b16 %v5914
    %v6218 = vunpack.c.l.b16 %v5915
    %v6219 = vunpack.c.h.b16 %v5915
    %v6220 = vunpack.c.l.b16 %v5916
    %v6221 = vunpack.c.h.b16 %v5916
    %v6222 = vunpack.c.l.b16 %v5917
    %v6223 = vunpack.c.h.b16 %v5917
    %v6224 = vunpack.c.l.b16 %v5918
    %v6225 = vunpack.c.h.b16 %v5918
    %v6226 = vunpack.c.l.b16 %v5919
    %v6227 = vunpack.c.h.b16 %v5919
    %v6228 = vunpack.c.l.b16 %v5920
    %v6229 = vunpack.c.h.b16 %v5920
    %v6230 = vunpack.c.l.b16 %v5921
    %v6231 = vunpack.c.h.b16 %v5921
    %v6232 = vunpack.c.l.b16 %v5922
    %v6233 = vunpack.c.h.b16 %v5922
    %v6234 = vunpack.c.l.b16 %v5923
    %v6235 = vunpack.c.h.b16 %v5923
    %v6236 = vunpack.c.l.b16 %v5924
    %v6237 = vunpack.c.h.b16 %v5924
    %v6238 = vunpack.c.l.b16 %v5925
    %v6239 = vunpack.c.h.b16 %v5925
    %v6240 = vunpack.c.l.b16 %v5926
    %v6241 = vunpack.c.h.b16 %v5926
    %v6242 = vunpack.c.l.b16 %v5927
    %v6243 = vunpack.c.h.b16 %v5927
    %v6244 = vunpack.c.l.b16 %v5928
    %v6245 = vunpack.c.h.b16 %v5928
    %v6246 = vunpack.c.l.b16 %v5929
    %v6247 = vunpack.c.h.b16 %v5929
    %v6248 = vunpack.c.l.b16 %v5930
    %v6249 = vunpack.c.h.b16 %v5930
    %v6250 = vunpack.c.l.b16 %v5931
    %v6251 = vunpack.c.h.b16 %v5931
    %v6252 = vpack.c.b16 %v6066, %v6060
    %v6253 = vpack.c.b16 %v6067, %v6061
    %v6254 = vpack.c.b16 %v6068, %v6062
    %v6255 = vpack.c.b16 %v6069, %v6063
    %v6256 = vpack.c.b16 %v6070, %v6064
    %v6257 = vpack.c.b16 %v6071, %v6065
    %v6258 = vpack.c.b16 %v6078, %v6072
    %v6259 = vpack.c.b16 %v6079, %v6073
    %v6260 = vpack.c.b16 %v6080, %v6074
    %v6261 = vpack.c.b16 %v6081, %v6075
    %v6262 = vpack.c.b16 %v6082, %v6076
    %v6263 = vpack.c.b16 %v6083, %v6077
    %v6264 = vpack.c.b16 %v6090, %v6084
    %v6265 = vpack.c.b16 %v6091, %v6085
    %v6266 = vpack.c.b16 %v6092, %v6086
    %v6267 = vpack.c.b16 %v6093, %v6087
    %v6268 = vpack.c.b16 %v6094, %v6088
    %v6269 = vpack.c.b16 %v6095, %v6089
    %v6270 = vpack.c.b16 %v6102, %v6096
    %v6271 = vpack.c.b16 %v6103, %v6097
    %v6272 = vpack.c.b16 %v6104, %v6098
    %v6273 = vpack.c.b16 %v6105, %v6099
    %v6274 = vpack.c.b16 %v6106, %v6100
    %v6275 = vpack.c.b16 %v6107, %v6101
    %v6276 = vpack.c.b16 %v6114, %v6108
    %v6277 = vpack.c.b16 %v6115, %v6109
    %v6278 = vpack.c.b16 %v6116, %v6110
    %v6279 = vpack.c.b16 %v6117, %v6111
    %v6280 = vpack.c.b16 %v6118, %v6112
    %v6281 = vpack.c.b16 %v6119, %v6113
    %v6282 = vpack.c.b16 %v6126, %v6120
    %v6283 = vpack.c.b16 %v6127, %v6121
    %v6284 = vpack.c.b16 %v6128, %v6122
    %v6285 = vpack.c.b16 %v6129, %v6123
    %v6286 = vpack.c.b16 %v6130, %v6124
    %v6287 = vpack.c.b16 %v6131, %v6125
    %v6288 = vpack.c.b16 %v6138, %v6132
    %v6289 = vpack.c.b16 %v6139, %v6133
    %v6290 = vpack.c.b16 %v6140, %v6134
    %v6291 = vpack.c.b16 %v6141, %v6135
    %v6292 = vpack.c.b16 %v6142, %v6136
    %v6293 = vpack.c.b16 %v6143, %v6137
    %v6294 = vpack.c.b16 %v6150, %v6144
    %v6295 = vpack.c.b16 %v6151, %v6145
    %v6296 = vpack.c.b16 %v6152, %v6146
    %v6297 = vpack.c.b16 %v6153, %v6147
    %v6298 = vpack.c.b16 %v6154, %v6148
    %v6299 = vpack.c.b16 %v6155, %v6149
    %v6300 = vpack.c.b16 %v6162, %v6156
    %v6301 = vpack.c.b16 %v6163, %v6157
    %v6302 = vpack.c.b16 %v6164, %v6158
    %v6303 = vpack.c.b16 %v6165, %v6159
    %v6304 = vpack.c.b16 %v6166, %v6160
    %v6305 = vpack.c.b16 %v6167, %v6161
    %v6306 = vpack.c.b16 %v6174, %v6168
    %v6307 = vpack.c.b16 %v6175, %v6169
    %v6308 = vpack.c.b16 %v6176, %v6170
    %v6309 = vpack.c.b16 %v6177, %v6171
    %v6310 = vpack.c.b16 %v6178, %v6172
    %v6311 = vpack.c.b16 %v6179, %v6173
    %v6312 = vpack.c.b16 %v6186, %v6180
    %v6313 = vpack.c.b16 %v6187, %v6181
    %v6314 = vpack.c.b16 %v6188, %v6182
    %v6315 = vpack.c.b16 %v6189, %v6183
    %v6316 = vpack.c.b16 %v6190, %v6184
    %v6317 = vpack.c.b16 %v6191, %v6185
    %v6318 = vpack.c.b16 %v6198, %v6192
    %v6319 = vpack.c.b16 %v6199, %v6193
    %v6320 = vpack.c.b16 %v6200, %v6194
    %v6321 = vpack.c.b16 %v6201, %v6195
    %v6322 = vpack.c.b16 %v6202, %v6196
    %v6323 = vpack.c.b16 %v6203, %v6197
    %v6324 = vpack.c.b16 %v6210, %v6204
    %v6325 = vpack.c.b16 %v6211, %v6205
    %v6326 = vpack.c.b16 %v6212, %v6206
    %v6327 = vpack.c.b16 %v6213, %v6207
    %v6328 = vpack.c.b16 %v6214, %v6208
    %v6329 = vpack.c.b16 %v6215, %v6209
    %v6330 = vpack.c.b16 %v6222, %v6216
    %v6331 = vpack.c.b16 %v6223, %v6217
    %v6332 = vpack.c.b16 %v6224, %v6218
    %v6333 = vpack.c.b16 %v6225, %v6219
    %v6334 = vpack.c.b16 %v6226, %v6220
    %v6335 = vpack.c.b16 %v6227, %v6221
    %v6336 = vpack.c.b16 %v6234, %v6228
    %v6337 = vpack.c.b16 %v6235, %v6229
    %v6338 = vpack.c.b16 %v6236, %v6230
    %v6339 = vpack.c.b16 %v6237, %v6231
    %v6340 = vpack.c.b16 %v6238, %v6232
    %v6341 = vpack.c.b16 %v6239, %v6233
    %v6342 = vpack.c.b16 %v6246, %v6240
    %v6343 = vpack.c.b16 %v6247, %v6241
    %v6344 = vpack.c.b16 %v6248, %v6242
    %v6345 = vpack.c.b16 %v6249, %v6243
    %v6346 = vpack.c.b16 %v6250, %v6244
    %v6347 = vpack.c.b16 %v6251, %v6245
    %6444 = vmatprep.subr.bf16.mxu0 %v6295
    %6445 = vmatpush1.bf16.msra.mxu0 %v6294
    %6446 = vmatprep.subr.bf16.mxu0 %v6289
    %6447 = vmatpush1.bf16.msra.mxu0 %v6288
    %6448 = vmatprep.subr.bf16.mxu0 %v6283
    %6449 = vmatpush1.bf16.msra.mxu0 %v6282
    %6450 = vmatprep.subr.bf16.mxu0 %v6277
    %6451 = vmatpush1.bf16.msra.mxu0 %v6276
    %6452 = vmatprep.subr.bf16.mxu0 %v6271
    %6453 = vmatpush1.bf16.msra.mxu0 %v6270
    %6454 = vmatprep.subr.bf16.mxu0 %v6265
    %6455 = vmatpush1.bf16.msra.mxu0 %v6264
    %6456 = vmatprep.subr.bf16.mxu0 %v6259
    %6457 = vmatpush1.bf16.msra.mxu0 %v6258
    %6458 = vmatprep.subr.bf16.mxu0 %v6253
    %6459 = vmatpush1.bf16.msra.mxu0 %v6252
    %6460 = vmatprep.subr.bf16.mxu0 %v6343
    %6461 = vmatpush2.bf16.msra.mxu0 %v6342
    %6462 = vmatprep.subr.bf16.mxu0 %v6337
    %6463 = vmatpush2.bf16.msra.mxu0 %v6336
    %6464 = vmatprep.subr.bf16.mxu0 %v6331
    %6465 = vmatpush2.bf16.msra.mxu0 %v6330
    %6466 = vmatprep.subr.bf16.mxu0 %v6325
    %6467 = vmatpush2.bf16.msra.mxu0 %v6324
    %6468 = vmatprep.subr.bf16.mxu0 %v6319
    %6469 = vmatpush2.bf16.msra.mxu0 %v6318
    %6470 = vmatprep.subr.bf16.mxu0 %v6313
    %6471 = vmatpush2.bf16.msra.mxu0 %v6312
    %6472 = vmatprep.subr.bf16.mxu0 %v6307
    %6473 = vmatpush2.bf16.msra.mxu0 %v6306
    %6474 = vmatprep.subr.bf16.mxu0 %v6301
    %6475 = vmatpush2.bf16.msra.mxu0 %v6300
    %6476 = vmatprep.mubr.bf16.mxu0 %v5835
    %6477 = vmatmul.mubr.bf16.gmra.mxu0 %v5834
    %v6478 = vpop.f32.mrf.mxu0
    %v6479 = vadd.f32 %v5937, %v6478
    %v6480 = vpop.f32.mrf.mxu0
    %v6481 = vadd.f32 %v5941, %v6480
    %v6482 = vpop.f32.mrf.mxu0
    %v6483 = vpop.f32.mrf.mxu0
    %6484 = vdwg.mxu0
    %6485 = vmatprep.subr.bf16.mxu0 %v6297
    %6486 = vmatpush1.bf16.msra.mxu0 %v6296
    %6487 = vmatprep.subr.bf16.mxu0 %v6291
    %6488 = vmatpush1.bf16.msra.mxu0 %v6290
    %6489 = vmatprep.subr.bf16.mxu0 %v6285
    %6490 = vmatpush1.bf16.msra.mxu0 %v6284
    %6491 = vmatprep.subr.bf16.mxu0 %v6279
    %6492 = vmatpush1.bf16.msra.mxu0 %v6278
    %6493 = vmatprep.subr.bf16.mxu0 %v6273
    %6494 = vmatpush1.bf16.msra.mxu0 %v6272
    %6495 = vmatprep.subr.bf16.mxu0 %v6267
    %6496 = vmatpush1.bf16.msra.mxu0 %v6266
    %6497 = vmatprep.subr.bf16.mxu0 %v6261
    %6498 = vmatpush1.bf16.msra.mxu0 %v6260
    %6499 = vmatprep.subr.bf16.mxu0 %v6255
    %6500 = vmatpush1.bf16.msra.mxu0 %v6254
    %6501 = vmatprep.subr.bf16.mxu0 %v6345
    %6502 = vmatpush2.bf16.msra.mxu0 %v6344
    %6503 = vmatprep.subr.bf16.mxu0 %v6339
    %6504 = vmatpush2.bf16.msra.mxu0 %v6338
    %6505 = vmatprep.subr.bf16.mxu0 %v6333
    %6506 = vmatpush2.bf16.msra.mxu0 %v6332
    %6507 = vmatprep.subr.bf16.mxu0 %v6327
    %6508 = vmatpush2.bf16.msra.mxu0 %v6326
    %6509 = vmatprep.subr.bf16.mxu0 %v6321
    %6510 = vmatpush2.bf16.msra.mxu0 %v6320
    %6511 = vmatprep.subr.bf16.mxu0 %v6315
    %6512 = vmatpush2.bf16.msra.mxu0 %v6314
    %6513 = vmatprep.subr.bf16.mxu0 %v6309
    %6514 = vmatpush2.bf16.msra.mxu0 %v6308
    %6515 = vmatprep.subr.bf16.mxu0 %v6303
    %6516 = vmatpush2.bf16.msra.mxu0 %v6302
    %6517 = vmatprep.mubr.bf16.mxu0 %v5835
    %6518 = vmatmul.mubr.bf16.gmra.mxu0 %v5834
    %v6519 = vpop.f32.mrf.mxu0
    %v6520 = vadd.f32 %v5945, %v6519
    %v6521 = vpop.f32.mrf.mxu0
    %v6522 = vadd.f32 %v5949, %v6521
    %v6523 = vpop.f32.mrf.mxu0
    %v6524 = vpop.f32.mrf.mxu0
    %6525 = vdwg.mxu0
    %6526 = vmatprep.subr.bf16.mxu0 %v6299
    %6527 = vmatpush1.bf16.msra.mxu0 %v6298
    %6528 = vmatprep.subr.bf16.mxu0 %v6293
    %6529 = vmatpush1.bf16.msra.mxu0 %v6292
    %6530 = vmatprep.subr.bf16.mxu0 %v6287
    %6531 = vmatpush1.bf16.msra.mxu0 %v6286
    %6532 = vmatprep.subr.bf16.mxu0 %v6281
    %6533 = vmatpush1.bf16.msra.mxu0 %v6280
    %6534 = vmatprep.subr.bf16.mxu0 %v6275
    %6535 = vmatpush1.bf16.msra.mxu0 %v6274
    %6536 = vmatprep.subr.bf16.mxu0 %v6269
    %6537 = vmatpush1.bf16.msra.mxu0 %v6268
    %6538 = vmatprep.subr.bf16.mxu0 %v6263
    %6539 = vmatpush1.bf16.msra.mxu0 %v6262
    %6540 = vmatprep.subr.bf16.mxu0 %v6257
    %6541 = vmatpush1.bf16.msra.mxu0 %v6256
    %6542 = vmatprep.subr.bf16.mxu0 %v6347
    %6543 = vmatpush2.bf16.msra.mxu0 %v6346
    %6544 = vmatprep.subr.bf16.mxu0 %v6341
    %6545 = vmatpush2.bf16.msra.mxu0 %v6340
    %6546 = vmatprep.subr.bf16.mxu0 %v6335
    %6547 = vmatpush2.bf16.msra.mxu0 %v6334
    %6548 = vmatprep.subr.bf16.mxu0 %v6329
    %6549 = vmatpush2.bf16.msra.mxu0 %v6328
    %6550 = vmatprep.subr.bf16.mxu0 %v6323
    %6551 = vmatpush2.bf16.msra.mxu0 %v6322
    %6552 = vmatprep.subr.bf16.mxu0 %v6317
    %6553 = vmatpush2.bf16.msra.mxu0 %v6316
    %6554 = vmatprep.subr.bf16.mxu0 %v6311
    %6555 = vmatpush2.bf16.msra.mxu0 %v6310
    %6556 = vmatprep.subr.bf16.mxu0 %v6305
    %6557 = vmatpush2.bf16.msra.mxu0 %v6304
    %6558 = vmatprep.mubr.bf16.mxu0 %v5835
    %6559 = vmatmul.mubr.bf16.gmra.mxu0 %v5834
    %v6560 = vpop.f32.mrf.mxu0
    %v6561 = vadd.f32 %v5953, %v6560
    %v6562 = vpop.f32.mrf.mxu0
    %v6563 = vadd.f32 %v5957, %v6562
    %v6564 = vpop.f32.mrf.mxu0
    %v6565 = vpop.f32.mrf.mxu0
    %6566 = vdwg.mxu0
    %v6567 = vxor.u32 %v6479, 2147483648
    %v6568 = vxor.u32 %v6481, 2147483648
    %v6569 = vmul.f32 %v6567, 1.442695
    %v6570 = vpow.pop %v6569
    %v6571 = vmul.f32 %v6568, 1.442695
    %v6572 = vpow.pop %v6571
    %v6573 = vadd.f32 %v6570, 1.0
    %v6574 = vadd.f32 %v6572, 1.0
    %v6575 = vrcp.pop %v6573
    %v6576 = vmul.f32 1.0, %v6575
    %v6577 = vrcp.pop %v6574
    %v6578 = vmul.f32 1.0, %v6577
    %v6579 = vtanh.pop %v6520
    %v6580 = vtanh.pop %v6522
    %v6581 = vxor.u32 %v6561, 2147483648
    %v6582 = vxor.u32 %v6563, 2147483648
    %v6583 = vmul.f32 %v6581, 1.442695
    %v6584 = vpow.pop %v6583
    %v6585 = vmul.f32 %v6582, 1.442695
    %v6586 = vpow.pop %v6585
    %v6587 = vadd.f32 %v6584, 1.0
    %v6588 = vadd.f32 %v6586, 1.0
    %v6589 = vrcp.pop %v6587
    %v6590 = vmul.f32 1.0, %v6589
    %v6591 = vrcp.pop %v6588
    %v6592 = vmul.f32 1.0, %v6591
    %v6593 = vmul.f32 %v6576, %v6579
    %v6594 = vmul.f32 %v6578, %v6580
    %v6595 = vtanh.pop %v6593
    %v6596 = vtanh.pop %v6594
    %v6597 = vmul.f32 %v6590, %v6595
    %v6598 = vmul.f32 %v6592, %v6596
    %v6599 = vpack.c.bf16 %v6597, %v6597
    %v6600 = vpack.c.bf16 %v6598, %v6598
    %v6601 = vld [vmem:[#allocation11] sm:$0xff]
    %v6602 = vld [vmem:[#allocation11 + $0x8] sm:$0xff]
    %v6603 = vld [vmem:[#allocation11 + $0x10] sm:$0xff]
    %v6604 = vld [vmem:[#allocation11 + $0x18] sm:$0xff]
    %v6605 = vld [vmem:[#allocation11 + $0x20] sm:$0xff]
    %v6606 = vld [vmem:[#allocation11 + $0x28] sm:$0xff]
    %v6607 = vld [vmem:[#allocation11 + $0x30] sm:$0xff]
    %v6608 = vld [vmem:[#allocation11 + $0x38] sm:$0xff]
    %v6609 = vld [vmem:[#allocation11 + $0x40] sm:$0xff]
    %v6610 = vld [vmem:[#allocation11 + $0x48] sm:$0xff]
    %v6611 = vld [vmem:[#allocation11 + $0x50] sm:$0xff]
    %v6612 = vld [vmem:[#allocation11 + $0x58] sm:$0xff]
    %v6613 = vld [vmem:[#allocation11 + $0x60] sm:$0xff]
    %v6614 = vld [vmem:[#allocation11 + $0x68] sm:$0xff]
    %v6615 = vld [vmem:[#allocation11 + $0x70] sm:$0xff]
    %v6616 = vld [vmem:[#allocation11 + $0x78] sm:$0xff]
    %v6617 = vld [vmem:[#allocation11 + $0x80] sm:$0xff]
    %v6618 = vld [vmem:[#allocation11 + $0x88] sm:$0xff]
    %v6619 = vld [vmem:[#allocation11 + $0x90] sm:$0xff]
    %v6620 = vld [vmem:[#allocation11 + $0x98] sm:$0xff]
    %v6621 = vld [vmem:[#allocation11 + $0xa0] sm:$0xff]
    %v6622 = vld [vmem:[#allocation11 + $0xa8] sm:$0xff]
    %v6623 = vld [vmem:[#allocation11 + $0xb0] sm:$0xff]
    %v6624 = vld [vmem:[#allocation11 + $0xb8] sm:$0xff]
    %v6625 = vld [vmem:[#allocation11 + $0xc0] sm:$0xff]
    %v6626 = vld [vmem:[#allocation11 + $0xc8] sm:$0xff]
    %v6627 = vld [vmem:[#allocation11 + $0xd0] sm:$0xff]
    %v6628 = vld [vmem:[#allocation11 + $0xd8] sm:$0xff]
    %v6629 = vld [vmem:[#allocation11 + $0xe0] sm:$0xff]
    %v6630 = vld [vmem:[#allocation11 + $0xe8] sm:$0xff]
    %v6631 = vld [vmem:[#allocation11 + $0xf0] sm:$0xff]
    %v6632 = vld [vmem:[#allocation11 + $0xf8] sm:$0xff]
    %v6633 = vld [vmem:[#allocation11 + $0x100] sm:$0xff]
    %v6634 = vld [vmem:[#allocation11 + $0x108] sm:$0xff]
    %v6635 = vld [vmem:[#allocation11 + $0x110] sm:$0xff]
    %v6636 = vld [vmem:[#allocation11 + $0x118] sm:$0xff]
    %v6637 = vld [vmem:[#allocation11 + $0x120] sm:$0xff]
    %v6638 = vld [vmem:[#allocation11 + $0x128] sm:$0xff]
    %v6639 = vld [vmem:[#allocation11 + $0x130] sm:$0xff]
    %v6640 = vld [vmem:[#allocation11 + $0x138] sm:$0xff]
    %v6641 = vld [vmem:[#allocation11 + $0x140] sm:$0xff]
    %v6642 = vld [vmem:[#allocation11 + $0x148] sm:$0xff]
    %v6643 = vld [vmem:[#allocation11 + $0x150] sm:$0xff]
    %v6644 = vld [vmem:[#allocation11 + $0x158] sm:$0xff]
    %v6645 = vld [vmem:[#allocation11 + $0x160] sm:$0xff]
    %v6646 = vld [vmem:[#allocation11 + $0x168] sm:$0xff]
    %v6647 = vld [vmem:[#allocation11 + $0x170] sm:$0xff]
    %v6648 = vld [vmem:[#allocation11 + $0x178] sm:$0xff]
    %v6649 = vld [vmem:[#allocation11 + $0x180] sm:$0xff]
    %v6650 = vld [vmem:[#allocation11 + $0x188] sm:$0xff]
    %v6651 = vld [vmem:[#allocation11 + $0x190] sm:$0xff]
    %v6652 = vld [vmem:[#allocation11 + $0x198] sm:$0xff]
    %v6653 = vld [vmem:[#allocation11 + $0x1a0] sm:$0xff]
    %v6654 = vld [vmem:[#allocation11 + $0x1a8] sm:$0xff]
    %v6655 = vld [vmem:[#allocation11 + $0x1b0] sm:$0xff]
    %v6656 = vld [vmem:[#allocation11 + $0x1b8] sm:$0xff]
    %v6657 = vld [vmem:[#allocation11 + $0x1c0] sm:$0xff]
    %v6658 = vld [vmem:[#allocation11 + $0x1c8] sm:$0xff]
    %v6659 = vld [vmem:[#allocation11 + $0x1d0] sm:$0xff]
    %v6660 = vld [vmem:[#allocation11 + $0x1d8] sm:$0xff]
    %v6661 = vld [vmem:[#allocation11 + $0x1e0] sm:$0xff]
    %v6662 = vld [vmem:[#allocation11 + $0x1e8] sm:$0xff]
    %v6663 = vld [vmem:[#allocation11 + $0x1f0] sm:$0xff]
    %v6664 = vld [vmem:[#allocation11 + $0x1f8] sm:$0xff]
    %v6665 = vld [vmem:[#allocation11 + $0x200] sm:$0xff]
    %v6666 = vld [vmem:[#allocation11 + $0x208] sm:$0xff]
    %v6667 = vld [vmem:[#allocation11 + $0x210] sm:$0xff]
    %v6668 = vld [vmem:[#allocation11 + $0x218] sm:$0xff]
    %v6669 = vld [vmem:[#allocation11 + $0x220] sm:$0xff]
    %v6670 = vld [vmem:[#allocation11 + $0x228] sm:$0xff]
    %v6671 = vld [vmem:[#allocation11 + $0x230] sm:$0xff]
    %v6672 = vld [vmem:[#allocation11 + $0x238] sm:$0xff]
    %v6673 = vld [vmem:[#allocation11 + $0x240] sm:$0xff]
    %v6674 = vld [vmem:[#allocation11 + $0x248] sm:$0xff]
    %v6675 = vld [vmem:[#allocation11 + $0x250] sm:$0xff]
    %v6676 = vld [vmem:[#allocation11 + $0x258] sm:$0xff]
    %v6677 = vld [vmem:[#allocation11 + $0x260] sm:$0xff]
    %v6678 = vld [vmem:[#allocation11 + $0x268] sm:$0xff]
    %v6679 = vld [vmem:[#allocation11 + $0x270] sm:$0xff]
    %v6680 = vld [vmem:[#allocation11 + $0x278] sm:$0xff]
    %v6681 = vld [vmem:[#allocation11 + $0x280] sm:$0xff]
    %v6682 = vld [vmem:[#allocation11 + $0x288] sm:$0xff]
    %v6683 = vld [vmem:[#allocation11 + $0x290] sm:$0xff]
    %v6684 = vld [vmem:[#allocation11 + $0x298] sm:$0xff]
    %v6685 = vld [vmem:[#allocation11 + $0x2a0] sm:$0xff]
    %v6686 = vld [vmem:[#allocation11 + $0x2a8] sm:$0xff]
    %v6687 = vld [vmem:[#allocation11 + $0x2b0] sm:$0xff]
    %v6688 = vld [vmem:[#allocation11 + $0x2b8] sm:$0xff]
    %v6689 = vld [vmem:[#allocation11 + $0x2c0] sm:$0xff]
    %v6690 = vld [vmem:[#allocation11 + $0x2c8] sm:$0xff]
    %v6691 = vld [vmem:[#allocation11 + $0x2d0] sm:$0xff]
    %v6692 = vld [vmem:[#allocation11 + $0x2d8] sm:$0xff]
    %v6693 = vld [vmem:[#allocation11 + $0x2e0] sm:$0xff]
    %v6694 = vld [vmem:[#allocation11 + $0x2e8] sm:$0xff]
    %v6695 = vld [vmem:[#allocation11 + $0x2f0] sm:$0xff]
    %v6696 = vld [vmem:[#allocation11 + $0x2f8] sm:$0xff]
    %v6697 = vld [vmem:[#allocation13] sm:$0x3f]
    %v6699 = vlaneseq
    %v6700 = vshrl.u32 %v6699, 7
    %v6701 = vsub.s32 0, %v6700
    %v6702 = vrot.slane %v6697, %v6701
    %v6703 = vlaneseq
    %v6704 = vshrl.u32 %v6703, 7
    %v6705 = vsub.s32 1, %v6704
    %v6706 = vrot.slane %v6697, %v6705
    %v6707 = vlaneseq
    %v6708 = vshrl.u32 %v6707, 7
    %v6709 = vsub.s32 2, %v6708
    %v6710 = vrot.slane %v6697, %v6709
    %v6711 = vlaneseq
    %v6712 = vshrl.u32 %v6711, 7
    %v6713 = vsub.s32 3, %v6712
    %v6714 = vrot.slane %v6697, %v6713
    %v6715 = vlaneseq
    %v6716 = vshrl.u32 %v6715, 7
    %v6717 = vsub.s32 4, %v6716
    %v6718 = vrot.slane %v6697, %v6717
    %v6719 = vlaneseq
    %v6720 = vshrl.u32 %v6719, 7
    %v6721 = vsub.s32 5, %v6720
    %v6722 = vrot.slane %v6697, %v6721
    %v6825 = vunpack.c.l.b16 %v6601
    %v6826 = vunpack.c.h.b16 %v6601
    %v6827 = vunpack.c.l.b16 %v6602
    %v6828 = vunpack.c.h.b16 %v6602
    %v6829 = vunpack.c.l.b16 %v6603
    %v6830 = vunpack.c.h.b16 %v6603
    %v6831 = vunpack.c.l.b16 %v6604
    %v6832 = vunpack.c.h.b16 %v6604
    %v6833 = vunpack.c.l.b16 %v6605
    %v6834 = vunpack.c.h.b16 %v6605
    %v6835 = vunpack.c.l.b16 %v6606
    %v6836 = vunpack.c.h.b16 %v6606
    %v6837 = vunpack.c.l.b16 %v6607
    %v6838 = vunpack.c.h.b16 %v6607
    %v6839 = vunpack.c.l.b16 %v6608
    %v6840 = vunpack.c.h.b16 %v6608
    %v6841 = vunpack.c.l.b16 %v6609
    %v6842 = vunpack.c.h.b16 %v6609
    %v6843 = vunpack.c.l.b16 %v6610
    %v6844 = vunpack.c.h.b16 %v6610
    %v6845 = vunpack.c.l.b16 %v6611
    %v6846 = vunpack.c.h.b16 %v6611
    %v6847 = vunpack.c.l.b16 %v6612
    %v6848 = vunpack.c.h.b16 %v6612
    %v6849 = vunpack.c.l.b16 %v6613
    %v6850 = vunpack.c.h.b16 %v6613
    %v6851 = vunpack.c.l.b16 %v6614
    %v6852 = vunpack.c.h.b16 %v6614
    %v6853 = vunpack.c.l.b16 %v6615
    %v6854 = vunpack.c.h.b16 %v6615
    %v6855 = vunpack.c.l.b16 %v6616
    %v6856 = vunpack.c.h.b16 %v6616
    %v6857 = vunpack.c.l.b16 %v6617
    %v6858 = vunpack.c.h.b16 %v6617
    %v6859 = vunpack.c.l.b16 %v6618
    %v6860 = vunpack.c.h.b16 %v6618
    %v6861 = vunpack.c.l.b16 %v6619
    %v6862 = vunpack.c.h.b16 %v6619
    %v6863 = vunpack.c.l.b16 %v6620
    %v6864 = vunpack.c.h.b16 %v6620
    %v6865 = vunpack.c.l.b16 %v6621
    %v6866 = vunpack.c.h.b16 %v6621
    %v6867 = vunpack.c.l.b16 %v6622
    %v6868 = vunpack.c.h.b16 %v6622
    %v6869 = vunpack.c.l.b16 %v6623
    %v6870 = vunpack.c.h.b16 %v6623
    %v6871 = vunpack.c.l.b16 %v6624
    %v6872 = vunpack.c.h.b16 %v6624
    %v6873 = vunpack.c.l.b16 %v6625
    %v6874 = vunpack.c.h.b16 %v6625
    %v6875 = vunpack.c.l.b16 %v6626
    %v6876 = vunpack.c.h.b16 %v6626
    %v6877 = vunpack.c.l.b16 %v6627
    %v6878 = vunpack.c.h.b16 %v6627
    %v6879 = vunpack.c.l.b16 %v6628
    %v6880 = vunpack.c.h.b16 %v6628
    %v6881 = vunpack.c.l.b16 %v6629
    %v6882 = vunpack.c.h.b16 %v6629
    %v6883 = vunpack.c.l.b16 %v6630
    %v6884 = vunpack.c.h.b16 %v6630
    %v6885 = vunpack.c.l.b16 %v6631
    %v6886 = vunpack.c.h.b16 %v6631
    %v6887 = vunpack.c.l.b16 %v6632
    %v6888 = vunpack.c.h.b16 %v6632
    %v6889 = vunpack.c.l.b16 %v6633
    %v6890 = vunpack.c.h.b16 %v6633
    %v6891 = vunpack.c.l.b16 %v6634
    %v6892 = vunpack.c.h.b16 %v6634
    %v6893 = vunpack.c.l.b16 %v6635
    %v6894 = vunpack.c.h.b16 %v6635
    %v6895 = vunpack.c.l.b16 %v6636
    %v6896 = vunpack.c.h.b16 %v6636
    %v6897 = vunpack.c.l.b16 %v6637
    %v6898 = vunpack.c.h.b16 %v6637
    %v6899 = vunpack.c.l.b16 %v6638
    %v6900 = vunpack.c.h.b16 %v6638
    %v6901 = vunpack.c.l.b16 %v6639
    %v6902 = vunpack.c.h.b16 %v6639
    %v6903 = vunpack.c.l.b16 %v6640
    %v6904 = vunpack.c.h.b16 %v6640
    %v6905 = vunpack.c.l.b16 %v6641
    %v6906 = vunpack.c.h.b16 %v6641
    %v6907 = vunpack.c.l.b16 %v6642
    %v6908 = vunpack.c.h.b16 %v6642
    %v6909 = vunpack.c.l.b16 %v6643
    %v6910 = vunpack.c.h.b16 %v6643
    %v6911 = vunpack.c.l.b16 %v6644
    %v6912 = vunpack.c.h.b16 %v6644
    %v6913 = vunpack.c.l.b16 %v6645
    %v6914 = vunpack.c.h.b16 %v6645
    %v6915 = vunpack.c.l.b16 %v6646
    %v6916 = vunpack.c.h.b16 %v6646
    %v6917 = vunpack.c.l.b16 %v6647
    %v6918 = vunpack.c.h.b16 %v6647
    %v6919 = vunpack.c.l.b16 %v6648
    %v6920 = vunpack.c.h.b16 %v6648
    %v6921 = vunpack.c.l.b16 %v6649
    %v6922 = vunpack.c.h.b16 %v6649
    %v6923 = vunpack.c.l.b16 %v6650
    %v6924 = vunpack.c.h.b16 %v6650
    %v6925 = vunpack.c.l.b16 %v6651
    %v6926 = vunpack.c.h.b16 %v6651
    %v6927 = vunpack.c.l.b16 %v6652
    %v6928 = vunpack.c.h.b16 %v6652
    %v6929 = vunpack.c.l.b16 %v6653
    %v6930 = vunpack.c.h.b16 %v6653
    %v6931 = vunpack.c.l.b16 %v6654
    %v6932 = vunpack.c.h.b16 %v6654
    %v6933 = vunpack.c.l.b16 %v6655
    %v6934 = vunpack.c.h.b16 %v6655
    %v6935 = vunpack.c.l.b16 %v6656
    %v6936 = vunpack.c.h.b16 %v6656
    %v6937 = vunpack.c.l.b16 %v6657
    %v6938 = vunpack.c.h.b16 %v6657
    %v6939 = vunpack.c.l.b16 %v6658
    %v6940 = vunpack.c.h.b16 %v6658
    %v6941 = vunpack.c.l.b16 %v6659
    %v6942 = vunpack.c.h.b16 %v6659
    %v6943 = vunpack.c.l.b16 %v6660
    %v6944 = vunpack.c.h.b16 %v6660
    %v6945 = vunpack.c.l.b16 %v6661
    %v6946 = vunpack.c.h.b16 %v6661
    %v6947 = vunpack.c.l.b16 %v6662
    %v6948 = vunpack.c.h.b16 %v6662
    %v6949 = vunpack.c.l.b16 %v6663
    %v6950 = vunpack.c.h.b16 %v6663
    %v6951 = vunpack.c.l.b16 %v6664
    %v6952 = vunpack.c.h.b16 %v6664
    %v6953 = vunpack.c.l.b16 %v6665
    %v6954 = vunpack.c.h.b16 %v6665
    %v6955 = vunpack.c.l.b16 %v6666
    %v6956 = vunpack.c.h.b16 %v6666
    %v6957 = vunpack.c.l.b16 %v6667
    %v6958 = vunpack.c.h.b16 %v6667
    %v6959 = vunpack.c.l.b16 %v6668
    %v6960 = vunpack.c.h.b16 %v6668
    %v6961 = vunpack.c.l.b16 %v6669
    %v6962 = vunpack.c.h.b16 %v6669
    %v6963 = vunpack.c.l.b16 %v6670
    %v6964 = vunpack.c.h.b16 %v6670
    %v6965 = vunpack.c.l.b16 %v6671
    %v6966 = vunpack.c.h.b16 %v6671
    %v6967 = vunpack.c.l.b16 %v6672
    %v6968 = vunpack.c.h.b16 %v6672
    %v6969 = vunpack.c.l.b16 %v6673
    %v6970 = vunpack.c.h.b16 %v6673
    %v6971 = vunpack.c.l.b16 %v6674
    %v6972 = vunpack.c.h.b16 %v6674
    %v6973 = vunpack.c.l.b16 %v6675
    %v6974 = vunpack.c.h.b16 %v6675
    %v6975 = vunpack.c.l.b16 %v6676
    %v6976 = vunpack.c.h.b16 %v6676
    %v6977 = vunpack.c.l.b16 %v6677
    %v6978 = vunpack.c.h.b16 %v6677
    %v6979 = vunpack.c.l.b16 %v6678
    %v6980 = vunpack.c.h.b16 %v6678
    %v6981 = vunpack.c.l.b16 %v6679
    %v6982 = vunpack.c.h.b16 %v6679
    %v6983 = vunpack.c.l.b16 %v6680
    %v6984 = vunpack.c.h.b16 %v6680
    %v6985 = vunpack.c.l.b16 %v6681
    %v6986 = vunpack.c.h.b16 %v6681
    %v6987 = vunpack.c.l.b16 %v6682
    %v6988 = vunpack.c.h.b16 %v6682
    %v6989 = vunpack.c.l.b16 %v6683
    %v6990 = vunpack.c.h.b16 %v6683
    %v6991 = vunpack.c.l.b16 %v6684
    %v6992 = vunpack.c.h.b16 %v6684
    %v6993 = vunpack.c.l.b16 %v6685
    %v6994 = vunpack.c.h.b16 %v6685
    %v6995 = vunpack.c.l.b16 %v6686
    %v6996 = vunpack.c.h.b16 %v6686
    %v6997 = vunpack.c.l.b16 %v6687
    %v6998 = vunpack.c.h.b16 %v6687
    %v6999 = vunpack.c.l.b16 %v6688
    %v7000 = vunpack.c.h.b16 %v6688
    %v7001 = vunpack.c.l.b16 %v6689
    %v7002 = vunpack.c.h.b16 %v6689
    %v7003 = vunpack.c.l.b16 %v6690
    %v7004 = vunpack.c.h.b16 %v6690
    %v7005 = vunpack.c.l.b16 %v6691
    %v7006 = vunpack.c.h.b16 %v6691
    %v7007 = vunpack.c.l.b16 %v6692
    %v7008 = vunpack.c.h.b16 %v6692
    %v7009 = vunpack.c.l.b16 %v6693
    %v7010 = vunpack.c.h.b16 %v6693
    %v7011 = vunpack.c.l.b16 %v6694
    %v7012 = vunpack.c.h.b16 %v6694
    %v7013 = vunpack.c.l.b16 %v6695
    %v7014 = vunpack.c.h.b16 %v6695
    %v7015 = vunpack.c.l.b16 %v6696
    %v7016 = vunpack.c.h.b16 %v6696
    %v7017 = vpack.c.b16 %v6831, %v6825
    %v7018 = vpack.c.b16 %v6832, %v6826
    %v7019 = vpack.c.b16 %v6833, %v6827
    %v7020 = vpack.c.b16 %v6834, %v6828
    %v7021 = vpack.c.b16 %v6835, %v6829
    %v7022 = vpack.c.b16 %v6836, %v6830
    %v7023 = vpack.c.b16 %v6843, %v6837
    %v7024 = vpack.c.b16 %v6844, %v6838
    %v7025 = vpack.c.b16 %v6845, %v6839
    %v7026 = vpack.c.b16 %v6846, %v6840
    %v7027 = vpack.c.b16 %v6847, %v6841
    %v7028 = vpack.c.b16 %v6848, %v6842
    %v7029 = vpack.c.b16 %v6855, %v6849
    %v7030 = vpack.c.b16 %v6856, %v6850
    %v7031 = vpack.c.b16 %v6857, %v6851
    %v7032 = vpack.c.b16 %v6858, %v6852
    %v7033 = vpack.c.b16 %v6859, %v6853
    %v7034 = vpack.c.b16 %v6860, %v6854
    %v7035 = vpack.c.b16 %v6867, %v6861
    %v7036 = vpack.c.b16 %v6868, %v6862
    %v7037 = vpack.c.b16 %v6869, %v6863
    %v7038 = vpack.c.b16 %v6870, %v6864
    %v7039 = vpack.c.b16 %v6871, %v6865
    %v7040 = vpack.c.b16 %v6872, %v6866
    %v7041 = vpack.c.b16 %v6879, %v6873
    %v7042 = vpack.c.b16 %v6880, %v6874
    %v7043 = vpack.c.b16 %v6881, %v6875
    %v7044 = vpack.c.b16 %v6882, %v6876
    %v7045 = vpack.c.b16 %v6883, %v6877
    %v7046 = vpack.c.b16 %v6884, %v6878
    %v7047 = vpack.c.b16 %v6891, %v6885
    %v7048 = vpack.c.b16 %v6892, %v6886
    %v7049 = vpack.c.b16 %v6893, %v6887
    %v7050 = vpack.c.b16 %v6894, %v6888
    %v7051 = vpack.c.b16 %v6895, %v6889
    %v7052 = vpack.c.b16 %v6896, %v6890
    %v7053 = vpack.c.b16 %v6903, %v6897
    %v7054 = vpack.c.b16 %v6904, %v6898
    %v7055 = vpack.c.b16 %v6905, %v6899
    %v7056 = vpack.c.b16 %v6906, %v6900
    %v7057 = vpack.c.b16 %v6907, %v6901
    %v7058 = vpack.c.b16 %v6908, %v6902
    %v7059 = vpack.c.b16 %v6915, %v6909
    %v7060 = vpack.c.b16 %v6916, %v6910
    %v7061 = vpack.c.b16 %v6917, %v6911
    %v7062 = vpack.c.b16 %v6918, %v6912
    %v7063 = vpack.c.b16 %v6919, %v6913
    %v7064 = vpack.c.b16 %v6920, %v6914
    %v7065 = vpack.c.b16 %v6927, %v6921
    %v7066 = vpack.c.b16 %v6928, %v6922
    %v7067 = vpack.c.b16 %v6929, %v6923
    %v7068 = vpack.c.b16 %v6930, %v6924
    %v7069 = vpack.c.b16 %v6931, %v6925
    %v7070 = vpack.c.b16 %v6932, %v6926
    %v7071 = vpack.c.b16 %v6939, %v6933
    %v7072 = vpack.c.b16 %v6940, %v6934
    %v7073 = vpack.c.b16 %v6941, %v6935
    %v7074 = vpack.c.b16 %v6942, %v6936
    %v7075 = vpack.c.b16 %v6943, %v6937
    %v7076 = vpack.c.b16 %v6944, %v6938
    %v7077 = vpack.c.b16 %v6951, %v6945
    %v7078 = vpack.c.b16 %v6952, %v6946
    %v7079 = vpack.c.b16 %v6953, %v6947
    %v7080 = vpack.c.b16 %v6954, %v6948
    %v7081 = vpack.c.b16 %v6955, %v6949
    %v7082 = vpack.c.b16 %v6956, %v6950
    %v7083 = vpack.c.b16 %v6963, %v6957
    %v7084 = vpack.c.b16 %v6964, %v6958
    %v7085 = vpack.c.b16 %v6965, %v6959
    %v7086 = vpack.c.b16 %v6966, %v6960
    %v7087 = vpack.c.b16 %v6967, %v6961
    %v7088 = vpack.c.b16 %v6968, %v6962
    %v7089 = vpack.c.b16 %v6975, %v6969
    %v7090 = vpack.c.b16 %v6976, %v6970
    %v7091 = vpack.c.b16 %v6977, %v6971
    %v7092 = vpack.c.b16 %v6978, %v6972
    %v7093 = vpack.c.b16 %v6979, %v6973
    %v7094 = vpack.c.b16 %v6980, %v6974
    %v7095 = vpack.c.b16 %v6987, %v6981
    %v7096 = vpack.c.b16 %v6988, %v6982
    %v7097 = vpack.c.b16 %v6989, %v6983
    %v7098 = vpack.c.b16 %v6990, %v6984
    %v7099 = vpack.c.b16 %v6991, %v6985
    %v7100 = vpack.c.b16 %v6992, %v6986
    %v7101 = vpack.c.b16 %v6999, %v6993
    %v7102 = vpack.c.b16 %v7000, %v6994
    %v7103 = vpack.c.b16 %v7001, %v6995
    %v7104 = vpack.c.b16 %v7002, %v6996
    %v7105 = vpack.c.b16 %v7003, %v6997
    %v7106 = vpack.c.b16 %v7004, %v6998
    %v7107 = vpack.c.b16 %v7011, %v7005
    %v7108 = vpack.c.b16 %v7012, %v7006
    %v7109 = vpack.c.b16 %v7013, %v7007
    %v7110 = vpack.c.b16 %v7014, %v7008
    %v7111 = vpack.c.b16 %v7015, %v7009
    %v7112 = vpack.c.b16 %v7016, %v7010
    %7209 = vmatprep.subr.bf16.mxu0 %v7060
    %7210 = vmatpush1.bf16.msra.mxu0 %v7059
    %7211 = vmatprep.subr.bf16.mxu0 %v7054
    %7212 = vmatpush1.bf16.msra.mxu0 %v7053
    %7213 = vmatprep.subr.bf16.mxu0 %v7048
    %7214 = vmatpush1.bf16.msra.mxu0 %v7047
    %7215 = vmatprep.subr.bf16.mxu0 %v7042
    %7216 = vmatpush1.bf16.msra.mxu0 %v7041
    %7217 = vmatprep.subr.bf16.mxu0 %v7036
    %7218 = vmatpush1.bf16.msra.mxu0 %v7035
    %7219 = vmatprep.subr.bf16.mxu0 %v7030
    %7220 = vmatpush1.bf16.msra.mxu0 %v7029
    %7221 = vmatprep.subr.bf16.mxu0 %v7024
    %7222 = vmatpush1.bf16.msra.mxu0 %v7023
    %7223 = vmatprep.subr.bf16.mxu0 %v7018
    %7224 = vmatpush1.bf16.msra.mxu0 %v7017
    %7225 = vmatprep.subr.bf16.mxu0 %v7108
    %7226 = vmatpush2.bf16.msra.mxu0 %v7107
    %7227 = vmatprep.subr.bf16.mxu0 %v7102
    %7228 = vmatpush2.bf16.msra.mxu0 %v7101
    %7229 = vmatprep.subr.bf16.mxu0 %v7096
    %7230 = vmatpush2.bf16.msra.mxu0 %v7095
    %7231 = vmatprep.subr.bf16.mxu0 %v7090
    %7232 = vmatpush2.bf16.msra.mxu0 %v7089
    %7233 = vmatprep.subr.bf16.mxu0 %v7084
    %7234 = vmatpush2.bf16.msra.mxu0 %v7083
    %7235 = vmatprep.subr.bf16.mxu0 %v7078
    %7236 = vmatpush2.bf16.msra.mxu0 %v7077
    %7237 = vmatprep.subr.bf16.mxu0 %v7072
    %7238 = vmatpush2.bf16.msra.mxu0 %v7071
    %7239 = vmatprep.subr.bf16.mxu0 %v7066
    %7240 = vmatpush2.bf16.msra.mxu0 %v7065
    %7241 = vmatprep.mubr.bf16.mxu0 %v6600
    %7242 = vmatmul.mubr.bf16.gmra.mxu0 %v6599
    %v7243 = vpop.f32.mrf.mxu0
    %v7244 = vadd.f32 %v6702, %v7243
    %v7245 = vpop.f32.mrf.mxu0
    %v7246 = vadd.f32 %v6706, %v7245
    %v7247 = vpop.f32.mrf.mxu0
    %v7248 = vpop.f32.mrf.mxu0
    %7249 = vdwg.mxu0
    %7250 = vmatprep.subr.bf16.mxu0 %v7062
    %7251 = vmatpush1.bf16.msra.mxu0 %v7061
    %7252 = vmatprep.subr.bf16.mxu0 %v7056
    %7253 = vmatpush1.bf16.msra.mxu0 %v7055
    %7254 = vmatprep.subr.bf16.mxu0 %v7050
    %7255 = vmatpush1.bf16.msra.mxu0 %v7049
    %7256 = vmatprep.subr.bf16.mxu0 %v7044
    %7257 = vmatpush1.bf16.msra.mxu0 %v7043
    %7258 = vmatprep.subr.bf16.mxu0 %v7038
    %7259 = vmatpush1.bf16.msra.mxu0 %v7037
    %7260 = vmatprep.subr.bf16.mxu0 %v7032
    %7261 = vmatpush1.bf16.msra.mxu0 %v7031
    %7262 = vmatprep.subr.bf16.mxu0 %v7026
    %7263 = vmatpush1.bf16.msra.mxu0 %v7025
    %7264 = vmatprep.subr.bf16.mxu0 %v7020
    %7265 = vmatpush1.bf16.msra.mxu0 %v7019
    %7266 = vmatprep.subr.bf16.mxu0 %v7110
    %7267 = vmatpush2.bf16.msra.mxu0 %v7109
    %7268 = vmatprep.subr.bf16.mxu0 %v7104
    %7269 = vmatpush2.bf16.msra.mxu0 %v7103
    %7270 = vmatprep.subr.bf16.mxu0 %v7098
    %7271 = vmatpush2.bf16.msra.mxu0 %v7097
    %7272 = vmatprep.subr.bf16.mxu0 %v7092
    %7273 = vmatpush2.bf16.msra.mxu0 %v7091
    %7274 = vmatprep.subr.bf16.mxu0 %v7086
    %7275 = vmatpush2.bf16.msra.mxu0 %v7085
    %7276 = vmatprep.subr.bf16.mxu0 %v7080
    %7277 = vmatpush2.bf16.msra.mxu0 %v7079
    %7278 = vmatprep.subr.bf16.mxu0 %v7074
    %7279 = vmatpush2.bf16.msra.mxu0 %v7073
    %7280 = vmatprep.subr.bf16.mxu0 %v7068
    %7281 = vmatpush2.bf16.msra.mxu0 %v7067
    %7282 = vmatprep.mubr.bf16.mxu0 %v6600
    %7283 = vmatmul.mubr.bf16.gmra.mxu0 %v6599
    %v7284 = vpop.f32.mrf.mxu0
    %v7285 = vadd.f32 %v6710, %v7284
    %v7286 = vpop.f32.mrf.mxu0
    %v7287 = vadd.f32 %v6714, %v7286
    %v7288 = vpop.f32.mrf.mxu0
    %v7289 = vpop.f32.mrf.mxu0
    %7290 = vdwg.mxu0
    %7291 = vmatprep.subr.bf16.mxu0 %v7064
    %7292 = vmatpush1.bf16.msra.mxu0 %v7063
    %7293 = vmatprep.subr.bf16.mxu0 %v7058
    %7294 = vmatpush1.bf16.msra.mxu0 %v7057
    %7295 = vmatprep.subr.bf16.mxu0 %v7052
    %7296 = vmatpush1.bf16.msra.mxu0 %v7051
    %7297 = vmatprep.subr.bf16.mxu0 %v7046
    %7298 = vmatpush1.bf16.msra.mxu0 %v7045
    %7299 = vmatprep.subr.bf16.mxu0 %v7040
    %7300 = vmatpush1.bf16.msra.mxu0 %v7039
    %7301 = vmatprep.subr.bf16.mxu0 %v7034
    %7302 = vmatpush1.bf16.msra.mxu0 %v7033
    %7303 = vmatprep.subr.bf16.mxu0 %v7028
    %7304 = vmatpush1.bf16.msra.mxu0 %v7027
    %7305 = vmatprep.subr.bf16.mxu0 %v7022
    %7306 = vmatpush1.bf16.msra.mxu0 %v7021
    %7307 = vmatprep.subr.bf16.mxu0 %v7112
    %7308 = vmatpush2.bf16.msra.mxu0 %v7111
    %7309 = vmatprep.subr.bf16.mxu0 %v7106
    %7310 = vmatpush2.bf16.msra.mxu0 %v7105
    %7311 = vmatprep.subr.bf16.mxu0 %v7100
    %7312 = vmatpush2.bf16.msra.mxu0 %v7099
    %7313 = vmatprep.subr.bf16.mxu0 %v7094
    %7314 = vmatpush2.bf16.msra.mxu0 %v7093
    %7315 = vmatprep.subr.bf16.mxu0 %v7088
    %7316 = vmatpush2.bf16.msra.mxu0 %v7087
    %7317 = vmatprep.subr.bf16.mxu0 %v7082
    %7318 = vmatpush2.bf16.msra.mxu0 %v7081
    %7319 = vmatprep.subr.bf16.mxu0 %v7076
    %7320 = vmatpush2.bf16.msra.mxu0 %v7075
    %7321 = vmatprep.subr.bf16.mxu0 %v7070
    %7322 = vmatpush2.bf16.msra.mxu0 %v7069
    %7323 = vmatprep.mubr.bf16.mxu0 %v6600
    %7324 = vmatmul.mubr.bf16.gmra.mxu0 %v6599
    %v7325 = vpop.f32.mrf.mxu0
    %v7326 = vadd.f32 %v6718, %v7325
    %v7327 = vpop.f32.mrf.mxu0
    %v7328 = vadd.f32 %v6722, %v7327
    %v7329 = vpop.f32.mrf.mxu0
    %v7330 = vpop.f32.mrf.mxu0
    %7331 = vdwg.mxu0
    %v7332 = vxor.u32 %v7244, 2147483648
    %v7333 = vxor.u32 %v7246, 2147483648
    %v7334 = vmul.f32 %v7332, 1.442695
    %v7335 = vpow.pop %v7334
    %v7336 = vmul.f32 %v7333, 1.442695
    %v7337 = vpow.pop %v7336
    %v7338 = vadd.f32 %v7335, 1.0
    %v7339 = vadd.f32 %v7337, 1.0
    %v7340 = vrcp.pop %v7338
    %v7341 = vmul.f32 1.0, %v7340
    %v7342 = vrcp.pop %v7339
    %v7343 = vmul.f32 1.0, %v7342
    %v7344 = vtanh.pop %v7285
    %v7345 = vtanh.pop %v7287
    %v7346 = vxor.u32 %v7326, 2147483648
    %v7347 = vxor.u32 %v7328, 2147483648
    %v7348 = vmul.f32 %v7346, 1.442695
    %v7349 = vpow.pop %v7348
    %v7350 = vmul.f32 %v7347, 1.442695
    %v7351 = vpow.pop %v7350
    %v7352 = vadd.f32 %v7349, 1.0
    %v7353 = vadd.f32 %v7351, 1.0
    %v7354 = vrcp.pop %v7352
    %v7355 = vmul.f32 1.0, %v7354
    %v7356 = vrcp.pop %v7353
    %v7357 = vmul.f32 1.0, %v7356
    %v7358 = vmul.f32 %v7341, %v7344
    %v7359 = vmul.f32 %v7343, %v7345
    %v7360 = vtanh.pop %v7358
    %v7361 = vtanh.pop %v7359
    %v7362 = vmul.f32 %v7355, %v7360
    %v7363 = vmul.f32 %v7357, %v7361
    %v7364 = vadd.f32 %v5832, %v6597
    %v7365 = vadd.f32 %v5833, %v6598
    %v7366 = vadd.f32 %v7364, %v7362
    %v7367 = vadd.f32 %v7365, %v7363
    %v7368 = vpack.c.bf16 %v7366, %v7366
    %v7369 = vpack.c.bf16 %v7367, %v7367
    %v7370 = vld [vmem:[#allocation14] sm:$0xf]
    %v7371 = vld [vmem:[#allocation14 + $0x4] sm:$0xf]
    %v7372 = vld [vmem:[#allocation14 + $0x8] sm:$0xf]
    %v7373 = vld [vmem:[#allocation14 + $0xc] sm:$0xf]
    %v7374 = vld [vmem:[#allocation14 + $0x10] sm:$0xf]
    %v7375 = vld [vmem:[#allocation14 + $0x14] sm:$0xf]
    %v7376 = vld [vmem:[#allocation14 + $0x18] sm:$0xf]
    %v7377 = vld [vmem:[#allocation14 + $0x1c] sm:$0xf]
    %v7378 = vld [vmem:[#allocation14 + $0x20] sm:$0xf]
    %v7379 = vld [vmem:[#allocation14 + $0x24] sm:$0xf]
    %v7380 = vld [vmem:[#allocation14 + $0x28] sm:$0xf]
    %v7381 = vld [vmem:[#allocation14 + $0x2c] sm:$0xf]
    %v7382 = vld [vmem:[#allocation14 + $0x30] sm:$0xf]
    %v7383 = vld [vmem:[#allocation14 + $0x34] sm:$0xf]
    %v7384 = vld [vmem:[#allocation14 + $0x38] sm:$0xf]
    %v7385 = vld [vmem:[#allocation14 + $0x3c] sm:$0xf]
    %v7386 = vld [vmem:[#allocation14 + $0x40] sm:$0xf]
    %v7387 = vld [vmem:[#allocation14 + $0x44] sm:$0xf]
    %v7388 = vld [vmem:[#allocation14 + $0x48] sm:$0xf]
    %v7389 = vld [vmem:[#allocation14 + $0x4c] sm:$0xf]
    %v7390 = vld [vmem:[#allocation14 + $0x50] sm:$0xf]
    %v7391 = vld [vmem:[#allocation14 + $0x54] sm:$0xf]
    %v7392 = vld [vmem:[#allocation14 + $0x58] sm:$0xf]
    %v7393 = vld [vmem:[#allocation14 + $0x5c] sm:$0xf]
    %v7394 = vld [vmem:[#allocation14 + $0x60] sm:$0xf]
    %v7395 = vld [vmem:[#allocation14 + $0x64] sm:$0xf]
    %v7396 = vld [vmem:[#allocation14 + $0x68] sm:$0xf]
    %v7397 = vld [vmem:[#allocation14 + $0x6c] sm:$0xf]
    %v7398 = vld [vmem:[#allocation14 + $0x70] sm:$0xf]
    %v7399 = vld [vmem:[#allocation14 + $0x74] sm:$0xf]
    %v7400 = vld [vmem:[#allocation14 + $0x78] sm:$0xf]
    %v7401 = vld [vmem:[#allocation14 + $0x7c] sm:$0xf]
    %v7402 = vld [vmem:[#allocation16] sm:$0x1]
    %v7404 = vlaneseq
    %v7405 = vshrl.u32 %v7404, 7
    %v7406 = vsub.s32 0, %v7405
    %v7407 = vrot.slane %v7402, %v7406
    %v7441 = vunpack.c.l.b16 %v7370
    %v7442 = vunpack.c.l.b16 %v7371
    %v7443 = vunpack.c.l.b16 %v7372
    %v7444 = vunpack.c.l.b16 %v7373
    %v7445 = vunpack.c.l.b16 %v7374
    %v7446 = vunpack.c.l.b16 %v7375
    %v7447 = vunpack.c.l.b16 %v7376
    %v7448 = vunpack.c.l.b16 %v7377
    %v7449 = vunpack.c.l.b16 %v7378
    %v7450 = vunpack.c.l.b16 %v7379
    %v7451 = vunpack.c.l.b16 %v7380
    %v7452 = vunpack.c.l.b16 %v7381
    %v7453 = vunpack.c.l.b16 %v7382
    %v7454 = vunpack.c.l.b16 %v7383
    %v7455 = vunpack.c.l.b16 %v7384
    %v7456 = vunpack.c.l.b16 %v7385
    %v7457 = vunpack.c.l.b16 %v7386
    %v7458 = vunpack.c.l.b16 %v7387
    %v7459 = vunpack.c.l.b16 %v7388
    %v7460 = vunpack.c.l.b16 %v7389
    %v7461 = vunpack.c.l.b16 %v7390
    %v7462 = vunpack.c.l.b16 %v7391
    %v7463 = vunpack.c.l.b16 %v7392
    %v7464 = vunpack.c.l.b16 %v7393
    %v7465 = vunpack.c.l.b16 %v7394
    %v7466 = vunpack.c.l.b16 %v7395
    %v7467 = vunpack.c.l.b16 %v7396
    %v7468 = vunpack.c.l.b16 %v7397
    %v7469 = vunpack.c.l.b16 %v7398
    %v7470 = vunpack.c.l.b16 %v7399
    %v7471 = vunpack.c.l.b16 %v7400
    %v7472 = vunpack.c.l.b16 %v7401
    %v7473 = vpack.c.b16 %v7442, %v7441
    %v7474 = vpack.c.b16 %v7444, %v7443
    %v7475 = vpack.c.b16 %v7446, %v7445
    %v7476 = vpack.c.b16 %v7448, %v7447
    %v7477 = vpack.c.b16 %v7450, %v7449
    %v7478 = vpack.c.b16 %v7452, %v7451
    %v7479 = vpack.c.b16 %v7454, %v7453
    %v7480 = vpack.c.b16 %v7456, %v7455
    %v7481 = vpack.c.b16 %v7458, %v7457
    %v7482 = vpack.c.b16 %v7460, %v7459
    %v7483 = vpack.c.b16 %v7462, %v7461
    %v7484 = vpack.c.b16 %v7464, %v7463
    %v7485 = vpack.c.b16 %v7466, %v7465
    %v7486 = vpack.c.b16 %v7468, %v7467
    %v7487 = vpack.c.b16 %v7470, %v7469
    %v7488 = vpack.c.b16 %v7472, %v7471
    %7505 = vmatprep.subr.bf16.mxu0 0
    %7506 = vmatpush1.bf16.msra.mxu0 %v7480
    %7507 = vmatprep.subr.bf16.mxu0 0
    %7508 = vmatpush1.bf16.msra.mxu0 %v7479
    %7509 = vmatprep.subr.bf16.mxu0 0
    %7510 = vmatpush1.bf16.msra.mxu0 %v7478
    %7511 = vmatprep.subr.bf16.mxu0 0
    %7512 = vmatpush1.bf16.msra.mxu0 %v7477
    %7513 = vmatprep.subr.bf16.mxu0 0
    %7514 = vmatpush1.bf16.msra.mxu0 %v7476
    %7515 = vmatprep.subr.bf16.mxu0 0
    %7516 = vmatpush1.bf16.msra.mxu0 %v7475
    %7517 = vmatprep.subr.bf16.mxu0 0
    %7518 = vmatpush1.bf16.msra.mxu0 %v7474
    %7519 = vmatprep.subr.bf16.mxu0 0
    %7520 = vmatpush1.bf16.msra.mxu0 %v7473
    %7521 = vmatprep.subr.bf16.mxu0 0
    %7522 = vmatpush2.bf16.msra.mxu0 %v7488
    %7523 = vmatprep.subr.bf16.mxu0 0
    %7524 = vmatpush2.bf16.msra.mxu0 %v7487
    %7525 = vmatprep.subr.bf16.mxu0 0
    %7526 = vmatpush2.bf16.msra.mxu0 %v7486
    %7527 = vmatprep.subr.bf16.mxu0 0
    %7528 = vmatpush2.bf16.msra.mxu0 %v7485
    %7529 = vmatprep.subr.bf16.mxu0 0
    %7530 = vmatpush2.bf16.msra.mxu0 %v7484
    %7531 = vmatprep.subr.bf16.mxu0 0
    %7532 = vmatpush2.bf16.msra.mxu0 %v7483
    %7533 = vmatprep.subr.bf16.mxu0 0
    %7534 = vmatpush2.bf16.msra.mxu0 %v7482
    %7535 = vmatprep.subr.bf16.mxu0 0
    %7536 = vmatpush2.bf16.msra.mxu0 %v7481
    %7537 = vmatprep.mubr.bf16.mxu0 %v7369
    %7538 = vmatmul.mubr.bf16.gmra.mxu0 %v7368
    %v7539 = vpop.f32.mrf.mxu0
    %v7540 = vadd.f32 %v7407, %v7539
    %v7541 = vpop.f32.mrf.mxu0
    %v7542 = vpop.f32.mrf.mxu0
    %v7543 = vpop.f32.mrf.mxu0
    %7544 = vdwg.mxu0
    %7545 = vst [vmem:[#allocation17] sm:$0xff] %v7540
    // Predicated region
    $region74: #{tpu_custom_call.1} parent=1 // pred_check
      _
    $region75: #{tpu_custom_call.1} parent=1 // pred_check_branch
      %7547 = sbr.rel (0) target = $region77
    $region76: #{tpu_custom_call.1} parent=1 // pred_region
      %s7549 = ssub.s32 128, 128
      %7550 = vsyncadd [#allocation4], %s7549
      %s7552 = sshll.u32 [#allocation17], 4
      %s7553 = int_to_ptr.vmem [resolvable:$true] %s7552
      %7555 = dma.vmem_to_hbm [thread:$0]  %s7553, 128, %s9, [#allocation4]
    $region77: #{tpu_custom_call.1} parent=1 // pred_fallthru
      _
    // Predicated region
    $region78: #{tpu_custom_call.1} parent=1 // pred_check
      _
    $region79: #{tpu_custom_call.1} parent=1 // pred_check_branch
      %7557 = sbr.rel (0) target = $region81
    $region80: #{tpu_custom_call.1} parent=1 // pred_region
      %7558 = dma.done [#allocation4], 128
    $region81: #{tpu_custom_call.1} parent=1 // pred_fallthru
      _
    %7559 = vsyncpa [#allocation3], 1
    %7560 = vsyncpa [#allocation6], 1
    %7561 = vsyncpa [#allocation9], 1
    %7562 = vsyncpa [#allocation12], 1
    %7563 = vsyncpa [#allocation15], 1
    %7564 = vsyncpa [#allocation4], 1

</llo_original>
